<compile_context>
chip_gen: v7x
topology: tpu7x:2x2x1
jax: 0.10.0
libtpu: 0.0.40
codegen_flags: <defaults>
</compile_context>

<pallas_src>
import functools
import math

import jax
import jax.numpy as jnp
from jax.experimental import pallas as pl
from jax.experimental.pallas import tpu as pltpu

LN_EPS = 1e-5


# ----------------------------------------------------------------------------
# In-kernel helpers (operate on values already resident in vregs, f32)
# ----------------------------------------------------------------------------
def _layernorm(y, g, b):
    mu = jnp.mean(y, axis=-1, keepdims=True)
    d = y - mu
    var = jnp.mean(d * d, axis=-1, keepdims=True)
    return d * jax.lax.rsqrt(var + jnp.float32(LN_EPS)) * g + b


def _gelu_tanh(y):
    # TODO(synk): HF Roberta uses erf-exact GELU; erf has no clean Mosaic
    # lowering, so the tanh approximation is used instead.
    c = jnp.float32(0.7978845608028654)
    return 0.5 * y * (1.0 + jnp.tanh(c * (y + 0.044715 * y * y * y)))


# ----------------------------------------------------------------------------
# Fused layer-STACK kernel: grid = (branch E, depth D).  The hidden state is
# carried across depths in a VMEM scratch; weights are streamed per (e, d).
# ----------------------------------------------------------------------------
def _stack_kernel(x_ref, qkvw_ref, qkvb_ref, aow_ref, aob_ref,
                  ln1g_ref, ln1b_ref, iw_ref, ib_ref, ow_ref, ob_ref,
                  ln2g_ref, ln2b_ref, o_ref, h_ref, ctx_ref,
                  *, B, S, num_heads):
    BS, H = h_ref.shape
    dh = H // num_heads

    # depth == 0: seed the resident hidden state from the shared input block.
    @pl.when(pl.program_id(1) == 0)
    def _():
        h_ref[...] = x_ref[...].astype(jnp.float32)

    x = h_ref[...]                                   # (BS, H) f32
    xb = x.astype(jnp.bfloat16)

    # --- fused QKV projection (1/sqrt(dh) already folded into Q columns) -----
    qkv = jnp.dot(xb, qkvw_ref[...],
                  preferred_element_type=jnp.float32) + qkvb_ref[...]

    # --- multi-head self-attention (attention_mask is None -> no mask add) ---
    # Per-head batched einsum over B; no transposes, no concatenates.
    # TODO(synk): at production S, flash-tile over the KV axis instead.
    for hh in range(num_heads):                      # static unroll, nh small
        c0 = hh * dh
        q_h = qkv[:, c0:c0 + dh].reshape(B, S, dh).astype(jnp.bfloat16)
        k_h = qkv[:, H + c0:H + c0 + dh].reshape(B, S, dh).astype(jnp.bfloat16)
        v_h = qkv[:, 2 * H + c0:2 * H + c0 + dh].reshape(B, S, dh
                                                         ).astype(jnp.bfloat16)
        s = jnp.einsum('bqd,bkd->bqk', q_h, k_h,
                       preferred_element_type=jnp.float32)
        s = s - jnp.max(s, axis=-1, keepdims=True)
        p = jnp.exp(s)
        p = p * pl.reciprocal(jnp.sum(p, axis=-1, keepdims=True), approx=True)
        ctx_h = jnp.einsum('bqk,bkd->bqd', p.astype(jnp.bfloat16), v_h,
                           preferred_element_type=jnp.float32)
        # write per-head context into scratch at a static column offset
        ctx_ref[:, c0:c0 + dh] = ctx_h.reshape(BS, dh)

    ctx = ctx_ref[...]                               # (BS, H) f32

    # --- attention output projection + residual + LayerNorm1 (f32 stats) -----
    attn = jnp.dot(ctx.astype(jnp.bfloat16), aow_ref[...],
                   preferred_element_type=jnp.float32) + aob_ref[...]
    y = _layernorm(attn + x, ln1g_ref[...], ln1b_ref[...])

    # --- FFN (GELU) + residual + LayerNorm2 -----------------------------------
    inter = jnp.dot(y.astype(jnp.bfloat16), iw_ref[...],
                    preferred_element_type=jnp.float32) + ib_ref[...]
    inter = _gelu_tanh(inter)
    out = jnp.dot(inter.astype(jnp.bfloat16), ow_ref[...],
                  preferred_element_type=jnp.float32) + ob_ref[...]
    h_new = _layernorm(out + y, ln2g_ref[...], ln2b_ref[...])

    h_ref[...] = h_new                               # carry to next depth
    o_ref[...] = h_new.astype(o_ref.dtype)           # bf16 output block


def run_layer_stack(x, sp, *, B, S, num_heads):
    """Run a stack of RobertaLayers for E branches x D depths in ONE call.

    x : (B*S, H) -- shared initial hidden state for every branch.
    sp: dict of weights with leading (E, D) dims (biases/LN as (E, D, 1, N)).
    Returns (E, B*S, H) bfloat16 (final hidden state of each branch).
    """
    E, D, H, _ = sp["qkv_w"].shape
    I = sp["i_w"].shape[3]
    BS = B * S

    def w_spec(n0, n1):
        # TODO(synk): at production H/I add pipeline_mode=pl.Buffered(1) or an
        # extra K grid axis over I so weights fit v7x's 64 MiB VMEM.
        return pl.BlockSpec((None, None, n0, n1), lambda e, d: (e, d, 0, 0))

    grid_spec = pltpu.PrefetchScalarGridSpec(
        num_scalar_prefetch=0,
        grid=(E, D),                                  # depth innermost
        in_specs=[
            pl.BlockSpec((BS, H), lambda e, d: (0, 0)),   # shared input
            w_spec(H, 3 * H), w_spec(1, 3 * H),           # qkv_w, qkv_b
            w_spec(H, H), w_spec(1, H),                   # ao_w, ao_b
            w_spec(1, H), w_spec(1, H),                   # ln1_g, ln1_b
            w_spec(H, I), w_spec(1, I),                   # i_w, i_b
            w_spec(I, H), w_spec(1, H),                   # o_w, o_b
            w_spec(1, H), w_spec(1, H),                   # ln2_g, ln2_b
        ],
        out_specs=pl.BlockSpec((None, BS, H), lambda e, d: (e, 0, 0)),
        scratch_shapes=[pltpu.VMEM((BS, H), jnp.float32),   # hidden state
                        pltpu.VMEM((BS, H), jnp.float32)],  # attention ctx
    )
    return pl.pallas_call(
        functools.partial(_stack_kernel, B=B, S=S, num_heads=num_heads),
        out_shape=jax.ShapeDtypeStruct((E, BS, H), jnp.bfloat16),
        grid_spec=grid_spec,
        compiler_params=pltpu.CompilerParams(
            dimension_semantics=("parallel", "arbitrary"),
            vmem_limit_bytes=32 * 1024 * 1024),
    )(x, sp["qkv_w"], sp["qkv_b"], sp["ao_w"], sp["ao_b"],
      sp["ln1_g"], sp["ln1_b"], sp["i_w"], sp["i_b"],
      sp["o_w"], sp["o_b"], sp["ln2_g"], sp["ln2_b"])


# ----------------------------------------------------------------------------
# Classification head: tiny (B,H) matmuls -> plain jnp (XLA fuses them).
# Dropout is eval-mode identity.
# ----------------------------------------------------------------------------
def classification_head(p, x):
    h = jnp.tanh(x @ p["dense_w"] + p["dense_b"])
    return h @ p["out_w"] + p["out_b"]


# ----------------------------------------------------------------------------
# Full RobertaMoEEncoder_adaptive forward
# ----------------------------------------------------------------------------
def moe_encoder_forward(params, hidden_states, *, num_heads):
    B, S, H = hidden_states.shape
    kw = dict(B=B, S=S, num_heads=num_heads)
    x = hidden_states.reshape(B * S, H)

    # public layers: one fused stack call (E=1, D=num_public_layers)
    if params.get("public") is not None:
        x = run_layer_stack(x, params["public"], **kw)[0]     # (BS, H) bf16

    # x == hidden_states_inter (torch.clone -> functional alias); gate, shift
    # and every expert branch all start from it.
    if params.get("branch") is not None:
        br = run_layer_stack(x, params["branch"], **kw)       # (2+Ex, BS, H)
        gate_h, shift_h, expert_h = br[0], br[1], br[2:]
    else:
        gate_h = shift_h = x
        expert_h = None
        if params.get("gate_shift") is not None:
            gs = run_layer_stack(x, params["gate_shift"], **kw)
            gate_h, shift_h = gs[0], gs[1]
        if params.get("experts") is not None:
            expert_h = run_layer_stack(x, params["experts"], **kw)

    gates = classification_head(
        params["gate_classifier"],
        gate_h.reshape(B, S, -1)[:, 0, :].astype(jnp.float32))
    shift = classification_head(
        params["shift_classifier"],
        shift_h.reshape(B, S, -1)[:, 0, :].astype(jnp.float32))
    shifted_gates = shift + jax.lax.stop_gradient(gates)      # gates.detach()

    hidden_states_list = []
    if expert_h is not None:
        hidden_states_list = [expert_h[j].reshape(B, S, H).astype(jnp.float32)
                              for j in range(expert_h.shape[0])]
    return hidden_states_list, gates, shifted_gates


# ----------------------------------------------------------------------------
# Deterministic parameter initialization (shapes follow RobertaLayer / head)
# ----------------------------------------------------------------------------
def _init_layer(key, H, I, num_heads):
    ks = jax.random.split(key, 6)

    def w(k, a, b):
        return jax.random.normal(k, (a, b), jnp.float32) * 0.02

    # Fold the 1/sqrt(dh) attention scale into the Q projection (free at init;
    # a nonzero Q bias would have to be scaled as well).
    scale = 1.0 / math.sqrt(H // num_heads)
    qkv_w = jnp.concatenate(
        [w(ks[0], H, H) * scale, w(ks[1], H, H), w(ks[2], H, H)],
        axis=1).astype(jnp.bfloat16)
    return dict(
        qkv_w=qkv_w, qkv_b=jnp.zeros((3 * H,), jnp.float32),
        ao_w=w(ks[3], H, H).astype(jnp.bfloat16),
        ao_b=jnp.zeros((H,), jnp.float32),
        ln1_g=jnp.ones((H,), jnp.float32), ln1_b=jnp.zeros((H,), jnp.float32),
        i_w=w(ks[4], H, I).astype(jnp.bfloat16),
        i_b=jnp.zeros((I,), jnp.float32),
        o_w=w(ks[5], I, H).astype(jnp.bfloat16),
        o_b=jnp.zeros((H,), jnp.float32),
        ln2_g=jnp.ones((H,), jnp.float32), ln2_b=jnp.zeros((H,), jnp.float32),
    )


def _init_head(key, H, num_labels):
    ks = jax.random.split(key, 2)
    # NOTE: the PyTorch module hardcodes 1024 (== config.hidden_size there);
    # the scaled-down hidden size H is used here for consistency.
    return dict(
        dense_w=jax.random.normal(ks[0], (H, H), jnp.float32) * 0.02,
        dense_b=jnp.zeros((H,), jnp.float32),
        out_w=jax.random.normal(ks[1], (H, num_labels), jnp.float32) * 0.02,
        out_b=jnp.zeros((num_labels,), jnp.float32),
    )


def stack_branch_params(branches):
    """branches: list (E) of lists (D) of per-layer dicts -> arrays with a
    leading (E, D) pair of dims; 1-D params become (E, D, 1, N)."""
    mats = ["qkv_w", "ao_w", "i_w", "o_w"]
    vecs = ["qkv_b", "ao_b", "ln1_g", "ln1_b", "i_b", "o_b", "ln2_g", "ln2_b"]
    out = {}
    for n in mats:
        out[n] = jnp.stack(
            [jnp.stack([lp[n] for lp in depth], axis=0) for depth in branches],
            axis=0)
    for n in vecs:
        out[n] = jnp.stack(
            [jnp.stack([lp[n].reshape(1, -1) for lp in depth], axis=0)
             for depth in branches], axis=0)
    return out


def init_params(key, *, H, I, num_hidden_layers, num_public_layers,
                num_experts, num_gate_layer, num_heads):
    n_expert_layers = num_hidden_layers - num_public_layers
    n_keys = (num_public_layers + num_experts * n_expert_layers
              + 2 * num_gate_layer + 2)
    keys = iter(jax.random.split(key, max(n_keys, 2)))

    def mk():
        return _init_layer(next(keys), H, I, num_heads)

    public = [mk() for _ in range(num_public_layers)]
    experts = [[mk() for _ in range(n_expert_layers)]
               for _ in range(num_experts)]
    gate = [mk() for _ in range(num_gate_layer)]
    shift = [mk() for _ in range(num_gate_layer)]

    params = dict(gate_classifier=_init_head(next(keys), H, num_experts),
                  shift_classifier=_init_head(next(keys), H, num_experts))
    if num_public_layers > 0:
        params["public"] = stack_branch_params([public])

    have_gs = num_gate_layer > 0
    have_ex = num_experts > 0 and n_expert_layers > 0
    if have_gs and have_ex and num_gate_layer == n_expert_layers:
        # gate/shift/experts share their input AND their depth count:
        # merge into ONE fused (E = 2 + num_experts) grid.
        params["branch"] = stack_branch_params([gate, shift] + experts)
    else:
        if have_gs:
            params["gate_shift"] = stack_branch_params([gate, shift])
        if have_ex:
            params["experts"] = stack_branch_params(experts)
    return params


if __name__ == "__main__":
    # Small config consistent with the module's forward pass.
    B, S, H = 2, 8, 32
    num_heads = 4
    I = 64                    # intermediate size
    num_hidden_layers = 4
    num_public_layers = 2
    num_experts = 2
    num_gate_layer = 2

    key = jax.random.PRNGKey(0)
    k_params, k_input = jax.random.split(key)
    params = init_params(
        k_params, H=H, I=I, num_hidden_layers=num_hidden_layers,
        num_public_layers=num_public_layers, num_experts=num_experts,
        num_gate_layer=num_gate_layer, num_heads=num_heads)

    hidden_states = jax.random.normal(k_input, (B, S, H), jnp.float32)

    fwd = jax.jit(functools.partial(moe_encoder_forward, num_heads=num_heads))
    hidden_states_list, gates, shifted_gates = fwd(params, hidden_states)

    for h in hidden_states_list:
        jax.block_until_ready(h)
        assert h.shape == (B, S, H)
    jax.block_until_ready(gates)
    jax.block_until_ready(shifted_gates)
    assert gates.shape == (B, num_experts)
    assert shifted_gates.shape == (B, num_experts)
    print("KERNEL_OK")
</pallas_src>

<mosaic_0001>
module attributes {stable_mosaic.version = 11 : i64} {
  func.func @_stack_kernel(%arg0: i32, %arg1: i32, %arg2: memref<16x32xf32, #tpu.memory_space<vmem>>, %arg3: memref<1x1x32x96xbf16, #tpu.memory_space<vmem>>, %arg4: memref<1x1x1x96xf32, #tpu.memory_space<vmem>>, %arg5: memref<1x1x32x32xbf16, #tpu.memory_space<vmem>>, %arg6: memref<1x1x1x32xf32, #tpu.memory_space<vmem>>, %arg7: memref<1x1x1x32xf32, #tpu.memory_space<vmem>>, %arg8: memref<1x1x1x32xf32, #tpu.memory_space<vmem>>, %arg9: memref<1x1x32x64xbf16, #tpu.memory_space<vmem>>, %arg10: memref<1x1x1x64xf32, #tpu.memory_space<vmem>>, %arg11: memref<1x1x64x32xbf16, #tpu.memory_space<vmem>>, %arg12: memref<1x1x1x32xf32, #tpu.memory_space<vmem>>, %arg13: memref<1x1x1x32xf32, #tpu.memory_space<vmem>>, %arg14: memref<1x1x1x32xf32, #tpu.memory_space<vmem>>, %arg15: memref<1x16x32xbf16, #tpu.memory_space<vmem>>, %arg16: memref<16x32xf32, #tpu.memory_space<vmem>>, %arg17: memref<16x32xf32, #tpu.memory_space<vmem>>) attributes {dimension_semantics = [#tpu.dimension_semantics<parallel>, #tpu.dimension_semantics<arbitrary>], iteration_bounds = array<i64: 1, 2>, scalar_prefetch = 0 : i64, scratch_operands = 2 : i64, tpu.core_type = #tpu.core_type<tc>, window_params = [{pipeline_mode = #tpu.pipeline_mode<synchronous>, transform_indices = @transform_0, window_bounds = array<i64: 16, 32>}, {transform_indices = @transform_1, window_bounds = array<i64: 1, 1, 32, 96>}, {transform_indices = @transform_2, window_bounds = array<i64: 1, 1, 1, 96>}, {transform_indices = @transform_3, window_bounds = array<i64: 1, 1, 32, 32>}, {transform_indices = @transform_4, window_bounds = array<i64: 1, 1, 1, 32>}, {transform_indices = @transform_5, window_bounds = array<i64: 1, 1, 1, 32>}, {transform_indices = @transform_6, window_bounds = array<i64: 1, 1, 1, 32>}, {transform_indices = @transform_7, window_bounds = array<i64: 1, 1, 32, 64>}, {transform_indices = @transform_8, window_bounds = array<i64: 1, 1, 1, 64>}, {transform_indices = @transform_9, window_bounds = array<i64: 1, 1, 64, 32>}, {transform_indices = @transform_10, window_bounds = array<i64: 1, 1, 1, 32>}, {transform_indices = @transform_11, window_bounds = array<i64: 1, 1, 1, 32>}, {transform_indices = @transform_12, window_bounds = array<i64: 1, 1, 1, 32>}, {transform_indices = @transform_13, window_bounds = array<i64: 1, 16, 32>}]} {
    %c0_i32 = arith.constant 0 : i32
    %0 = arith.cmpi eq, %arg1, %c0_i32 : i32
    %1 = arith.extui %0 : i1 to i32
    %c0_i32_0 = arith.constant 0 : i32
    %2 = arith.cmpi ne, %1, %c0_i32_0 : i32
    scf.if %2 {
      %c0_95 = arith.constant 0 : index
      %c0_96 = arith.constant 0 : index
      %201 = vector.load %arg2[%c0_95, %c0_96] : memref<16x32xf32, #tpu.memory_space<vmem>>, vector<16x32xf32>
      %c0_97 = arith.constant 0 : index
      %c0_98 = arith.constant 0 : index
      %202 = vector.load %arg16[%c0_97, %c0_98] : memref<16x32xf32, #tpu.memory_space<vmem>>, vector<16x32xf32>
      tpu.vector_store %arg16[%c0_97, %c0_98], %201 {strides = array<i32>} : memref<16x32xf32, #tpu.memory_space<vmem>>, vector<16x32xf32>,
    } else {
    }
    %c0 = arith.constant 0 : index
    %c0_1 = arith.constant 0 : index
    %3 = vector.load %arg16[%c0, %c0_1] : memref<16x32xf32, #tpu.memory_space<vmem>>, vector<16x32xf32>
    %4 = arith.truncf %3 : vector<16x32xf32> to vector<16x32xbf16>
    %c0_2 = arith.constant 0 : index
    %c0_3 = arith.constant 0 : index
    %c0_4 = arith.constant 0 : index
    %c0_5 = arith.constant 0 : index
    %5 = vector.load %arg3[%c0_2, %c0_3, %c0_4, %c0_5] : memref<1x1x32x96xbf16, #tpu.memory_space<vmem>>, vector<1x1x32x96xbf16>
    %6 = vector.shape_cast %5 : vector<1x1x32x96xbf16> to vector<32x96xbf16>
    %cst = arith.constant dense<0.000000e+00> : vector<16x96xf32>
    %7 = tpu.matmul %4, %6, %cst {dimension_numbers = #tpu.dot_dimension_numbers<[1], [0], [0], [1], [0, 0, 1, 1], [], []>} : vector<16x32xbf16>, vector<32x96xbf16>, vector<16x96xf32> -> vector<16x96xf32>
    %c0_6 = arith.constant 0 : index
    %c0_7 = arith.constant 0 : index
    %c0_8 = arith.constant 0 : index
    %c0_9 = arith.constant 0 : index
    %8 = vector.load %arg4[%c0_6, %c0_7, %c0_8, %c0_9] : memref<1x1x1x96xf32, #tpu.memory_space<vmem>>, vector<1x1x1x96xf32>
    %9 = vector.shape_cast %8 : vector<1x1x1x96xf32> to vector<1x96xf32>
    %10 = vector.broadcast %9 : vector<1x96xf32> to vector<16x96xf32>
    %11 = arith.addf %7, %10 : vector<16x96xf32>
    %12 = vector.extract_strided_slice %11 {offsets = [0, 0], sizes = [16, 8], strides = [1, 1]} : vector<16x96xf32> to vector<16x8xf32>
    %13 = vector.shape_cast %12 : vector<16x8xf32> to vector<2x8x8xf32>
    %14 = arith.truncf %13 : vector<2x8x8xf32> to vector<2x8x8xbf16>
    %15 = vector.extract_strided_slice %11 {offsets = [0, 32], sizes = [16, 8], strides = [1, 1]} : vector<16x96xf32> to vector<16x8xf32>
    %16 = vector.shape_cast %15 : vector<16x8xf32> to vector<2x8x8xf32>
    %17 = arith.truncf %16 : vector<2x8x8xf32> to vector<2x8x8xbf16>
    %18 = vector.extract_strided_slice %11 {offsets = [0, 64], sizes = [16, 8], strides = [1, 1]} : vector<16x96xf32> to vector<16x8xf32>
    %19 = vector.shape_cast %18 : vector<16x8xf32> to vector<2x8x8xf32>
    %20 = arith.truncf %19 : vector<2x8x8xf32> to vector<2x8x8xbf16>
    "tpu.trace_start"() <{level = 10 : i32, message = "bqd,bkd->bqk"}> : () -> ()
    %cst_10 = arith.constant dense<0.000000e+00> : vector<2x8x8xf32>
    %21 = tpu.matmul %14, %17, %cst_10 {dimension_numbers = #tpu.dot_dimension_numbers<[2], [2], [1], [1], [0, 0, 0, 1, 1, 1], [0], [0]>} : vector<2x8x8xbf16>, vector<2x8x8xbf16>, vector<2x8x8xf32> -> vector<2x8x8xf32>
    "tpu.trace_stop"() : () -> ()
    %cst_11 = arith.constant dense<0xFF800000> : vector<2x8xf32>
    %22 = vector.multi_reduction <maximumf>, %21, %cst_11 [2] : vector<2x8x8xf32> to vector<2x8xf32>
    %23 = vector.shape_cast %22 : vector<2x8xf32> to vector<2x8x1xf32>
    %24 = vector.broadcast %23 : vector<2x8x1xf32> to vector<2x8x8xf32>
    %25 = arith.subf %21, %24 : vector<2x8x8xf32>
    %26 = math.exp %25 : vector<2x8x8xf32>
    %cst_12 = arith.constant dense<0.000000e+00> : vector<2x8xf32>
    %27 = vector.multi_reduction <add>, %26, %cst_12 [2] : vector<2x8x8xf32> to vector<2x8xf32>
    %28 = vector.shape_cast %27 : vector<2x8xf32> to vector<2x8x1xf32>
    %29 = tpu.reciprocal %28 {approx = true} : vector<2x8x1xf32> -> vector<2x8x1xf32>
    %30 = vector.broadcast %29 : vector<2x8x1xf32> to vector<2x8x8xf32>
    %31 = arith.mulf %26, %30 : vector<2x8x8xf32>
    %32 = arith.truncf %31 : vector<2x8x8xf32> to vector<2x8x8xbf16>
    "tpu.trace_start"() <{level = 10 : i32, message = "bqk,bkd->bqd"}> : () -> ()
    %cst_13 = arith.constant dense<0.000000e+00> : vector<2x8x8xf32>
    %33 = tpu.matmul %32, %20, %cst_13 {dimension_numbers = #tpu.dot_dimension_numbers<[2], [1], [1], [2], [0, 0, 0, 1, 1, 2], [0], [0]>} : vector<2x8x8xbf16>, vector<2x8x8xbf16>, vector<2x8x8xf32> -> vector<2x8x8xf32>
    "tpu.trace_stop"() : () -> ()
    %34 = vector.shape_cast %33 : vector<2x8x8xf32> to vector<16x8xf32>
    %c0_14 = arith.constant 0 : index
    %c0_15 = arith.constant 0 : index
    %35 = vector.load %arg17[%c0_14, %c0_15] : memref<16x32xf32, #tpu.memory_space<vmem>>, vector<16x8xf32>
    tpu.vector_store %arg17[%c0_14, %c0_15], %34 {strides = array<i32>} : memref<16x32xf32, #tpu.memory_space<vmem>>, vector<16x8xf32>,
    %36 = vector.extract_strided_slice %11 {offsets = [0, 8], sizes = [16, 8], strides = [1, 1]} : vector<16x96xf32> to vector<16x8xf32>
    %37 = vector.shape_cast %36 : vector<16x8xf32> to vector<2x8x8xf32>
    %38 = arith.truncf %37 : vector<2x8x8xf32> to vector<2x8x8xbf16>
    %39 = vector.extract_strided_slice %11 {offsets = [0, 40], sizes = [16, 8], strides = [1, 1]} : vector<16x96xf32> to vector<16x8xf32>
    %40 = vector.shape_cast %39 : vector<16x8xf32> to vector<2x8x8xf32>
    %41 = arith.truncf %40 : vector<2x8x8xf32> to vector<2x8x8xbf16>
    %42 = vector.extract_strided_slice %11 {offsets = [0, 72], sizes = [16, 8], strides = [1, 1]} : vector<16x96xf32> to vector<16x8xf32>
    %43 = vector.shape_cast %42 : vector<16x8xf32> to vector<2x8x8xf32>
    %44 = arith.truncf %43 : vector<2x8x8xf32> to vector<2x8x8xbf16>
    "tpu.trace_start"() <{level = 10 : i32, message = "bqd,bkd->bqk"}> : () -> ()
    %cst_16 = arith.constant dense<0.000000e+00> : vector<2x8x8xf32>
    %45 = tpu.matmul %38, %41, %cst_16 {dimension_numbers = #tpu.dot_dimension_numbers<[2], [2], [1], [1], [0, 0, 0, 1, 1, 1], [0], [0]>} : vector<2x8x8xbf16>, vector<2x8x8xbf16>, vector<2x8x8xf32> -> vector<2x8x8xf32>
    "tpu.trace_stop"() : () -> ()
    %cst_17 = arith.constant dense<0xFF800000> : vector<2x8xf32>
    %46 = vector.multi_reduction <maximumf>, %45, %cst_17 [2] : vector<2x8x8xf32> to vector<2x8xf32>
    %47 = vector.shape_cast %46 : vector<2x8xf32> to vector<2x8x1xf32>
    %48 = vector.broadcast %47 : vector<2x8x1xf32> to vector<2x8x8xf32>
    %49 = arith.subf %45, %48 : vector<2x8x8xf32>
    %50 = math.exp %49 : vector<2x8x8xf32>
    %cst_18 = arith.constant dense<0.000000e+00> : vector<2x8xf32>
    %51 = vector.multi_reduction <add>, %50, %cst_18 [2] : vector<2x8x8xf32> to vector<2x8xf32>
    %52 = vector.shape_cast %51 : vector<2x8xf32> to vector<2x8x1xf32>
    %53 = tpu.reciprocal %52 {approx = true} : vector<2x8x1xf32> -> vector<2x8x1xf32>
    %54 = vector.broadcast %53 : vector<2x8x1xf32> to vector<2x8x8xf32>
    %55 = arith.mulf %50, %54 : vector<2x8x8xf32>
    %56 = arith.truncf %55 : vector<2x8x8xf32> to vector<2x8x8xbf16>
    "tpu.trace_start"() <{level = 10 : i32, message = "bqk,bkd->bqd"}> : () -> ()
    %cst_19 = arith.constant dense<0.000000e+00> : vector<2x8x8xf32>
    %57 = tpu.matmul %56, %44, %cst_19 {dimension_numbers = #tpu.dot_dimension_numbers<[2], [1], [1], [2], [0, 0, 0, 1, 1, 2], [0], [0]>} : vector<2x8x8xbf16>, vector<2x8x8xbf16>, vector<2x8x8xf32> -> vector<2x8x8xf32>
    "tpu.trace_stop"() : () -> ()
    %58 = vector.shape_cast %57 : vector<2x8x8xf32> to vector<16x8xf32>
    %c0_20 = arith.constant 0 : index
    %c8 = arith.constant 8 : index
    %59 = vector.load %arg17[%c0_20, %c8] : memref<16x32xf32, #tpu.memory_space<vmem>>, vector<16x8xf32>
    tpu.vector_store %arg17[%c0_20, %c8], %58 {strides = array<i32>} : memref<16x32xf32, #tpu.memory_space<vmem>>, vector<16x8xf32>,
    %60 = vector.extract_strided_slice %11 {offsets = [0, 16], sizes = [16, 8], strides = [1, 1]} : vector<16x96xf32> to vector<16x8xf32>
    %61 = vector.shape_cast %60 : vector<16x8xf32> to vector<2x8x8xf32>
    %62 = arith.truncf %61 : vector<2x8x8xf32> to vector<2x8x8xbf16>
    %63 = vector.extract_strided_slice %11 {offsets = [0, 48], sizes = [16, 8], strides = [1, 1]} : vector<16x96xf32> to vector<16x8xf32>
    %64 = vector.shape_cast %63 : vector<16x8xf32> to vector<2x8x8xf32>
    %65 = arith.truncf %64 : vector<2x8x8xf32> to vector<2x8x8xbf16>
    %66 = vector.extract_strided_slice %11 {offsets = [0, 80], sizes = [16, 8], strides = [1, 1]} : vector<16x96xf32> to vector<16x8xf32>
    %67 = vector.shape_cast %66 : vector<16x8xf32> to vector<2x8x8xf32>
    %68 = arith.truncf %67 : vector<2x8x8xf32> to vector<2x8x8xbf16>
    "tpu.trace_start"() <{level = 10 : i32, message = "bqd,bkd->bqk"}> : () -> ()
    %cst_21 = arith.constant dense<0.000000e+00> : vector<2x8x8xf32>
    %69 = tpu.matmul %62, %65, %cst_21 {dimension_numbers = #tpu.dot_dimension_numbers<[2], [2], [1], [1], [0, 0, 0, 1, 1, 1], [0], [0]>} : vector<2x8x8xbf16>, vector<2x8x8xbf16>, vector<2x8x8xf32> -> vector<2x8x8xf32>
    "tpu.trace_stop"() : () -> ()
    %cst_22 = arith.constant dense<0xFF800000> : vector<2x8xf32>
    %70 = vector.multi_reduction <maximumf>, %69, %cst_22 [2] : vector<2x8x8xf32> to vector<2x8xf32>
    %71 = vector.shape_cast %70 : vector<2x8xf32> to vector<2x8x1xf32>
    %72 = vector.broadcast %71 : vector<2x8x1xf32> to vector<2x8x8xf32>
    %73 = arith.subf %69, %72 : vector<2x8x8xf32>
    %74 = math.exp %73 : vector<2x8x8xf32>
    %cst_23 = arith.constant dense<0.000000e+00> : vector<2x8xf32>
    %75 = vector.multi_reduction <add>, %74, %cst_23 [2] : vector<2x8x8xf32> to vector<2x8xf32>
    %76 = vector.shape_cast %75 : vector<2x8xf32> to vector<2x8x1xf32>
    %77 = tpu.reciprocal %76 {approx = true} : vector<2x8x1xf32> -> vector<2x8x1xf32>
    %78 = vector.broadcast %77 : vector<2x8x1xf32> to vector<2x8x8xf32>
    %79 = arith.mulf %74, %78 : vector<2x8x8xf32>
    %80 = arith.truncf %79 : vector<2x8x8xf32> to vector<2x8x8xbf16>
    "tpu.trace_start"() <{level = 10 : i32, message = "bqk,bkd->bqd"}> : () -> ()
    %cst_24 = arith.constant dense<0.000000e+00> : vector<2x8x8xf32>
    %81 = tpu.matmul %80, %68, %cst_24 {dimension_numbers = #tpu.dot_dimension_numbers<[2], [1], [1], [2], [0, 0, 0, 1, 1, 2], [0], [0]>} : vector<2x8x8xbf16>, vector<2x8x8xbf16>, vector<2x8x8xf32> -> vector<2x8x8xf32>
    "tpu.trace_stop"() : () -> ()
    %82 = vector.shape_cast %81 : vector<2x8x8xf32> to vector<16x8xf32>
    %c0_25 = arith.constant 0 : index
    %c16 = arith.constant 16 : index
    %83 = vector.load %arg17[%c0_25, %c16] : memref<16x32xf32, #tpu.memory_space<vmem>>, vector<16x8xf32>
    tpu.vector_store %arg17[%c0_25, %c16], %82 {strides = array<i32>} : memref<16x32xf32, #tpu.memory_space<vmem>>, vector<16x8xf32>,
    %84 = vector.extract_strided_slice %11 {offsets = [0, 24], sizes = [16, 8], strides = [1, 1]} : vector<16x96xf32> to vector<16x8xf32>
    %85 = vector.shape_cast %84 : vector<16x8xf32> to vector<2x8x8xf32>
    %86 = arith.truncf %85 : vector<2x8x8xf32> to vector<2x8x8xbf16>
    %87 = vector.extract_strided_slice %11 {offsets = [0, 56], sizes = [16, 8], strides = [1, 1]} : vector<16x96xf32> to vector<16x8xf32>
    %88 = vector.shape_cast %87 : vector<16x8xf32> to vector<2x8x8xf32>
    %89 = arith.truncf %88 : vector<2x8x8xf32> to vector<2x8x8xbf16>
    %90 = vector.extract_strided_slice %11 {offsets = [0, 88], sizes = [16, 8], strides = [1, 1]} : vector<16x96xf32> to vector<16x8xf32>
    %91 = vector.shape_cast %90 : vector<16x8xf32> to vector<2x8x8xf32>
    %92 = arith.truncf %91 : vector<2x8x8xf32> to vector<2x8x8xbf16>
    "tpu.trace_start"() <{level = 10 : i32, message = "bqd,bkd->bqk"}> : () -> ()
    %cst_26 = arith.constant dense<0.000000e+00> : vector<2x8x8xf32>
    %93 = tpu.matmul %86, %89, %cst_26 {dimension_numbers = #tpu.dot_dimension_numbers<[2], [2], [1], [1], [0, 0, 0, 1, 1, 1], [0], [0]>} : vector<2x8x8xbf16>, vector<2x8x8xbf16>, vector<2x8x8xf32> -> vector<2x8x8xf32>
    "tpu.trace_stop"() : () -> ()
    %cst_27 = arith.constant dense<0xFF800000> : vector<2x8xf32>
    %94 = vector.multi_reduction <maximumf>, %93, %cst_27 [2] : vector<2x8x8xf32> to vector<2x8xf32>
    %95 = vector.shape_cast %94 : vector<2x8xf32> to vector<2x8x1xf32>
    %96 = vector.broadcast %95 : vector<2x8x1xf32> to vector<2x8x8xf32>
    %97 = arith.subf %93, %96 : vector<2x8x8xf32>
    %98 = math.exp %97 : vector<2x8x8xf32>
    %cst_28 = arith.constant dense<0.000000e+00> : vector<2x8xf32>
    %99 = vector.multi_reduction <add>, %98, %cst_28 [2] : vector<2x8x8xf32> to vector<2x8xf32>
    %100 = vector.shape_cast %99 : vector<2x8xf32> to vector<2x8x1xf32>
    %101 = tpu.reciprocal %100 {approx = true} : vector<2x8x1xf32> -> vector<2x8x1xf32>
    %102 = vector.broadcast %101 : vector<2x8x1xf32> to vector<2x8x8xf32>
    %103 = arith.mulf %98, %102 : vector<2x8x8xf32>
    %104 = arith.truncf %103 : vector<2x8x8xf32> to vector<2x8x8xbf16>
    "tpu.trace_start"() <{level = 10 : i32, message = "bqk,bkd->bqd"}> : () -> ()
    %cst_29 = arith.constant dense<0.000000e+00> : vector<2x8x8xf32>
    %105 = tpu.matmul %104, %92, %cst_29 {dimension_numbers = #tpu.dot_dimension_numbers<[2], [1], [1], [2], [0, 0, 0, 1, 1, 2], [0], [0]>} : vector<2x8x8xbf16>, vector<2x8x8xbf16>, vector<2x8x8xf32> -> vector<2x8x8xf32>
    "tpu.trace_stop"() : () -> ()
    %106 = vector.shape_cast %105 : vector<2x8x8xf32> to vector<16x8xf32>
    %c0_30 = arith.constant 0 : index
    %c24 = arith.constant 24 : index
    %107 = vector.load %arg17[%c0_30, %c24] : memref<16x32xf32, #tpu.memory_space<vmem>>, vector<16x8xf32>
    tpu.vector_store %arg17[%c0_30, %c24], %106 {strides = array<i32>} : memref<16x32xf32, #tpu.memory_space<vmem>>, vector<16x8xf32>,
    %c0_31 = arith.constant 0 : index
    %c0_32 = arith.constant 0 : index
    %108 = vector.load %arg17[%c0_31, %c0_32] : memref<16x32xf32, #tpu.memory_space<vmem>>, vector<16x32xf32>
    %109 = arith.truncf %108 : vector<16x32xf32> to vector<16x32xbf16>
    %c0_33 = arith.constant 0 : index
    %c0_34 = arith.constant 0 : index
    %c0_35 = arith.constant 0 : index
    %c0_36 = arith.constant 0 : index
    %110 = vector.load %arg5[%c0_33, %c0_34, %c0_35, %c0_36] : memref<1x1x32x32xbf16, #tpu.memory_space<vmem>>, vector<1x1x32x32xbf16>
    %111 = vector.shape_cast %110 : vector<1x1x32x32xbf16> to vector<32x32xbf16>
    %cst_37 = arith.constant dense<0.000000e+00> : vector<16x32xf32>
    %112 = tpu.matmul %109, %111, %cst_37 {dimension_numbers = #tpu.dot_dimension_numbers<[1], [0], [0], [1], [0, 0, 1, 1], [], []>} : vector<16x32xbf16>, vector<32x32xbf16>, vector<16x32xf32> -> vector<16x32xf32>
    %c0_38 = arith.constant 0 : index
    %c0_39 = arith.constant 0 : index
    %c0_40 = arith.constant 0 : index
    %c0_41 = arith.constant 0 : index
    %113 = vector.load %arg6[%c0_38, %c0_39, %c0_40, %c0_41] : memref<1x1x1x32xf32, #tpu.memory_space<vmem>>, vector<1x1x1x32xf32>
    %114 = vector.shape_cast %113 : vector<1x1x1x32xf32> to vector<1x32xf32>
    %115 = vector.broadcast %114 : vector<1x32xf32> to vector<16x32xf32>
    %116 = arith.addf %112, %115 : vector<16x32xf32>
    %117 = arith.addf %116, %3 : vector<16x32xf32>
    %c0_42 = arith.constant 0 : index
    %c0_43 = arith.constant 0 : index
    %c0_44 = arith.constant 0 : index
    %c0_45 = arith.constant 0 : index
    %118 = vector.load %arg7[%c0_42, %c0_43, %c0_44, %c0_45] : memref<1x1x1x32xf32, #tpu.memory_space<vmem>>, vector<1x1x1x32xf32>
    %119 = vector.shape_cast %118 : vector<1x1x1x32xf32> to vector<1x32xf32>
    %c0_46 = arith.constant 0 : index
    %c0_47 = arith.constant 0 : index
    %c0_48 = arith.constant 0 : index
    %c0_49 = arith.constant 0 : index
    %120 = vector.load %arg8[%c0_46, %c0_47, %c0_48, %c0_49] : memref<1x1x1x32xf32, #tpu.memory_space<vmem>>, vector<1x1x1x32xf32>
    %121 = vector.shape_cast %120 : vector<1x1x1x32xf32> to vector<1x32xf32>
    %cst_50 = arith.constant dense<0.000000e+00> : vector<16xf32>
    %122 = vector.multi_reduction <add>, %117, %cst_50 [1] : vector<16x32xf32> to vector<16xf32>
    %123 = vector.shape_cast %122 : vector<16xf32> to vector<16x1xf32>
    %cst_51 = arith.constant 3.200000e+01 : f32
    %124 = vector.broadcast %cst_51 : f32 to vector<16x1xf32>
    %125 = arith.divf %123, %124 : vector<16x1xf32>
    %126 = vector.broadcast %125 : vector<16x1xf32> to vector<16x32xf32>
    %127 = arith.subf %117, %126 : vector<16x32xf32>
    %128 = arith.mulf %127, %127 : vector<16x32xf32>
    %cst_52 = arith.constant dense<0.000000e+00> : vector<16xf32>
    %129 = vector.multi_reduction <add>, %128, %cst_52 [1] : vector<16x32xf32> to vector<16xf32>
    %130 = vector.shape_cast %129 : vector<16xf32> to vector<16x1xf32>
    %cst_53 = arith.constant 3.200000e+01 : f32
    %131 = vector.broadcast %cst_53 : f32 to vector<16x1xf32>
    %132 = arith.divf %130, %131 : vector<16x1xf32>
    %cst_54 = arith.constant 9.99999974E-6 : f32
    %133 = vector.broadcast %cst_54 : f32 to vector<16x1xf32>
    %134 = arith.addf %132, %133 : vector<16x1xf32>
    %135 = math.rsqrt %134 : vector<16x1xf32>
    %136 = vector.broadcast %135 : vector<16x1xf32> to vector<16x32xf32>
    %137 = arith.mulf %127, %136 : vector<16x32xf32>
    %138 = vector.broadcast %119 : vector<1x32xf32> to vector<16x32xf32>
    %139 = arith.mulf %137, %138 : vector<16x32xf32>
    %140 = vector.broadcast %121 : vector<1x32xf32> to vector<16x32xf32>
    %141 = arith.addf %139, %140 : vector<16x32xf32>
    %142 = arith.truncf %141 : vector<16x32xf32> to vector<16x32xbf16>
    %c0_55 = arith.constant 0 : index
    %c0_56 = arith.constant 0 : index
    %c0_57 = arith.constant 0 : index
    %c0_58 = arith.constant 0 : index
    %143 = vector.load %arg9[%c0_55, %c0_56, %c0_57, %c0_58] : memref<1x1x32x64xbf16, #tpu.memory_space<vmem>>, vector<1x1x32x64xbf16>
    %144 = vector.shape_cast %143 : vector<1x1x32x64xbf16> to vector<32x64xbf16>
    %cst_59 = arith.constant dense<0.000000e+00> : vector<16x64xf32>
    %145 = tpu.matmul %142, %144, %cst_59 {dimension_numbers = #tpu.dot_dimension_numbers<[1], [0], [0], [1], [0, 0, 1, 1], [], []>} : vector<16x32xbf16>, vector<32x64xbf16>, vector<16x64xf32> -> vector<16x64xf32>
    %c0_60 = arith.constant 0 : index
    %c0_61 = arith.constant 0 : index
    %c0_62 = arith.constant 0 : index
    %c0_63 = arith.constant 0 : index
    %146 = vector.load %arg10[%c0_60, %c0_61, %c0_62, %c0_63] : memref<1x1x1x64xf32, #tpu.memory_space<vmem>>, vector<1x1x1x64xf32>
    %147 = vector.shape_cast %146 : vector<1x1x1x64xf32> to vector<1x64xf32>
    %148 = vector.broadcast %147 : vector<1x64xf32> to vector<16x64xf32>
    %149 = arith.addf %145, %148 : vector<16x64xf32>
    %cst_64 = arith.constant 5.000000e-01 : f32
    %150 = vector.broadcast %cst_64 : f32 to vector<16x64xf32>
    %151 = arith.mulf %150, %149 : vector<16x64xf32>
    %cst_65 = arith.constant 4.471500e-02 : f32
    %152 = vector.broadcast %cst_65 : f32 to vector<16x64xf32>
    %153 = arith.mulf %152, %149 : vector<16x64xf32>
    %154 = arith.mulf %153, %149 : vector<16x64xf32>
    %155 = arith.mulf %154, %149 : vector<16x64xf32>
    %156 = arith.addf %149, %155 : vector<16x64xf32>
    %cst_66 = arith.constant 0.797884583 : f32
    %157 = vector.broadcast %cst_66 : f32 to vector<16x64xf32>
    %158 = arith.mulf %157, %156 : vector<16x64xf32>
    %159 = math.tanh %158 : vector<16x64xf32>
    %cst_67 = arith.constant 1.000000e+00 : f32
    %160 = vector.broadcast %cst_67 : f32 to vector<16x64xf32>
    %161 = arith.addf %160, %159 : vector<16x64xf32>
    %162 = arith.mulf %151, %161 : vector<16x64xf32>
    %163 = arith.truncf %162 : vector<16x64xf32> to vector<16x64xbf16>
    %c0_68 = arith.constant 0 : index
    %c0_69 = arith.constant 0 : index
    %c0_70 = arith.constant 0 : index
    %c0_71 = arith.constant 0 : index
    %164 = vector.load %arg11[%c0_68, %c0_69, %c0_70, %c0_71] : memref<1x1x64x32xbf16, #tpu.memory_space<vmem>>, vector<1x1x64x32xbf16>
    %165 = vector.shape_cast %164 : vector<1x1x64x32xbf16> to vector<64x32xbf16>
    %cst_72 = arith.constant dense<0.000000e+00> : vector<16x32xf32>
    %166 = tpu.matmul %163, %165, %cst_72 {dimension_numbers = #tpu.dot_dimension_numbers<[1], [0], [0], [1], [0, 0, 1, 1], [], []>} : vector<16x64xbf16>, vector<64x32xbf16>, vector<16x32xf32> -> vector<16x32xf32>
    %c0_73 = arith.constant 0 : index
    %c0_74 = arith.constant 0 : index
    %c0_75 = arith.constant 0 : index
    %c0_76 = arith.constant 0 : index
    %167 = vector.load %arg12[%c0_73, %c0_74, %c0_75, %c0_76] : memref<1x1x1x32xf32, #tpu.memory_space<vmem>>, vector<1x1x1x32xf32>
    %168 = vector.shape_cast %167 : vector<1x1x1x32xf32> to vector<1x32xf32>
    %169 = vector.broadcast %168 : vector<1x32xf32> to vector<16x32xf32>
    %170 = arith.addf %166, %169 : vector<16x32xf32>
    %171 = arith.addf %170, %141 : vector<16x32xf32>
    %c0_77 = arith.constant 0 : index
    %c0_78 = arith.constant 0 : index
    %c0_79 = arith.constant 0 : index
    %c0_80 = arith.constant 0 : index
    %172 = vector.load %arg13[%c0_77, %c0_78, %c0_79, %c0_80] : memref<1x1x1x32xf32, #tpu.memory_space<vmem>>, vector<1x1x1x32xf32>
    %173 = vector.shape_cast %172 : vector<1x1x1x32xf32> to vector<1x32xf32>
    %c0_81 = arith.constant 0 : index
    %c0_82 = arith.constant 0 : index
    %c0_83 = arith.constant 0 : index
    %c0_84 = arith.constant 0 : index
    %174 = vector.load %arg14[%c0_81, %c0_82, %c0_83, %c0_84] : memref<1x1x1x32xf32, #tpu.memory_space<vmem>>, vector<1x1x1x32xf32>
    %175 = vector.shape_cast %174 : vector<1x1x1x32xf32> to vector<1x32xf32>
    %cst_85 = arith.constant dense<0.000000e+00> : vector<16xf32>
    %176 = vector.multi_reduction <add>, %171, %cst_85 [1] : vector<16x32xf32> to vector<16xf32>
    %177 = vector.shape_cast %176 : vector<16xf32> to vector<16x1xf32>
    %cst_86 = arith.constant 3.200000e+01 : f32
    %178 = vector.broadcast %cst_86 : f32 to vector<16x1xf32>
    %179 = arith.divf %177, %178 : vector<16x1xf32>
    %180 = vector.broadcast %179 : vector<16x1xf32> to vector<16x32xf32>
    %181 = arith.subf %171, %180 : vector<16x32xf32>
    %182 = arith.mulf %181, %181 : vector<16x32xf32>
    %cst_87 = arith.constant dense<0.000000e+00> : vector<16xf32>
    %183 = vector.multi_reduction <add>, %182, %cst_87 [1] : vector<16x32xf32> to vector<16xf32>
    %184 = vector.shape_cast %183 : vector<16xf32> to vector<16x1xf32>
    %cst_88 = arith.constant 3.200000e+01 : f32
    %185 = vector.broadcast %cst_88 : f32 to vector<16x1xf32>
    %186 = arith.divf %184, %185 : vector<16x1xf32>
    %cst_89 = arith.constant 9.99999974E-6 : f32
    %187 = vector.broadcast %cst_89 : f32 to vector<16x1xf32>
    %188 = arith.addf %186, %187 : vector<16x1xf32>
    %189 = math.rsqrt %188 : vector<16x1xf32>
    %190 = vector.broadcast %189 : vector<16x1xf32> to vector<16x32xf32>
    %191 = arith.mulf %181, %190 : vector<16x32xf32>
    %192 = vector.broadcast %173 : vector<1x32xf32> to vector<16x32xf32>
    %193 = arith.mulf %191, %192 : vector<16x32xf32>
    %194 = vector.broadcast %175 : vector<1x32xf32> to vector<16x32xf32>
    %195 = arith.addf %193, %194 : vector<16x32xf32>
    %c0_90 = arith.constant 0 : index
    %c0_91 = arith.constant 0 : index
    %196 = vector.load %arg16[%c0_90, %c0_91] : memref<16x32xf32, #tpu.memory_space<vmem>>, vector<16x32xf32>
    tpu.vector_store %arg16[%c0_90, %c0_91], %195 {strides = array<i32>} : memref<16x32xf32, #tpu.memory_space<vmem>>, vector<16x32xf32>,
    %197 = arith.truncf %195 : vector<16x32xf32> to vector<16x32xbf16>
    %c0_92 = arith.constant 0 : index
    %c0_93 = arith.constant 0 : index
    %c0_94 = arith.constant 0 : index
    %198 = vector.load %arg15[%c0_92, %c0_93, %c0_94] : memref<1x16x32xbf16, #tpu.memory_space<vmem>>, vector<1x16x32xbf16>
    %199 = vector.shape_cast %198 : vector<1x16x32xbf16> to vector<16x32xbf16>
    %200 = vector.shape_cast %197 : vector<16x32xbf16> to vector<1x16x32xbf16>
    tpu.vector_store %arg15[%c0_92, %c0_93, %c0_94], %200 {strides = array<i32>} : memref<1x16x32xbf16, #tpu.memory_space<vmem>>, vector<1x16x32xbf16>,
    return
  }
  func.func @transform_0(%arg0: i32, %arg1: i32) -> (i32, i32) {
    %c0_i32 = arith.constant 0 : i32
    %c0_i32_0 = arith.constant 0 : i32
    %c0_i32_1 = arith.constant 0 : i32
    return %c0_i32, %c0_i32_0 : i32, i32
  }
  func.func @transform_1(%arg0: i32, %arg1: i32) -> (i32, i32, i32, i32) {
    %c0_i32 = arith.constant 0 : i32
    %c0_i32_0 = arith.constant 0 : i32
    %c0_i32_1 = arith.constant 0 : i32
    return %arg0, %arg1, %c0_i32, %c0_i32_0 : i32, i32, i32, i32
  }
  func.func @transform_2(%arg0: i32, %arg1: i32) -> (i32, i32, i32, i32) {
    %c0_i32 = arith.constant 0 : i32
    %c0_i32_0 = arith.constant 0 : i32
    %c0_i32_1 = arith.constant 0 : i32
    return %arg0, %arg1, %c0_i32, %c0_i32_0 : i32, i32, i32, i32
  }
  func.func @transform_3(%arg0: i32, %arg1: i32) -> (i32, i32, i32, i32) {
    %c0_i32 = arith.constant 0 : i32
    %c0_i32_0 = arith.constant 0 : i32
    %c0_i32_1 = arith.constant 0 : i32
    return %arg0, %arg1, %c0_i32, %c0_i32_0 : i32, i32, i32, i32
  }
  func.func @transform_4(%arg0: i32, %arg1: i32) -> (i32, i32, i32, i32) {
    %c0_i32 = arith.constant 0 : i32
    %c0_i32_0 = arith.constant 0 : i32
    %c0_i32_1 = arith.constant 0 : i32
    return %arg0, %arg1, %c0_i32, %c0_i32_0 : i32, i32, i32, i32
  }
  func.func @transform_5(%arg0: i32, %arg1: i32) -> (i32, i32, i32, i32) {
    %c0_i32 = arith.constant 0 : i32
    %c0_i32_0 = arith.constant 0 : i32
    %c0_i32_1 = arith.constant 0 : i32
    return %arg0, %arg1, %c0_i32, %c0_i32_0 : i32, i32, i32, i32
  }
  func.func @transform_6(%arg0: i32, %arg1: i32) -> (i32, i32, i32, i32) {
    %c0_i32 = arith.constant 0 : i32
    %c0_i32_0 = arith.constant 0 : i32
    %c0_i32_1 = arith.constant 0 : i32
    return %arg0, %arg1, %c0_i32, %c0_i32_0 : i32, i32, i32, i32
  }
  func.func @transform_7(%arg0: i32, %arg1: i32) -> (i32, i32, i32, i32) {
    %c0_i32 = arith.constant 0 : i32
    %c0_i32_0 = arith.constant 0 : i32
    %c0_i32_1 = arith.constant 0 : i32
    return %arg0, %arg1, %c0_i32, %c0_i32_0 : i32, i32, i32, i32
  }
  func.func @transform_8(%arg0: i32, %arg1: i32) -> (i32, i32, i32, i32) {
    %c0_i32 = arith.constant 0 : i32
    %c0_i32_0 = arith.constant 0 : i32
    %c0_i32_1 = arith.constant 0 : i32
    return %arg0, %arg1, %c0_i32, %c0_i32_0 : i32, i32, i32, i32
  }
  func.func @transform_9(%arg0: i32, %arg1: i32) -> (i32, i32, i32, i32) {
    %c0_i32 = arith.constant 0 : i32
    %c0_i32_0 = arith.constant 0 : i32
    %c0_i32_1 = arith.constant 0 : i32
    return %arg0, %arg1, %c0_i32, %c0_i32_0 : i32, i32, i32, i32
  }
  func.func @transform_10(%arg0: i32, %arg1: i32) -> (i32, i32, i32, i32) {
    %c0_i32 = arith.constant 0 : i32
    %c0_i32_0 = arith.constant 0 : i32
    %c0_i32_1 = arith.constant 0 : i32
    return %arg0, %arg1, %c0_i32, %c0_i32_0 : i32, i32, i32, i32
  }
  func.func @transform_11(%arg0: i32, %arg1: i32) -> (i32, i32, i32, i32) {
    %c0_i32 = arith.constant 0 : i32
    %c0_i32_0 = arith.constant 0 : i32
    %c0_i32_1 = arith.constant 0 : i32
    return %arg0, %arg1, %c0_i32, %c0_i32_0 : i32, i32, i32, i32
  }
  func.func @transform_12(%arg0: i32, %arg1: i32) -> (i32, i32, i32, i32) {
    %c0_i32 = arith.constant 0 : i32
    %c0_i32_0 = arith.constant 0 : i32
    %c0_i32_1 = arith.constant 0 : i32
    return %arg0, %arg1, %c0_i32, %c0_i32_0 : i32, i32, i32, i32
  }
  func.func @transform_13(%arg0: i32, %arg1: i32) -> (i32, i32, i32) {
    %c0_i32 = arith.constant 0 : i32
    %c0_i32_0 = arith.constant 0 : i32
    %c0_i32_1 = arith.constant 0 : i32
    return %arg0, %c0_i32, %c0_i32_0 : i32, i32, i32
  }
}

module attributes {stable_mosaic.version = 11 : i64} {
  func.func @_stack_kernel(%arg0: i32, %arg1: i32, %arg2: memref<16x32xbf16, #tpu.memory_space<vmem>>, %arg3: memref<1x1x32x96xbf16, #tpu.memory_space<vmem>>, %arg4: memref<1x1x1x96xf32, #tpu.memory_space<vmem>>, %arg5: memref<1x1x32x32xbf16, #tpu.memory_space<vmem>>, %arg6: memref<1x1x1x32xf32, #tpu.memory_space<vmem>>, %arg7: memref<1x1x1x32xf32, #tpu.memory_space<vmem>>, %arg8: memref<1x1x1x32xf32, #tpu.memory_space<vmem>>, %arg9: memref<1x1x32x64xbf16, #tpu.memory_space<vmem>>, %arg10: memref<1x1x1x64xf32, #tpu.memory_space<vmem>>, %arg11: memref<1x1x64x32xbf16, #tpu.memory_space<vmem>>, %arg12: memref<1x1x1x32xf32, #tpu.memory_space<vmem>>, %arg13: memref<1x1x1x32xf32, #tpu.memory_space<vmem>>, %arg14: memref<1x1x1x32xf32, #tpu.memory_space<vmem>>, %arg15: memref<1x16x32xbf16, #tpu.memory_space<vmem>>, %arg16: memref<16x32xf32, #tpu.memory_space<vmem>>, %arg17: memref<16x32xf32, #tpu.memory_space<vmem>>) attributes {dimension_semantics = [#tpu.dimension_semantics<parallel>, #tpu.dimension_semantics<arbitrary>], iteration_bounds = array<i64: 4, 2>, scalar_prefetch = 0 : i64, scratch_operands = 2 : i64, tpu.core_type = #tpu.core_type<tc>, window_params = [{pipeline_mode = #tpu.pipeline_mode<synchronous>, transform_indices = @transform_0, window_bounds = array<i64: 16, 32>}, {transform_indices = @transform_1, window_bounds = array<i64: 1, 1, 32, 96>}, {transform_indices = @transform_2, window_bounds = array<i64: 1, 1, 1, 96>}, {transform_indices = @transform_3, window_bounds = array<i64: 1, 1, 32, 32>}, {transform_indices = @transform_4, window_bounds = array<i64: 1, 1, 1, 32>}, {transform_indices = @transform_5, window_bounds = array<i64: 1, 1, 1, 32>}, {transform_indices = @transform_6, window_bounds = array<i64: 1, 1, 1, 32>}, {transform_indices = @transform_7, window_bounds = array<i64: 1, 1, 32, 64>}, {transform_indices = @transform_8, window_bounds = array<i64: 1, 1, 1, 64>}, {transform_indices = @transform_9, window_bounds = array<i64: 1, 1, 64, 32>}, {transform_indices = @transform_10, window_bounds = array<i64: 1, 1, 1, 32>}, {transform_indices = @transform_11, window_bounds = array<i64: 1, 1, 1, 32>}, {transform_indices = @transform_12, window_bounds = array<i64: 1, 1, 1, 32>}, {transform_indices = @transform_13, window_bounds = array<i64: 1, 16, 32>}]} {
    %c0_i32 = arith.constant 0 : i32
    %0 = arith.cmpi eq, %arg1, %c0_i32 : i32
    %1 = arith.extui %0 : i1 to i32
    %c0_i32_0 = arith.constant 0 : i32
    %2 = arith.cmpi ne, %1, %c0_i32_0 : i32
    scf.if %2 {
      %c0_95 = arith.constant 0 : index
      %c0_96 = arith.constant 0 : index
      %201 = vector.load %arg2[%c0_95, %c0_96] : memref<16x32xbf16, #tpu.memory_space<vmem>>, vector<16x32xbf16>
      %202 = arith.extf %201 : vector<16x32xbf16> to vector<16x32xf32>
      %c0_97 = arith.constant 0 : index
      %c0_98 = arith.constant 0 : index
      %203 = vector.load %arg16[%c0_97, %c0_98] : memref<16x32xf32, #tpu.memory_space<vmem>>, vector<16x32xf32>
      tpu.vector_store %arg16[%c0_97, %c0_98], %202 {strides = array<i32>} : memref<16x32xf32, #tpu.memory_space<vmem>>, vector<16x32xf32>,
    } else {
    }
    %c0 = arith.constant 0 : index
    %c0_1 = arith.constant 0 : index
    %3 = vector.load %arg16[%c0, %c0_1] : memref<16x32xf32, #tpu.memory_space<vmem>>, vector<16x32xf32>
    %4 = arith.truncf %3 : vector<16x32xf32> to vector<16x32xbf16>
    %c0_2 = arith.constant 0 : index
    %c0_3 = arith.constant 0 : index
    %c0_4 = arith.constant 0 : index
    %c0_5 = arith.constant 0 : index
    %5 = vector.load %arg3[%c0_2, %c0_3, %c0_4, %c0_5] : memref<1x1x32x96xbf16, #tpu.memory_space<vmem>>, vector<1x1x32x96xbf16>
    %6 = vector.shape_cast %5 : vector<1x1x32x96xbf16> to vector<32x96xbf16>
    %cst = arith.constant dense<0.000000e+00> : vector<16x96xf32>
    %7 = tpu.matmul %4, %6, %cst {dimension_numbers = #tpu.dot_dimension_numbers<[1], [0], [0], [1], [0, 0, 1, 1], [], []>} : vector<16x32xbf16>, vector<32x96xbf16>, vector<16x96xf32> -> vector<16x96xf32>
    %c0_6 = arith.constant 0 : index
    %c0_7 = arith.constant 0 : index
    %c0_8 = arith.constant 0 : index
    %c0_9 = arith.constant 0 : index
    %8 = vector.load %arg4[%c0_6, %c0_7, %c0_8, %c0_9] : memref<1x1x1x96xf32, #tpu.memory_space<vmem>>, vector<1x1x1x96xf32>
    %9 = vector.shape_cast %8 : vector<1x1x1x96xf32> to vector<1x96xf32>
    %10 = vector.broadcast %9 : vector<1x96xf32> to vector<16x96xf32>
    %11 = arith.addf %7, %10 : vector<16x96xf32>
    %12 = vector.extract_strided_slice %11 {offsets = [0, 0], sizes = [16, 8], strides = [1, 1]} : vector<16x96xf32> to vector<16x8xf32>
    %13 = vector.shape_cast %12 : vector<16x8xf32> to vector<2x8x8xf32>
    %14 = arith.truncf %13 : vector<2x8x8xf32> to vector<2x8x8xbf16>
    %15 = vector.extract_strided_slice %11 {offsets = [0, 32], sizes = [16, 8], strides = [1, 1]} : vector<16x96xf32> to vector<16x8xf32>
    %16 = vector.shape_cast %15 : vector<16x8xf32> to vector<2x8x8xf32>
    %17 = arith.truncf %16 : vector<2x8x8xf32> to vector<2x8x8xbf16>
    %18 = vector.extract_strided_slice %11 {offsets = [0, 64], sizes = [16, 8], strides = [1, 1]} : vector<16x96xf32> to vector<16x8xf32>
    %19 = vector.shape_cast %18 : vector<16x8xf32> to vector<2x8x8xf32>
    %20 = arith.truncf %19 : vector<2x8x8xf32> to vector<2x8x8xbf16>
    "tpu.trace_start"() <{level = 10 : i32, message = "bqd,bkd->bqk"}> : () -> ()
    %cst_10 = arith.constant dense<0.000000e+00> : vector<2x8x8xf32>
    %21 = tpu.matmul %14, %17, %cst_10 {dimension_numbers = #tpu.dot_dimension_numbers<[2], [2], [1], [1], [0, 0, 0, 1, 1, 1], [0], [0]>} : vector<2x8x8xbf16>, vector<2x8x8xbf16>, vector<2x8x8xf32> -> vector<2x8x8xf32>
    "tpu.trace_stop"() : () -> ()
    %cst_11 = arith.constant dense<0xFF800000> : vector<2x8xf32>
    %22 = vector.multi_reduction <maximumf>, %21, %cst_11 [2] : vector<2x8x8xf32> to vector<2x8xf32>
    %23 = vector.shape_cast %22 : vector<2x8xf32> to vector<2x8x1xf32>
    %24 = vector.broadcast %23 : vector<2x8x1xf32> to vector<2x8x8xf32>
    %25 = arith.subf %21, %24 : vector<2x8x8xf32>
    %26 = math.exp %25 : vector<2x8x8xf32>
    %cst_12 = arith.constant dense<0.000000e+00> : vector<2x8xf32>
    %27 = vector.multi_reduction <add>, %26, %cst_12 [2] : vector<2x8x8xf32> to vector<2x8xf32>
    %28 = vector.shape_cast %27 : vector<2x8xf32> to vector<2x8x1xf32>
    %29 = tpu.reciprocal %28 {approx = true} : vector<2x8x1xf32> -> vector<2x8x1xf32>
    %30 = vector.broadcast %29 : vector<2x8x1xf32> to vector<2x8x8xf32>
    %31 = arith.mulf %26, %30 : vector<2x8x8xf32>
    %32 = arith.truncf %31 : vector<2x8x8xf32> to vector<2x8x8xbf16>
    "tpu.trace_start"() <{level = 10 : i32, message = "bqk,bkd->bqd"}> : () -> ()
    %cst_13 = arith.constant dense<0.000000e+00> : vector<2x8x8xf32>
    %33 = tpu.matmul %32, %20, %cst_13 {dimension_numbers = #tpu.dot_dimension_numbers<[2], [1], [1], [2], [0, 0, 0, 1, 1, 2], [0], [0]>} : vector<2x8x8xbf16>, vector<2x8x8xbf16>, vector<2x8x8xf32> -> vector<2x8x8xf32>
    "tpu.trace_stop"() : () -> ()
    %34 = vector.shape_cast %33 : vector<2x8x8xf32> to vector<16x8xf32>
    %c0_14 = arith.constant 0 : index
    %c0_15 = arith.constant 0 : index
    %35 = vector.load %arg17[%c0_14, %c0_15] : memref<16x32xf32, #tpu.memory_space<vmem>>, vector<16x8xf32>
    tpu.vector_store %arg17[%c0_14, %c0_15], %34 {strides = array<i32>} : memref<16x32xf32, #tpu.memory_space<vmem>>, vector<16x8xf32>,
    %36 = vector.extract_strided_slice %11 {offsets = [0, 8], sizes = [16, 8], strides = [1, 1]} : vector<16x96xf32> to vector<16x8xf32>
    %37 = vector.shape_cast %36 : vector<16x8xf32> to vector<2x8x8xf32>
    %38 = arith.truncf %37 : vector<2x8x8xf32> to vector<2x8x8xbf16>
    %39 = vector.extract_strided_slice %11 {offsets = [0, 40], sizes = [16, 8], strides = [1, 1]} : vector<16x96xf32> to vector<16x8xf32>
    %40 = vector.shape_cast %39 : vector<16x8xf32> to vector<2x8x8xf32>
    %41 = arith.truncf %40 : vector<2x8x8xf32> to vector<2x8x8xbf16>
    %42 = vector.extract_strided_slice %11 {offsets = [0, 72], sizes = [16, 8], strides = [1, 1]} : vector<16x96xf32> to vector<16x8xf32>
    %43 = vector.shape_cast %42 : vector<16x8xf32> to vector<2x8x8xf32>
    %44 = arith.truncf %43 : vector<2x8x8xf32> to vector<2x8x8xbf16>
    "tpu.trace_start"() <{level = 10 : i32, message = "bqd,bkd->bqk"}> : () -> ()
    %cst_16 = arith.constant dense<0.000000e+00> : vector<2x8x8xf32>
    %45 = tpu.matmul %38, %41, %cst_16 {dimension_numbers = #tpu.dot_dimension_numbers<[2], [2], [1], [1], [0, 0, 0, 1, 1, 1], [0], [0]>} : vector<2x8x8xbf16>, vector<2x8x8xbf16>, vector<2x8x8xf32> -> vector<2x8x8xf32>
    "tpu.trace_stop"() : () -> ()
    %cst_17 = arith.constant dense<0xFF800000> : vector<2x8xf32>
    %46 = vector.multi_reduction <maximumf>, %45, %cst_17 [2] : vector<2x8x8xf32> to vector<2x8xf32>
    %47 = vector.shape_cast %46 : vector<2x8xf32> to vector<2x8x1xf32>
    %48 = vector.broadcast %47 : vector<2x8x1xf32> to vector<2x8x8xf32>
    %49 = arith.subf %45, %48 : vector<2x8x8xf32>
    %50 = math.exp %49 : vector<2x8x8xf32>
    %cst_18 = arith.constant dense<0.000000e+00> : vector<2x8xf32>
    %51 = vector.multi_reduction <add>, %50, %cst_18 [2] : vector<2x8x8xf32> to vector<2x8xf32>
    %52 = vector.shape_cast %51 : vector<2x8xf32> to vector<2x8x1xf32>
    %53 = tpu.reciprocal %52 {approx = true} : vector<2x8x1xf32> -> vector<2x8x1xf32>
    %54 = vector.broadcast %53 : vector<2x8x1xf32> to vector<2x8x8xf32>
    %55 = arith.mulf %50, %54 : vector<2x8x8xf32>
    %56 = arith.truncf %55 : vector<2x8x8xf32> to vector<2x8x8xbf16>
    "tpu.trace_start"() <{level = 10 : i32, message = "bqk,bkd->bqd"}> : () -> ()
    %cst_19 = arith.constant dense<0.000000e+00> : vector<2x8x8xf32>
    %57 = tpu.matmul %56, %44, %cst_19 {dimension_numbers = #tpu.dot_dimension_numbers<[2], [1], [1], [2], [0, 0, 0, 1, 1, 2], [0], [0]>} : vector<2x8x8xbf16>, vector<2x8x8xbf16>, vector<2x8x8xf32> -> vector<2x8x8xf32>
    "tpu.trace_stop"() : () -> ()
    %58 = vector.shape_cast %57 : vector<2x8x8xf32> to vector<16x8xf32>
    %c0_20 = arith.constant 0 : index
    %c8 = arith.constant 8 : index
    %59 = vector.load %arg17[%c0_20, %c8] : memref<16x32xf32, #tpu.memory_space<vmem>>, vector<16x8xf32>
    tpu.vector_store %arg17[%c0_20, %c8], %58 {strides = array<i32>} : memref<16x32xf32, #tpu.memory_space<vmem>>, vector<16x8xf32>,
    %60 = vector.extract_strided_slice %11 {offsets = [0, 16], sizes = [16, 8], strides = [1, 1]} : vector<16x96xf32> to vector<16x8xf32>
    %61 = vector.shape_cast %60 : vector<16x8xf32> to vector<2x8x8xf32>
    %62 = arith.truncf %61 : vector<2x8x8xf32> to vector<2x8x8xbf16>
    %63 = vector.extract_strided_slice %11 {offsets = [0, 48], sizes = [16, 8], strides = [1, 1]} : vector<16x96xf32> to vector<16x8xf32>
    %64 = vector.shape_cast %63 : vector<16x8xf32> to vector<2x8x8xf32>
    %65 = arith.truncf %64 : vector<2x8x8xf32> to vector<2x8x8xbf16>
    %66 = vector.extract_strided_slice %11 {offsets = [0, 80], sizes = [16, 8], strides = [1, 1]} : vector<16x96xf32> to vector<16x8xf32>
    %67 = vector.shape_cast %66 : vector<16x8xf32> to vector<2x8x8xf32>
    %68 = arith.truncf %67 : vector<2x8x8xf32> to vector<2x8x8xbf16>
    "tpu.trace_start"() <{level = 10 : i32, message = "bqd,bkd->bqk"}> : () -> ()
    %cst_21 = arith.constant dense<0.000000e+00> : vector<2x8x8xf32>
    %69 = tpu.matmul %62, %65, %cst_21 {dimension_numbers = #tpu.dot_dimension_numbers<[2], [2], [1], [1], [0, 0, 0, 1, 1, 1], [0], [0]>} : vector<2x8x8xbf16>, vector<2x8x8xbf16>, vector<2x8x8xf32> -> vector<2x8x8xf32>
    "tpu.trace_stop"() : () -> ()
    %cst_22 = arith.constant dense<0xFF800000> : vector<2x8xf32>
    %70 = vector.multi_reduction <maximumf>, %69, %cst_22 [2] : vector<2x8x8xf32> to vector<2x8xf32>
    %71 = vector.shape_cast %70 : vector<2x8xf32> to vector<2x8x1xf32>
    %72 = vector.broadcast %71 : vector<2x8x1xf32> to vector<2x8x8xf32>
    %73 = arith.subf %69, %72 : vector<2x8x8xf32>
    %74 = math.exp %73 : vector<2x8x8xf32>
    %cst_23 = arith.constant dense<0.000000e+00> : vector<2x8xf32>
    %75 = vector.multi_reduction <add>, %74, %cst_23 [2] : vector<2x8x8xf32> to vector<2x8xf32>
    %76 = vector.shape_cast %75 : vector<2x8xf32> to vector<2x8x1xf32>
    %77 = tpu.reciprocal %76 {approx = true} : vector<2x8x1xf32> -> vector<2x8x1xf32>
    %78 = vector.broadcast %77 : vector<2x8x1xf32> to vector<2x8x8xf32>
    %79 = arith.mulf %74, %78 : vector<2x8x8xf32>
    %80 = arith.truncf %79 : vector<2x8x8xf32> to vector<2x8x8xbf16>
    "tpu.trace_start"() <{level = 10 : i32, message = "bqk,bkd->bqd"}> : () -> ()
    %cst_24 = arith.constant dense<0.000000e+00> : vector<2x8x8xf32>
    %81 = tpu.matmul %80, %68, %cst_24 {dimension_numbers = #tpu.dot_dimension_numbers<[2], [1], [1], [2], [0, 0, 0, 1, 1, 2], [0], [0]>} : vector<2x8x8xbf16>, vector<2x8x8xbf16>, vector<2x8x8xf32> -> vector<2x8x8xf32>
    "tpu.trace_stop"() : () -> ()
    %82 = vector.shape_cast %81 : vector<2x8x8xf32> to vector<16x8xf32>
    %c0_25 = arith.constant 0 : index
    %c16 = arith.constant 16 : index
    %83 = vector.load %arg17[%c0_25, %c16] : memref<16x32xf32, #tpu.memory_space<vmem>>, vector<16x8xf32>
    tpu.vector_store %arg17[%c0_25, %c16], %82 {strides = array<i32>} : memref<16x32xf32, #tpu.memory_space<vmem>>, vector<16x8xf32>,
    %84 = vector.extract_strided_slice %11 {offsets = [0, 24], sizes = [16, 8], strides = [1, 1]} : vector<16x96xf32> to vector<16x8xf32>
    %85 = vector.shape_cast %84 : vector<16x8xf32> to vector<2x8x8xf32>
    %86 = arith.truncf %85 : vector<2x8x8xf32> to vector<2x8x8xbf16>
    %87 = vector.extract_strided_slice %11 {offsets = [0, 56], sizes = [16, 8], strides = [1, 1]} : vector<16x96xf32> to vector<16x8xf32>
    %88 = vector.shape_cast %87 : vector<16x8xf32> to vector<2x8x8xf32>
    %89 = arith.truncf %88 : vector<2x8x8xf32> to vector<2x8x8xbf16>
    %90 = vector.extract_strided_slice %11 {offsets = [0, 88], sizes = [16, 8], strides = [1, 1]} : vector<16x96xf32> to vector<16x8xf32>
    %91 = vector.shape_cast %90 : vector<16x8xf32> to vector<2x8x8xf32>
    %92 = arith.truncf %91 : vector<2x8x8xf32> to vector<2x8x8xbf16>
    "tpu.trace_start"() <{level = 10 : i32, message = "bqd,bkd->bqk"}> : () -> ()
    %cst_26 = arith.constant dense<0.000000e+00> : vector<2x8x8xf32>
    %93 = tpu.matmul %86, %89, %cst_26 {dimension_numbers = #tpu.dot_dimension_numbers<[2], [2], [1], [1], [0, 0, 0, 1, 1, 1], [0], [0]>} : vector<2x8x8xbf16>, vector<2x8x8xbf16>, vector<2x8x8xf32> -> vector<2x8x8xf32>
    "tpu.trace_stop"() : () -> ()
    %cst_27 = arith.constant dense<0xFF800000> : vector<2x8xf32>
    %94 = vector.multi_reduction <maximumf>, %93, %cst_27 [2] : vector<2x8x8xf32> to vector<2x8xf32>
    %95 = vector.shape_cast %94 : vector<2x8xf32> to vector<2x8x1xf32>
    %96 = vector.broadcast %95 : vector<2x8x1xf32> to vector<2x8x8xf32>
    %97 = arith.subf %93, %96 : vector<2x8x8xf32>
    %98 = math.exp %97 : vector<2x8x8xf32>
    %cst_28 = arith.constant dense<0.000000e+00> : vector<2x8xf32>
    %99 = vector.multi_reduction <add>, %98, %cst_28 [2] : vector<2x8x8xf32> to vector<2x8xf32>
    %100 = vector.shape_cast %99 : vector<2x8xf32> to vector<2x8x1xf32>
    %101 = tpu.reciprocal %100 {approx = true} : vector<2x8x1xf32> -> vector<2x8x1xf32>
    %102 = vector.broadcast %101 : vector<2x8x1xf32> to vector<2x8x8xf32>
    %103 = arith.mulf %98, %102 : vector<2x8x8xf32>
    %104 = arith.truncf %103 : vector<2x8x8xf32> to vector<2x8x8xbf16>
    "tpu.trace_start"() <{level = 10 : i32, message = "bqk,bkd->bqd"}> : () -> ()
    %cst_29 = arith.constant dense<0.000000e+00> : vector<2x8x8xf32>
    %105 = tpu.matmul %104, %92, %cst_29 {dimension_numbers = #tpu.dot_dimension_numbers<[2], [1], [1], [2], [0, 0, 0, 1, 1, 2], [0], [0]>} : vector<2x8x8xbf16>, vector<2x8x8xbf16>, vector<2x8x8xf32> -> vector<2x8x8xf32>
    "tpu.trace_stop"() : () -> ()
    %106 = vector.shape_cast %105 : vector<2x8x8xf32> to vector<16x8xf32>
    %c0_30 = arith.constant 0 : index
    %c24 = arith.constant 24 : index
    %107 = vector.load %arg17[%c0_30, %c24] : memref<16x32xf32, #tpu.memory_space<vmem>>, vector<16x8xf32>
    tpu.vector_store %arg17[%c0_30, %c24], %106 {strides = array<i32>} : memref<16x32xf32, #tpu.memory_space<vmem>>, vector<16x8xf32>,
    %c0_31 = arith.constant 0 : index
    %c0_32 = arith.constant 0 : index
    %108 = vector.load %arg17[%c0_31, %c0_32] : memref<16x32xf32, #tpu.memory_space<vmem>>, vector<16x32xf32>
    %109 = arith.truncf %108 : vector<16x32xf32> to vector<16x32xbf16>
    %c0_33 = arith.constant 0 : index
    %c0_34 = arith.constant 0 : index
    %c0_35 = arith.constant 0 : index
    %c0_36 = arith.constant 0 : index
    %110 = vector.load %arg5[%c0_33, %c0_34, %c0_35, %c0_36] : memref<1x1x32x32xbf16, #tpu.memory_space<vmem>>, vector<1x1x32x32xbf16>
    %111 = vector.shape_cast %110 : vector<1x1x32x32xbf16> to vector<32x32xbf16>
    %cst_37 = arith.constant dense<0.000000e+00> : vector<16x32xf32>
    %112 = tpu.matmul %109, %111, %cst_37 {dimension_numbers = #tpu.dot_dimension_numbers<[1], [0], [0], [1], [0, 0, 1, 1], [], []>} : vector<16x32xbf16>, vector<32x32xbf16>, vector<16x32xf32> -> vector<16x32xf32>
    %c0_38 = arith.constant 0 : index
    %c0_39 = arith.constant 0 : index
    %c0_40 = arith.constant 0 : index
    %c0_41 = arith.constant 0 : index
    %113 = vector.load %arg6[%c0_38, %c0_39, %c0_40, %c0_41] : memref<1x1x1x32xf32, #tpu.memory_space<vmem>>, vector<1x1x1x32xf32>
    %114 = vector.shape_cast %113 : vector<1x1x1x32xf32> to vector<1x32xf32>
    %115 = vector.broadcast %114 : vector<1x32xf32> to vector<16x32xf32>
    %116 = arith.addf %112, %115 : vector<16x32xf32>
    %117 = arith.addf %116, %3 : vector<16x32xf32>
    %c0_42 = arith.constant 0 : index
    %c0_43 = arith.constant 0 : index
    %c0_44 = arith.constant 0 : index
    %c0_45 = arith.constant 0 : index
    %118 = vector.load %arg7[%c0_42, %c0_43, %c0_44, %c0_45] : memref<1x1x1x32xf32, #tpu.memory_space<vmem>>, vector<1x1x1x32xf32>
    %119 = vector.shape_cast %118 : vector<1x1x1x32xf32> to vector<1x32xf32>
    %c0_46 = arith.constant 0 : index
    %c0_47 = arith.constant 0 : index
    %c0_48 = arith.constant 0 : index
    %c0_49 = arith.constant 0 : index
    %120 = vector.load %arg8[%c0_46, %c0_47, %c0_48, %c0_49] : memref<1x1x1x32xf32, #tpu.memory_space<vmem>>, vector<1x1x1x32xf32>
    %121 = vector.shape_cast %120 : vector<1x1x1x32xf32> to vector<1x32xf32>
    %cst_50 = arith.constant dense<0.000000e+00> : vector<16xf32>
    %122 = vector.multi_reduction <add>, %117, %cst_50 [1] : vector<16x32xf32> to vector<16xf32>
    %123 = vector.shape_cast %122 : vector<16xf32> to vector<16x1xf32>
    %cst_51 = arith.constant 3.200000e+01 : f32
    %124 = vector.broadcast %cst_51 : f32 to vector<16x1xf32>
    %125 = arith.divf %123, %124 : vector<16x1xf32>
    %126 = vector.broadcast %125 : vector<16x1xf32> to vector<16x32xf32>
    %127 = arith.subf %117, %126 : vector<16x32xf32>
    %128 = arith.mulf %127, %127 : vector<16x32xf32>
    %cst_52 = arith.constant dense<0.000000e+00> : vector<16xf32>
    %129 = vector.multi_reduction <add>, %128, %cst_52 [1] : vector<16x32xf32> to vector<16xf32>
    %130 = vector.shape_cast %129 : vector<16xf32> to vector<16x1xf32>
    %cst_53 = arith.constant 3.200000e+01 : f32
    %131 = vector.broadcast %cst_53 : f32 to vector<16x1xf32>
    %132 = arith.divf %130, %131 : vector<16x1xf32>
    %cst_54 = arith.constant 9.99999974E-6 : f32
    %133 = vector.broadcast %cst_54 : f32 to vector<16x1xf32>
    %134 = arith.addf %132, %133 : vector<16x1xf32>
    %135 = math.rsqrt %134 : vector<16x1xf32>
    %136 = vector.broadcast %135 : vector<16x1xf32> to vector<16x32xf32>
    %137 = arith.mulf %127, %136 : vector<16x32xf32>
    %138 = vector.broadcast %119 : vector<1x32xf32> to vector<16x32xf32>
    %139 = arith.mulf %137, %138 : vector<16x32xf32>
    %140 = vector.broadcast %121 : vector<1x32xf32> to vector<16x32xf32>
    %141 = arith.addf %139, %140 : vector<16x32xf32>
    %142 = arith.truncf %141 : vector<16x32xf32> to vector<16x32xbf16>
    %c0_55 = arith.constant 0 : index
    %c0_56 = arith.constant 0 : index
    %c0_57 = arith.constant 0 : index
    %c0_58 = arith.constant 0 : index
    %143 = vector.load %arg9[%c0_55, %c0_56, %c0_57, %c0_58] : memref<1x1x32x64xbf16, #tpu.memory_space<vmem>>, vector<1x1x32x64xbf16>
    %144 = vector.shape_cast %143 : vector<1x1x32x64xbf16> to vector<32x64xbf16>
    %cst_59 = arith.constant dense<0.000000e+00> : vector<16x64xf32>
    %145 = tpu.matmul %142, %144, %cst_59 {dimension_numbers = #tpu.dot_dimension_numbers<[1], [0], [0], [1], [0, 0, 1, 1], [], []>} : vector<16x32xbf16>, vector<32x64xbf16>, vector<16x64xf32> -> vector<16x64xf32>
    %c0_60 = arith.constant 0 : index
    %c0_61 = arith.constant 0 : index
    %c0_62 = arith.constant 0 : index
    %c0_63 = arith.constant 0 : index
    %146 = vector.load %arg10[%c0_60, %c0_61, %c0_62, %c0_63] : memref<1x1x1x64xf32, #tpu.memory_space<vmem>>, vector<1x1x1x64xf32>
    %147 = vector.shape_cast %146 : vector<1x1x1x64xf32> to vector<1x64xf32>
    %148 = vector.broadcast %147 : vector<1x64xf32> to vector<16x64xf32>
    %149 = arith.addf %145, %148 : vector<16x64xf32>
    %cst_64 = arith.constant 5.000000e-01 : f32
    %150 = vector.broadcast %cst_64 : f32 to vector<16x64xf32>
    %151 = arith.mulf %150, %149 : vector<16x64xf32>
    %cst_65 = arith.constant 4.471500e-02 : f32
    %152 = vector.broadcast %cst_65 : f32 to vector<16x64xf32>
    %153 = arith.mulf %152, %149 : vector<16x64xf32>
    %154 = arith.mulf %153, %149 : vector<16x64xf32>
    %155 = arith.mulf %154, %149 : vector<16x64xf32>
    %156 = arith.addf %149, %155 : vector<16x64xf32>
    %cst_66 = arith.constant 0.797884583 : f32
    %157 = vector.broadcast %cst_66 : f32 to vector<16x64xf32>
    %158 = arith.mulf %157, %156 : vector<16x64xf32>
    %159 = math.tanh %158 : vector<16x64xf32>
    %cst_67 = arith.constant 1.000000e+00 : f32
    %160 = vector.broadcast %cst_67 : f32 to vector<16x64xf32>
    %161 = arith.addf %160, %159 : vector<16x64xf32>
    %162 = arith.mulf %151, %161 : vector<16x64xf32>
    %163 = arith.truncf %162 : vector<16x64xf32> to vector<16x64xbf16>
    %c0_68 = arith.constant 0 : index
    %c0_69 = arith.constant 0 : index
    %c0_70 = arith.constant 0 : index
    %c0_71 = arith.constant 0 : index
    %164 = vector.load %arg11[%c0_68, %c0_69, %c0_70, %c0_71] : memref<1x1x64x32xbf16, #tpu.memory_space<vmem>>, vector<1x1x64x32xbf16>
    %165 = vector.shape_cast %164 : vector<1x1x64x32xbf16> to vector<64x32xbf16>
    %cst_72 = arith.constant dense<0.000000e+00> : vector<16x32xf32>
    %166 = tpu.matmul %163, %165, %cst_72 {dimension_numbers = #tpu.dot_dimension_numbers<[1], [0], [0], [1], [0, 0, 1, 1], [], []>} : vector<16x64xbf16>, vector<64x32xbf16>, vector<16x32xf32> -> vector<16x32xf32>
    %c0_73 = arith.constant 0 : index
    %c0_74 = arith.constant 0 : index
    %c0_75 = arith.constant 0 : index
    %c0_76 = arith.constant 0 : index
    %167 = vector.load %arg12[%c0_73, %c0_74, %c0_75, %c0_76] : memref<1x1x1x32xf32, #tpu.memory_space<vmem>>, vector<1x1x1x32xf32>
    %168 = vector.shape_cast %167 : vector<1x1x1x32xf32> to vector<1x32xf32>
    %169 = vector.broadcast %168 : vector<1x32xf32> to vector<16x32xf32>
    %170 = arith.addf %166, %169 : vector<16x32xf32>
    %171 = arith.addf %170, %141 : vector<16x32xf32>
    %c0_77 = arith.constant 0 : index
    %c0_78 = arith.constant 0 : index
    %c0_79 = arith.constant 0 : index
    %c0_80 = arith.constant 0 : index
    %172 = vector.load %arg13[%c0_77, %c0_78, %c0_79, %c0_80] : memref<1x1x1x32xf32, #tpu.memory_space<vmem>>, vector<1x1x1x32xf32>
    %173 = vector.shape_cast %172 : vector<1x1x1x32xf32> to vector<1x32xf32>
    %c0_81 = arith.constant 0 : index
    %c0_82 = arith.constant 0 : index
    %c0_83 = arith.constant 0 : index
    %c0_84 = arith.constant 0 : index
    %174 = vector.load %arg14[%c0_81, %c0_82, %c0_83, %c0_84] : memref<1x1x1x32xf32, #tpu.memory_space<vmem>>, vector<1x1x1x32xf32>
    %175 = vector.shape_cast %174 : vector<1x1x1x32xf32> to vector<1x32xf32>
    %cst_85 = arith.constant dense<0.000000e+00> : vector<16xf32>
    %176 = vector.multi_reduction <add>, %171, %cst_85 [1] : vector<16x32xf32> to vector<16xf32>
    %177 = vector.shape_cast %176 : vector<16xf32> to vector<16x1xf32>
    %cst_86 = arith.constant 3.200000e+01 : f32
    %178 = vector.broadcast %cst_86 : f32 to vector<16x1xf32>
    %179 = arith.divf %177, %178 : vector<16x1xf32>
    %180 = vector.broadcast %179 : vector<16x1xf32> to vector<16x32xf32>
    %181 = arith.subf %171, %180 : vector<16x32xf32>
    %182 = arith.mulf %181, %181 : vector<16x32xf32>
    %cst_87 = arith.constant dense<0.000000e+00> : vector<16xf32>
    %183 = vector.multi_reduction <add>, %182, %cst_87 [1] : vector<16x32xf32> to vector<16xf32>
    %184 = vector.shape_cast %183 : vector<16xf32> to vector<16x1xf32>
    %cst_88 = arith.constant 3.200000e+01 : f32
    %185 = vector.broadcast %cst_88 : f32 to vector<16x1xf32>
    %186 = arith.divf %184, %185 : vector<16x1xf32>
    %cst_89 = arith.constant 9.99999974E-6 : f32
    %187 = vector.broadcast %cst_89 : f32 to vector<16x1xf32>
    %188 = arith.addf %186, %187 : vector<16x1xf32>
    %189 = math.rsqrt %188 : vector<16x1xf32>
    %190 = vector.broadcast %189 : vector<16x1xf32> to vector<16x32xf32>
    %191 = arith.mulf %181, %190 : vector<16x32xf32>
    %192 = vector.broadcast %173 : vector<1x32xf32> to vector<16x32xf32>
    %193 = arith.mulf %191, %192 : vector<16x32xf32>
    %194 = vector.broadcast %175 : vector<1x32xf32> to vector<16x32xf32>
    %195 = arith.addf %193, %194 : vector<16x32xf32>
    %c0_90 = arith.constant 0 : index
    %c0_91 = arith.constant 0 : index
    %196 = vector.load %arg16[%c0_90, %c0_91] : memref<16x32xf32, #tpu.memory_space<vmem>>, vector<16x32xf32>
    tpu.vector_store %arg16[%c0_90, %c0_91], %195 {strides = array<i32>} : memref<16x32xf32, #tpu.memory_space<vmem>>, vector<16x32xf32>,
    %197 = arith.truncf %195 : vector<16x32xf32> to vector<16x32xbf16>
    %c0_92 = arith.constant 0 : index
    %c0_93 = arith.constant 0 : index
    %c0_94 = arith.constant 0 : index
    %198 = vector.load %arg15[%c0_92, %c0_93, %c0_94] : memref<1x16x32xbf16, #tpu.memory_space<vmem>>, vector<1x16x32xbf16>
    %199 = vector.shape_cast %198 : vector<1x16x32xbf16> to vector<16x32xbf16>
    %200 = vector.shape_cast %197 : vector<16x32xbf16> to vector<1x16x32xbf16>
    tpu.vector_store %arg15[%c0_92, %c0_93, %c0_94], %200 {strides = array<i32>} : memref<1x16x32xbf16, #tpu.memory_space<vmem>>, vector<1x16x32xbf16>,
    return
  }
  func.func @transform_0(%arg0: i32, %arg1: i32) -> (i32, i32) {
    %c0_i32 = arith.constant 0 : i32
    %c0_i32_0 = arith.constant 0 : i32
    %c0_i32_1 = arith.constant 0 : i32
    return %c0_i32, %c0_i32_0 : i32, i32
  }
  func.func @transform_1(%arg0: i32, %arg1: i32) -> (i32, i32, i32, i32) {
    %c0_i32 = arith.constant 0 : i32
    %c0_i32_0 = arith.constant 0 : i32
    %c0_i32_1 = arith.constant 0 : i32
    return %arg0, %arg1, %c0_i32, %c0_i32_0 : i32, i32, i32, i32
  }
  func.func @transform_2(%arg0: i32, %arg1: i32) -> (i32, i32, i32, i32) {
    %c0_i32 = arith.constant 0 : i32
    %c0_i32_0 = arith.constant 0 : i32
    %c0_i32_1 = arith.constant 0 : i32
    return %arg0, %arg1, %c0_i32, %c0_i32_0 : i32, i32, i32, i32
  }
  func.func @transform_3(%arg0: i32, %arg1: i32) -> (i32, i32, i32, i32) {
    %c0_i32 = arith.constant 0 : i32
    %c0_i32_0 = arith.constant 0 : i32
    %c0_i32_1 = arith.constant 0 : i32
    return %arg0, %arg1, %c0_i32, %c0_i32_0 : i32, i32, i32, i32
  }
  func.func @transform_4(%arg0: i32, %arg1: i32) -> (i32, i32, i32, i32) {
    %c0_i32 = arith.constant 0 : i32
    %c0_i32_0 = arith.constant 0 : i32
    %c0_i32_1 = arith.constant 0 : i32
    return %arg0, %arg1, %c0_i32, %c0_i32_0 : i32, i32, i32, i32
  }
  func.func @transform_5(%arg0: i32, %arg1: i32) -> (i32, i32, i32, i32) {
    %c0_i32 = arith.constant 0 : i32
    %c0_i32_0 = arith.constant 0 : i32
    %c0_i32_1 = arith.constant 0 : i32
    return %arg0, %arg1, %c0_i32, %c0_i32_0 : i32, i32, i32, i32
  }
  func.func @transform_6(%arg0: i32, %arg1: i32) -> (i32, i32, i32, i32) {
    %c0_i32 = arith.constant 0 : i32
    %c0_i32_0 = arith.constant 0 : i32
    %c0_i32_1 = arith.constant 0 : i32
    return %arg0, %arg1, %c0_i32, %c0_i32_0 : i32, i32, i32, i32
  }
  func.func @transform_7(%arg0: i32, %arg1: i32) -> (i32, i32, i32, i32) {
    %c0_i32 = arith.constant 0 : i32
    %c0_i32_0 = arith.constant 0 : i32
    %c0_i32_1 = arith.constant 0 : i32
    return %arg0, %arg1, %c0_i32, %c0_i32_0 : i32, i32, i32, i32
  }
  func.func @transform_8(%arg0: i32, %arg1: i32) -> (i32, i32, i32, i32) {
    %c0_i32 = arith.constant 0 : i32
    %c0_i32_0 = arith.constant 0 : i32
    %c0_i32_1 = arith.constant 0 : i32
    return %arg0, %arg1, %c0_i32, %c0_i32_0 : i32, i32, i32, i32
  }
  func.func @transform_9(%arg0: i32, %arg1: i32) -> (i32, i32, i32, i32) {
    %c0_i32 = arith.constant 0 : i32
    %c0_i32_0 = arith.constant 0 : i32
    %c0_i32_1 = arith.constant 0 : i32
    return %arg0, %arg1, %c0_i32, %c0_i32_0 : i32, i32, i32, i32
  }
  func.func @transform_10(%arg0: i32, %arg1: i32) -> (i32, i32, i32, i32) {
    %c0_i32 = arith.constant 0 : i32
    %c0_i32_0 = arith.constant 0 : i32
    %c0_i32_1 = arith.constant 0 : i32
    return %arg0, %arg1, %c0_i32, %c0_i32_0 : i32, i32, i32, i32
  }
  func.func @transform_11(%arg0: i32, %arg1: i32) -> (i32, i32, i32, i32) {
    %c0_i32 = arith.constant 0 : i32
    %c0_i32_0 = arith.constant 0 : i32
    %c0_i32_1 = arith.constant 0 : i32
    return %arg0, %arg1, %c0_i32, %c0_i32_0 : i32, i32, i32, i32
  }
  func.func @transform_12(%arg0: i32, %arg1: i32) -> (i32, i32, i32, i32) {
    %c0_i32 = arith.constant 0 : i32
    %c0_i32_0 = arith.constant 0 : i32
    %c0_i32_1 = arith.constant 0 : i32
    return %arg0, %arg1, %c0_i32, %c0_i32_0 : i32, i32, i32, i32
  }
  func.func @transform_13(%arg0: i32, %arg1: i32) -> (i32, i32, i32) {
    %c0_i32 = arith.constant 0 : i32
    %c0_i32_0 = arith.constant 0 : i32
    %c0_i32_1 = arith.constant 0 : i32
    return %arg0, %c0_i32, %c0_i32_0 : i32, i32, i32
  }
}

</mosaic_0001>

<llo_original>
// kernel: moe_encoder_forward.3
$region0: #{moe_encoder_forward.3}
  #allocation0 [shape = 'u32[]', space=smem, size = 0x4, offset = 0x4, fixed_abs, tag = 'smem constant byte address 0x4 - core index']
  #allocation1 [shape = 'u32[144,128]{1,0:T(1,128)}', space=vmem, size = 0x12000, scoped, tag = 'internal scratch']
  #allocation2 [shape = 'f32[16,32]{1,0:T(8,128)}', space=vmem, size = 0x2000, scoped, tag = 'scratch operand']
  #allocation3 [shape = 'f32[16,32]{1,0:T(8,128)}', space=vmem, size = 0x2000, scoped, tag = 'scratch operand']
  %s0 = inlined_call_operand.vmem [shape: bf16[16,32], index: 0, kind: input, shape index: {}]
  %s1 = inlined_call_operand.vmem [shape: bf16[4,2,32,96], index: 1, kind: input, shape index: {}]
  %s2 = inlined_call_operand.vmem [shape: f32[4,2,1,96], index: 2, kind: input, shape index: {}]
  %s3 = inlined_call_operand.vmem [shape: bf16[4,2,32,32], index: 3, kind: input, shape index: {}]
  %s4 = inlined_call_operand.vmem [shape: f32[4,2,1,32], index: 4, kind: input, shape index: {}]
  %s5 = inlined_call_operand.vmem [shape: f32[4,2,1,32], index: 5, kind: input, shape index: {}]
  %s6 = inlined_call_operand.vmem [shape: f32[4,2,1,32], index: 6, kind: input, shape index: {}]
  %s7 = inlined_call_operand.vmem [shape: bf16[4,2,32,64], index: 7, kind: input, shape index: {}]
  %s8 = inlined_call_operand.vmem [shape: f32[4,2,1,64], index: 8, kind: input, shape index: {}]
  %s9 = inlined_call_operand.vmem [shape: bf16[4,2,64,32], index: 9, kind: input, shape index: {}]
  %s10 = inlined_call_operand.vmem [shape: f32[4,2,1,32], index: 10, kind: input, shape index: {}]
  %s11 = inlined_call_operand.vmem [shape: f32[4,2,1,32], index: 11, kind: input, shape index: {}]
  %s12 = inlined_call_operand.vmem [shape: f32[4,2,1,32], index: 12, kind: input, shape index: {}]
  %s13 = inlined_call_operand.vmem [shape: bf16[4,16,32], index: 13, kind: output, shape index: {}]
  %s14 = sld [smem:[#allocation0]]
  $region89: #{moe_encoder_forward.3} parent=0
    _
  %s16 = ssub.s32 1, %s14
  %s17 = scalar_select 0, %s16, %s14
  loop: start=0, step=1, limit=10
  $region2: #{moe_encoder_forward.3} parent=0 // loop_pre_header
    _
  $region3: #{moe_encoder_forward.3} parent=0 // loop_header
    %s19 = sphi 0, %s23
    %p20 = scmp.ge.s32.totalorder %s19, 10
    %s26 = sphi 0, %s38
    %s27 = sphi 0, %s34
    %s28 = sphi 0, %s26
    %s29 = sphi 0, %s27
    %s30 = sphi 0, %s28
    %s31 = sphi 0, %s29
    %s39 = sphi 0, %s39
    %s41 = sphi 0, %s39
    %s42 = sphi 0, %s41
    %s56 = sphi 0, %s42
    %s64 = sphi 0, %s66
    %s67 = sphi 0, %s64
    %s68 = sphi 0, %s67
    %s84 = sphi 0, %s68
    %s92 = sphi 0, %s94
    %s95 = sphi 0, %s92
    %s96 = sphi 0, %s95
    %s112 = sphi 0, %s96
    %s120 = sphi 0, %s122
    %s123 = sphi 0, %s120
    %s124 = sphi 0, %s123
    %s140 = sphi 0, %s124
    %s148 = sphi 0, %s150
    %s151 = sphi 0, %s148
    %s152 = sphi 0, %s151
    %s168 = sphi 0, %s152
    %s176 = sphi 0, %s178
    %s179 = sphi 0, %s176
    %s180 = sphi 0, %s179
    %s196 = sphi 0, %s180
    %s204 = sphi 0, %s206
    %s207 = sphi 0, %s204
    %s208 = sphi 0, %s207
    %s224 = sphi 0, %s208
    %s232 = sphi 0, %s234
    %s235 = sphi 0, %s232
    %s236 = sphi 0, %s235
    %s252 = sphi 0, %s236
    %s260 = sphi 0, %s262
    %s263 = sphi 0, %s260
    %s264 = sphi 0, %s263
    %s280 = sphi 0, %s264
    %s288 = sphi 0, %s290
    %s291 = sphi 0, %s288
    %s292 = sphi 0, %s291
    %s308 = sphi 0, %s292
    %s316 = sphi 0, %s318
    %s319 = sphi 0, %s316
    %s320 = sphi 0, %s319
    %s336 = sphi 0, %s320
    %s344 = sphi 0, %s346
    %s347 = sphi 0, %s344
    %s348 = sphi 0, %s347
    %s364 = sphi 0, %s348
    %s372 = sphi 0, %s374
    %s375 = sphi 0, %s372
    %s376 = sphi 0, %s375
    %s392 = sphi 0, %s376
    %s398 = sphi 0, %s400
    %s401 = sphi 0, %s398
    %s402 = sphi 0, %s401
    %s418 = sphi 0, %s402
  $region4: #{moe_encoder_forward.3} parent=0 // loop_header_branch
    %22 = sbr.rel (%p20) target = $region8
  $region5: #{moe_encoder_forward.3} parent=0 // loop_body
    %s24 = ssub.s32 %s19, 1
    %s25 = ssub.s32 %s19, 2
    %s32 = sadd.s32 1, %s27
    %p33 = scmp.ge.s32.totalorder %s32, 2
    %s34 = scalar_select %p33, 0, %s32
    %s35 = sadd.s32 1, %s26
    %s36 = scalar_select %p33, %s35, %s26
    %p37 = scmp.ge.s32.totalorder %s36, 4
    %s38 = scalar_select %p37, 0, %s36
    %s40 = sadd.s32 %s39, 1
    %p43 = scmp.eq.s32.totalorder %s19, 7
    %p44 = scmp.ne.s32.totalorder %s39, %s41
    %p45 = scmp.eq.s32.totalorder %s19, 0
    %p46 = por %p44, %p45
    %p47 = scmp.ne.s32.totalorder %s39, %s41
    %p48 = scmp.eq.s32.totalorder %s24, 7
    %p49 = por %p47, %p48
    %p50 = scmp.ne.s32.totalorder %s41, %s42
    %p51 = scmp.eq.s32.totalorder %s24, 0
    %p52 = por %p50, %p51
    %p53 = scmp.ne.s32.totalorder %s41, %s42
    %p54 = scmp.eq.s32.totalorder %s25, 7
    %p55 = por %p53, %p54
    %p57 = scmp.ne.s32.totalorder %s42, %s56
    %p58 = scmp.eq.s32.totalorder %s25, 0
    %p59 = por %p57, %p58
    %s60 = ssub.s32 %s26, %s38
    %s61 = ssub.s32 %s27, %s34
    %s62 = sor.u32 %s60, %s61
    %p63 = scmp.eq.s32.totalorder %s62, 0
    %s65 = sadd.s32 %s64, 1
    %s66 = scalar_select %p63, %s64, %s65
    %p69 = pneg %p63
    %p70 = scmp.eq.s32.totalorder %s19, 7
    %p71 = por %p69, %p70
    %p72 = scmp.ne.s32.totalorder %s64, %s67
    %p73 = scmp.eq.s32.totalorder %s19, 0
    %p74 = por %p72, %p73
    %p75 = scmp.ne.s32.totalorder %s64, %s67
    %p76 = scmp.eq.s32.totalorder %s24, 7
    %p77 = por %p75, %p76
    %p78 = scmp.ne.s32.totalorder %s67, %s68
    %p79 = scmp.eq.s32.totalorder %s24, 0
    %p80 = por %p78, %p79
    %p81 = scmp.ne.s32.totalorder %s67, %s68
    %p82 = scmp.eq.s32.totalorder %s25, 7
    %p83 = por %p81, %p82
    %p85 = scmp.ne.s32.totalorder %s68, %s84
    %p86 = scmp.eq.s32.totalorder %s25, 0
    %p87 = por %p85, %p86
    %s88 = ssub.s32 %s26, %s38
    %s89 = ssub.s32 %s27, %s34
    %s90 = sor.u32 %s88, %s89
    %p91 = scmp.eq.s32.totalorder %s90, 0
    %s93 = sadd.s32 %s92, 1
    %s94 = scalar_select %p91, %s92, %s93
    %p97 = pneg %p91
    %p98 = scmp.eq.s32.totalorder %s19, 7
    %p99 = por %p97, %p98
    %p100 = scmp.ne.s32.totalorder %s92, %s95
    %p101 = scmp.eq.s32.totalorder %s19, 0
    %p102 = por %p100, %p101
    %p103 = scmp.ne.s32.totalorder %s92, %s95
    %p104 = scmp.eq.s32.totalorder %s24, 7
    %p105 = por %p103, %p104
    %p106 = scmp.ne.s32.totalorder %s95, %s96
    %p107 = scmp.eq.s32.totalorder %s24, 0
    %p108 = por %p106, %p107
    %p109 = scmp.ne.s32.totalorder %s95, %s96
    %p110 = scmp.eq.s32.totalorder %s25, 7
    %p111 = por %p109, %p110
    %p113 = scmp.ne.s32.totalorder %s96, %s112
    %p114 = scmp.eq.s32.totalorder %s25, 0
    %p115 = por %p113, %p114
    %s116 = ssub.s32 %s26, %s38
    %s117 = ssub.s32 %s27, %s34
    %s118 = sor.u32 %s116, %s117
    %p119 = scmp.eq.s32.totalorder %s118, 0
    %s121 = sadd.s32 %s120, 1
    %s122 = scalar_select %p119, %s120, %s121
    %p125 = pneg %p119
    %p126 = scmp.eq.s32.totalorder %s19, 7
    %p127 = por %p125, %p126
    %p128 = scmp.ne.s32.totalorder %s120, %s123
    %p129 = scmp.eq.s32.totalorder %s19, 0
    %p130 = por %p128, %p129
    %p131 = scmp.ne.s32.totalorder %s120, %s123
    %p132 = scmp.eq.s32.totalorder %s24, 7
    %p133 = por %p131, %p132
    %p134 = scmp.ne.s32.totalorder %s123, %s124
    %p135 = scmp.eq.s32.totalorder %s24, 0
    %p136 = por %p134, %p135
    %p137 = scmp.ne.s32.totalorder %s123, %s124
    %p138 = scmp.eq.s32.totalorder %s25, 7
    %p139 = por %p137, %p138
    %p141 = scmp.ne.s32.totalorder %s124, %s140
    %p142 = scmp.eq.s32.totalorder %s25, 0
    %p143 = por %p141, %p142
    %s144 = ssub.s32 %s26, %s38
    %s145 = ssub.s32 %s27, %s34
    %s146 = sor.u32 %s144, %s145
    %p147 = scmp.eq.s32.totalorder %s146, 0
    %s149 = sadd.s32 %s148, 1
    %s150 = scalar_select %p147, %s148, %s149
    %p153 = pneg %p147
    %p154 = scmp.eq.s32.totalorder %s19, 7
    %p155 = por %p153, %p154
    %p156 = scmp.ne.s32.totalorder %s148, %s151
    %p157 = scmp.eq.s32.totalorder %s19, 0
    %p158 = por %p156, %p157
    %p159 = scmp.ne.s32.totalorder %s148, %s151
    %p160 = scmp.eq.s32.totalorder %s24, 7
    %p161 = por %p159, %p160
    %p162 = scmp.ne.s32.totalorder %s151, %s152
    %p163 = scmp.eq.s32.totalorder %s24, 0
    %p164 = por %p162, %p163
    %p165 = scmp.ne.s32.totalorder %s151, %s152
    %p166 = scmp.eq.s32.totalorder %s25, 7
    %p167 = por %p165, %p166
    %p169 = scmp.ne.s32.totalorder %s152, %s168
    %p170 = scmp.eq.s32.totalorder %s25, 0
    %p171 = por %p169, %p170
    %s172 = ssub.s32 %s26, %s38
    %s173 = ssub.s32 %s27, %s34
    %s174 = sor.u32 %s172, %s173
    %p175 = scmp.eq.s32.totalorder %s174, 0
    %s177 = sadd.s32 %s176, 1
    %s178 = scalar_select %p175, %s176, %s177
    %p181 = pneg %p175
    %p182 = scmp.eq.s32.totalorder %s19, 7
    %p183 = por %p181, %p182
    %p184 = scmp.ne.s32.totalorder %s176, %s179
    %p185 = scmp.eq.s32.totalorder %s19, 0
    %p186 = por %p184, %p185
    %p187 = scmp.ne.s32.totalorder %s176, %s179
    %p188 = scmp.eq.s32.totalorder %s24, 7
    %p189 = por %p187, %p188
    %p190 = scmp.ne.s32.totalorder %s179, %s180
    %p191 = scmp.eq.s32.totalorder %s24, 0
    %p192 = por %p190, %p191
    %p193 = scmp.ne.s32.totalorder %s179, %s180
    %p194 = scmp.eq.s32.totalorder %s25, 7
    %p195 = por %p193, %p194
    %p197 = scmp.ne.s32.totalorder %s180, %s196
    %p198 = scmp.eq.s32.totalorder %s25, 0
    %p199 = por %p197, %p198
    %s200 = ssub.s32 %s26, %s38
    %s201 = ssub.s32 %s27, %s34
    %s202 = sor.u32 %s200, %s201
    %p203 = scmp.eq.s32.totalorder %s202, 0
    %s205 = sadd.s32 %s204, 1
    %s206 = scalar_select %p203, %s204, %s205
    %p209 = pneg %p203
    %p210 = scmp.eq.s32.totalorder %s19, 7
    %p211 = por %p209, %p210
    %p212 = scmp.ne.s32.totalorder %s204, %s207
    %p213 = scmp.eq.s32.totalorder %s19, 0
    %p214 = por %p212, %p213
    %p215 = scmp.ne.s32.totalorder %s204, %s207
    %p216 = scmp.eq.s32.totalorder %s24, 7
    %p217 = por %p215, %p216
    %p218 = scmp.ne.s32.totalorder %s207, %s208
    %p219 = scmp.eq.s32.totalorder %s24, 0
    %p220 = por %p218, %p219
    %p221 = scmp.ne.s32.totalorder %s207, %s208
    %p222 = scmp.eq.s32.totalorder %s25, 7
    %p223 = por %p221, %p222
    %p225 = scmp.ne.s32.totalorder %s208, %s224
    %p226 = scmp.eq.s32.totalorder %s25, 0
    %p227 = por %p225, %p226
    %s228 = ssub.s32 %s26, %s38
    %s229 = ssub.s32 %s27, %s34
    %s230 = sor.u32 %s228, %s229
    %p231 = scmp.eq.s32.totalorder %s230, 0
    %s233 = sadd.s32 %s232, 1
    %s234 = scalar_select %p231, %s232, %s233
    %p237 = pneg %p231
    %p238 = scmp.eq.s32.totalorder %s19, 7
    %p239 = por %p237, %p238
    %p240 = scmp.ne.s32.totalorder %s232, %s235
    %p241 = scmp.eq.s32.totalorder %s19, 0
    %p242 = por %p240, %p241
    %p243 = scmp.ne.s32.totalorder %s232, %s235
    %p244 = scmp.eq.s32.totalorder %s24, 7
    %p245 = por %p243, %p244
    %p246 = scmp.ne.s32.totalorder %s235, %s236
    %p247 = scmp.eq.s32.totalorder %s24, 0
    %p248 = por %p246, %p247
    %p249 = scmp.ne.s32.totalorder %s235, %s236
    %p250 = scmp.eq.s32.totalorder %s25, 7
    %p251 = por %p249, %p250
    %p253 = scmp.ne.s32.totalorder %s236, %s252
    %p254 = scmp.eq.s32.totalorder %s25, 0
    %p255 = por %p253, %p254
    %s256 = ssub.s32 %s26, %s38
    %s257 = ssub.s32 %s27, %s34
    %s258 = sor.u32 %s256, %s257
    %p259 = scmp.eq.s32.totalorder %s258, 0
    %s261 = sadd.s32 %s260, 1
    %s262 = scalar_select %p259, %s260, %s261
    %p265 = pneg %p259
    %p266 = scmp.eq.s32.totalorder %s19, 7
    %p267 = por %p265, %p266
    %p268 = scmp.ne.s32.totalorder %s260, %s263
    %p269 = scmp.eq.s32.totalorder %s19, 0
    %p270 = por %p268, %p269
    %p271 = scmp.ne.s32.totalorder %s260, %s263
    %p272 = scmp.eq.s32.totalorder %s24, 7
    %p273 = por %p271, %p272
    %p274 = scmp.ne.s32.totalorder %s263, %s264
    %p275 = scmp.eq.s32.totalorder %s24, 0
    %p276 = por %p274, %p275
    %p277 = scmp.ne.s32.totalorder %s263, %s264
    %p278 = scmp.eq.s32.totalorder %s25, 7
    %p279 = por %p277, %p278
    %p281 = scmp.ne.s32.totalorder %s264, %s280
    %p282 = scmp.eq.s32.totalorder %s25, 0
    %p283 = por %p281, %p282
    %s284 = ssub.s32 %s26, %s38
    %s285 = ssub.s32 %s27, %s34
    %s286 = sor.u32 %s284, %s285
    %p287 = scmp.eq.s32.totalorder %s286, 0
    %s289 = sadd.s32 %s288, 1
    %s290 = scalar_select %p287, %s288, %s289
    %p293 = pneg %p287
    %p294 = scmp.eq.s32.totalorder %s19, 7
    %p295 = por %p293, %p294
    %p296 = scmp.ne.s32.totalorder %s288, %s291
    %p297 = scmp.eq.s32.totalorder %s19, 0
    %p298 = por %p296, %p297
    %p299 = scmp.ne.s32.totalorder %s288, %s291
    %p300 = scmp.eq.s32.totalorder %s24, 7
    %p301 = por %p299, %p300
    %p302 = scmp.ne.s32.totalorder %s291, %s292
    %p303 = scmp.eq.s32.totalorder %s24, 0
    %p304 = por %p302, %p303
    %p305 = scmp.ne.s32.totalorder %s291, %s292
    %p306 = scmp.eq.s32.totalorder %s25, 7
    %p307 = por %p305, %p306
    %p309 = scmp.ne.s32.totalorder %s292, %s308
    %p310 = scmp.eq.s32.totalorder %s25, 0
    %p311 = por %p309, %p310
    %s312 = ssub.s32 %s26, %s38
    %s313 = ssub.s32 %s27, %s34
    %s314 = sor.u32 %s312, %s313
    %p315 = scmp.eq.s32.totalorder %s314, 0
    %s317 = sadd.s32 %s316, 1
    %s318 = scalar_select %p315, %s316, %s317
    %p321 = pneg %p315
    %p322 = scmp.eq.s32.totalorder %s19, 7
    %p323 = por %p321, %p322
    %p324 = scmp.ne.s32.totalorder %s316, %s319
    %p325 = scmp.eq.s32.totalorder %s19, 0
    %p326 = por %p324, %p325
    %p327 = scmp.ne.s32.totalorder %s316, %s319
    %p328 = scmp.eq.s32.totalorder %s24, 7
    %p329 = por %p327, %p328
    %p330 = scmp.ne.s32.totalorder %s319, %s320
    %p331 = scmp.eq.s32.totalorder %s24, 0
    %p332 = por %p330, %p331
    %p333 = scmp.ne.s32.totalorder %s319, %s320
    %p334 = scmp.eq.s32.totalorder %s25, 7
    %p335 = por %p333, %p334
    %p337 = scmp.ne.s32.totalorder %s320, %s336
    %p338 = scmp.eq.s32.totalorder %s25, 0
    %p339 = por %p337, %p338
    %s340 = ssub.s32 %s26, %s38
    %s341 = ssub.s32 %s27, %s34
    %s342 = sor.u32 %s340, %s341
    %p343 = scmp.eq.s32.totalorder %s342, 0
    %s345 = sadd.s32 %s344, 1
    %s346 = scalar_select %p343, %s344, %s345
    %p349 = pneg %p343
    %p350 = scmp.eq.s32.totalorder %s19, 7
    %p351 = por %p349, %p350
    %p352 = scmp.ne.s32.totalorder %s344, %s347
    %p353 = scmp.eq.s32.totalorder %s19, 0
    %p354 = por %p352, %p353
    %p355 = scmp.ne.s32.totalorder %s344, %s347
    %p356 = scmp.eq.s32.totalorder %s24, 7
    %p357 = por %p355, %p356
    %p358 = scmp.ne.s32.totalorder %s347, %s348
    %p359 = scmp.eq.s32.totalorder %s24, 0
    %p360 = por %p358, %p359
    %p361 = scmp.ne.s32.totalorder %s347, %s348
    %p362 = scmp.eq.s32.totalorder %s25, 7
    %p363 = por %p361, %p362
    %p365 = scmp.ne.s32.totalorder %s348, %s364
    %p366 = scmp.eq.s32.totalorder %s25, 0
    %p367 = por %p365, %p366
    %s368 = ssub.s32 %s26, %s38
    %s369 = ssub.s32 %s27, %s34
    %s370 = sor.u32 %s368, %s369
    %p371 = scmp.eq.s32.totalorder %s370, 0
    %s373 = sadd.s32 %s372, 1
    %s374 = scalar_select %p371, %s372, %s373
    %p377 = pneg %p371
    %p378 = scmp.eq.s32.totalorder %s19, 7
    %p379 = por %p377, %p378
    %p380 = scmp.ne.s32.totalorder %s372, %s375
    %p381 = scmp.eq.s32.totalorder %s19, 0
    %p382 = por %p380, %p381
    %p383 = scmp.ne.s32.totalorder %s372, %s375
    %p384 = scmp.eq.s32.totalorder %s24, 7
    %p385 = por %p383, %p384
    %p386 = scmp.ne.s32.totalorder %s375, %s376
    %p387 = scmp.eq.s32.totalorder %s24, 0
    %p388 = por %p386, %p387
    %p389 = scmp.ne.s32.totalorder %s375, %s376
    %p390 = scmp.eq.s32.totalorder %s25, 7
    %p391 = por %p389, %p390
    %p393 = scmp.ne.s32.totalorder %s376, %s392
    %p394 = scmp.eq.s32.totalorder %s25, 0
    %p395 = por %p393, %p394
    %s396 = ssub.s32 %s26, %s38
    %p397 = scmp.eq.s32.totalorder %s396, 0
    %s399 = sadd.s32 %s398, 1
    %s400 = scalar_select %p397, %s398, %s399
    %p403 = pneg %p397
    %p404 = scmp.eq.s32.totalorder %s19, 7
    %p405 = por %p403, %p404
    %p406 = scmp.ne.s32.totalorder %s398, %s401
    %p407 = scmp.eq.s32.totalorder %s19, 0
    %p408 = por %p406, %p407
    %p409 = scmp.ne.s32.totalorder %s398, %s401
    %p410 = scmp.eq.s32.totalorder %s24, 7
    %p411 = por %p409, %p410
    %p412 = scmp.ne.s32.totalorder %s401, %s402
    %p413 = scmp.eq.s32.totalorder %s24, 0
    %p414 = por %p412, %p413
    %p415 = scmp.ne.s32.totalorder %s401, %s402
    %p416 = scmp.eq.s32.totalorder %s25, 7
    %p417 = por %p415, %p416
    %p419 = scmp.ne.s32.totalorder %s402, %s418
    %p420 = scmp.eq.s32.totalorder %s25, 0
    %p421 = por %p419, %p420
    %p422 = scmp.le.s32.totalorder 1, %s19
    %p423 = scmp.lt.s32.totalorder %s19, 9
    %p424 = pnand %p422, %p423
    %p425 = pneg %p424
    // Predicated region
    $region9: #{moe_encoder_forward.3} parent=5 // pred_check
      _
    $region10: #{moe_encoder_forward.3} parent=5 // pred_check_branch
      %427 = sbr.rel (%p424) target = $region12
    $region11: #{moe_encoder_forward.3} parent=5 // pred_region
      %s428 = ssub.s32 %s19, 1
      // Predicated region
      $region13: #{moe_encoder_forward.3} parent=11 // pred_check
        %p429 = pneg %p52
      $region14: #{moe_encoder_forward.3} parent=11 // pred_check_branch
        %431 = sbr.rel (%p429) target = $region16
      $region15: #{moe_encoder_forward.3} parent=11 // pred_region
        _
      $region16: #{moe_encoder_forward.3} parent=11 // pred_fallthru
        _
    $region12: #{moe_encoder_forward.3} parent=5 // pred_fallthru
      _
    %p432 = scmp.lt.s32.totalorder %s19, 8
    // Predicated region
    $region17: #{moe_encoder_forward.3} parent=5 // pred_check
      %p433 = pneg %p432
    $region18: #{moe_encoder_forward.3} parent=5 // pred_check_branch
      %435 = sbr.rel (%p433) target = $region20
    $region19: #{moe_encoder_forward.3} parent=5 // pred_region
      // Predicated region
      $region21: #{moe_encoder_forward.3} parent=19 // pred_check
        %p436 = pneg %p74
      $region22: #{moe_encoder_forward.3} parent=19 // pred_check_branch
        %438 = sbr.rel (%p436) target = $region24
      $region23: #{moe_encoder_forward.3} parent=19 // pred_region
        %p439 = scmp.lt.s32.totalorder %s26, 3
        %s440 = scalar_select %p439, %s26, 3
        %p441 = scmp.lt.s32.totalorder %s27, 1
        %s442 = scalar_select %p441, %s27, 1
        %s443 = smul.addr %s442, 4
        %s444 = smul.addr %s440, 8
        %s445 = sadd.s32 %s443, %s444
        %s446 = smul.addr %s445, 4
        %s447 = scalar_lea.vmem %s1, %s446
      $region24: #{moe_encoder_forward.3} parent=19 // pred_fallthru
        _
      // Predicated region
      $region25: #{moe_encoder_forward.3} parent=19 // pred_check
        %p448 = pneg %p102
      $region26: #{moe_encoder_forward.3} parent=19 // pred_check_branch
        %450 = sbr.rel (%p448) target = $region28
      $region27: #{moe_encoder_forward.3} parent=19 // pred_region
        %p451 = scmp.lt.s32.totalorder %s26, 3
        %s452 = scalar_select %p451, %s26, 3
        %p453 = scmp.lt.s32.totalorder %s27, 1
        %s454 = scalar_select %p453, %s27, 1
        %s455 = smul.addr %s452, 2
        %s456 = sadd.s32 %s454, %s455
        %s457 = scalar_lea.vmem %s2, %s456
      $region28: #{moe_encoder_forward.3} parent=19 // pred_fallthru
        _
      // Predicated region
      $region29: #{moe_encoder_forward.3} parent=19 // pred_check
        %p458 = pneg %p130
      $region30: #{moe_encoder_forward.3} parent=19 // pred_check_branch
        %460 = sbr.rel (%p458) target = $region32
      $region31: #{moe_encoder_forward.3} parent=19 // pred_region
        %p461 = scmp.lt.s32.totalorder %s26, 3
        %s462 = scalar_select %p461, %s26, 3
        %p463 = scmp.lt.s32.totalorder %s27, 1
        %s464 = scalar_select %p463, %s27, 1
        %s465 = smul.addr %s464, 4
        %s466 = smul.addr %s462, 8
        %s467 = sadd.s32 %s465, %s466
        %s468 = smul.addr %s467, 4
        %s469 = scalar_lea.vmem %s3, %s468
      $region32: #{moe_encoder_forward.3} parent=19 // pred_fallthru
        _
      // Predicated region
      $region33: #{moe_encoder_forward.3} parent=19 // pred_check
        %p470 = pneg %p158
      $region34: #{moe_encoder_forward.3} parent=19 // pred_check_branch
        %472 = sbr.rel (%p470) target = $region36
      $region35: #{moe_encoder_forward.3} parent=19 // pred_region
        %p473 = scmp.lt.s32.totalorder %s26, 3
        %s474 = scalar_select %p473, %s26, 3
        %p475 = scmp.lt.s32.totalorder %s27, 1
        %s476 = scalar_select %p475, %s27, 1
        %s477 = smul.addr %s474, 2
        %s478 = sadd.s32 %s476, %s477
        %s479 = scalar_lea.vmem %s4, %s478
      $region36: #{moe_encoder_forward.3} parent=19 // pred_fallthru
        _
      // Predicated region
      $region37: #{moe_encoder_forward.3} parent=19 // pred_check
        %p480 = pneg %p186
      $region38: #{moe_encoder_forward.3} parent=19 // pred_check_branch
        %482 = sbr.rel (%p480) target = $region40
      $region39: #{moe_encoder_forward.3} parent=19 // pred_region
        %p483 = scmp.lt.s32.totalorder %s26, 3
        %s484 = scalar_select %p483, %s26, 3
        %p485 = scmp.lt.s32.totalorder %s27, 1
        %s486 = scalar_select %p485, %s27, 1
        %s487 = smul.addr %s484, 2
        %s488 = sadd.s32 %s486, %s487
        %s489 = scalar_lea.vmem %s5, %s488
      $region40: #{moe_encoder_forward.3} parent=19 // pred_fallthru
        _
      // Predicated region
      $region41: #{moe_encoder_forward.3} parent=19 // pred_check
        %p490 = pneg %p214
      $region42: #{moe_encoder_forward.3} parent=19 // pred_check_branch
        %492 = sbr.rel (%p490) target = $region44
      $region43: #{moe_encoder_forward.3} parent=19 // pred_region
        %p493 = scmp.lt.s32.totalorder %s26, 3
        %s494 = scalar_select %p493, %s26, 3
        %p495 = scmp.lt.s32.totalorder %s27, 1
        %s496 = scalar_select %p495, %s27, 1
        %s497 = smul.addr %s494, 2
        %s498 = sadd.s32 %s496, %s497
        %s499 = scalar_lea.vmem %s6, %s498
      $region44: #{moe_encoder_forward.3} parent=19 // pred_fallthru
        _
      // Predicated region
      $region45: #{moe_encoder_forward.3} parent=19 // pred_check
        %p500 = pneg %p242
      $region46: #{moe_encoder_forward.3} parent=19 // pred_check_branch
        %502 = sbr.rel (%p500) target = $region48
      $region47: #{moe_encoder_forward.3} parent=19 // pred_region
        %p503 = scmp.lt.s32.totalorder %s26, 3
        %s504 = scalar_select %p503, %s26, 3
        %p505 = scmp.lt.s32.totalorder %s27, 1
        %s506 = scalar_select %p505, %s27, 1
        %s507 = smul.addr %s506, 4
        %s508 = smul.addr %s504, 8
        %s509 = sadd.s32 %s507, %s508
        %s510 = smul.addr %s509, 4
        %s511 = scalar_lea.vmem %s7, %s510
      $region48: #{moe_encoder_forward.3} parent=19 // pred_fallthru
        _
      // Predicated region
      $region49: #{moe_encoder_forward.3} parent=19 // pred_check
        %p512 = pneg %p270
      $region50: #{moe_encoder_forward.3} parent=19 // pred_check_branch
        %514 = sbr.rel (%p512) target = $region52
      $region51: #{moe_encoder_forward.3} parent=19 // pred_region
        %p515 = scmp.lt.s32.totalorder %s26, 3
        %s516 = scalar_select %p515, %s26, 3
        %p517 = scmp.lt.s32.totalorder %s27, 1
        %s518 = scalar_select %p517, %s27, 1
        %s519 = smul.addr %s516, 2
        %s520 = sadd.s32 %s518, %s519
        %s521 = scalar_lea.vmem %s8, %s520
      $region52: #{moe_encoder_forward.3} parent=19 // pred_fallthru
        _
      // Predicated region
      $region53: #{moe_encoder_forward.3} parent=19 // pred_check
        %p522 = pneg %p298
      $region54: #{moe_encoder_forward.3} parent=19 // pred_check_branch
        %524 = sbr.rel (%p522) target = $region56
      $region55: #{moe_encoder_forward.3} parent=19 // pred_region
        %p525 = scmp.lt.s32.totalorder %s26, 3
        %s526 = scalar_select %p525, %s26, 3
        %p527 = scmp.lt.s32.totalorder %s27, 1
        %s528 = scalar_select %p527, %s27, 1
        %s529 = smul.addr %s528, 8
        %s530 = smul.addr %s526, 16
        %s531 = sadd.s32 %s529, %s530
        %s532 = smul.addr %s531, 4
        %s533 = scalar_lea.vmem %s9, %s532
      $region56: #{moe_encoder_forward.3} parent=19 // pred_fallthru
        _
      // Predicated region
      $region57: #{moe_encoder_forward.3} parent=19 // pred_check
        %p534 = pneg %p326
      $region58: #{moe_encoder_forward.3} parent=19 // pred_check_branch
        %536 = sbr.rel (%p534) target = $region60
      $region59: #{moe_encoder_forward.3} parent=19 // pred_region
        %p537 = scmp.lt.s32.totalorder %s26, 3
        %s538 = scalar_select %p537, %s26, 3
        %p539 = scmp.lt.s32.totalorder %s27, 1
        %s540 = scalar_select %p539, %s27, 1
        %s541 = smul.addr %s538, 2
        %s542 = sadd.s32 %s540, %s541
        %s543 = scalar_lea.vmem %s10, %s542
      $region60: #{moe_encoder_forward.3} parent=19 // pred_fallthru
        _
      // Predicated region
      $region61: #{moe_encoder_forward.3} parent=19 // pred_check
        %p544 = pneg %p354
      $region62: #{moe_encoder_forward.3} parent=19 // pred_check_branch
        %546 = sbr.rel (%p544) target = $region64
      $region63: #{moe_encoder_forward.3} parent=19 // pred_region
        %p547 = scmp.lt.s32.totalorder %s26, 3
        %s548 = scalar_select %p547, %s26, 3
        %p549 = scmp.lt.s32.totalorder %s27, 1
        %s550 = scalar_select %p549, %s27, 1
        %s551 = smul.addr %s548, 2
        %s552 = sadd.s32 %s550, %s551
        %s553 = scalar_lea.vmem %s11, %s552
      $region64: #{moe_encoder_forward.3} parent=19 // pred_fallthru
        _
      // Predicated region
      $region65: #{moe_encoder_forward.3} parent=19 // pred_check
        %p554 = pneg %p382
      $region66: #{moe_encoder_forward.3} parent=19 // pred_check_branch
        %556 = sbr.rel (%p554) target = $region68
      $region67: #{moe_encoder_forward.3} parent=19 // pred_region
        %p557 = scmp.lt.s32.totalorder %s26, 3
        %s558 = scalar_select %p557, %s26, 3
        %p559 = scmp.lt.s32.totalorder %s27, 1
        %s560 = scalar_select %p559, %s27, 1
        %s561 = smul.addr %s558, 2
        %s562 = sadd.s32 %s560, %s561
        %s563 = scalar_lea.vmem %s12, %s562
      $region68: #{moe_encoder_forward.3} parent=19 // pred_fallthru
        _
    $region20: #{moe_encoder_forward.3} parent=5 // pred_fallthru
      _
    %p564 = scmp.le.s32.totalorder 1, %s19
    %p565 = scmp.lt.s32.totalorder %s19, 9
    %p566 = pnand %p564, %p565
    %p567 = pneg %p566
    // Predicated region
    $region69: #{moe_encoder_forward.3} parent=5 // pred_check
      _
    $region70: #{moe_encoder_forward.3} parent=5 // pred_check_branch
      %569 = sbr.rel (%p566) target = $region72
    $region71: #{moe_encoder_forward.3} parent=5 // pred_region
      %s570 = ssub.s32 %s19, 1
      %p571 = pneg %p52
      %p572 = pneg %p49
      %p573 = scmp.lt.s32.totalorder %s28, 3
      %s574 = scalar_select %p573, %s28, 3
      %p575 = scmp.lt.s32.totalorder %s29, 1
      %s576 = scalar_select %p575, %s29, 1
      %s577 = smul.addr %s576, 4
      %s578 = smul.addr %s574, 8
      %s579 = sadd.s32 %s577, %s578
      %s580 = smul.addr %s579, 4
      %s581 = scalar_lea.vmem %s1, %s580
      %p582 = pneg %p80
      %p583 = pneg %p77
      %p584 = scmp.lt.s32.totalorder %s28, 3
      %s585 = scalar_select %p584, %s28, 3
      %p586 = scmp.lt.s32.totalorder %s29, 1
      %s587 = scalar_select %p586, %s29, 1
      %s588 = smul.addr %s585, 2
      %s589 = sadd.s32 %s587, %s588
      %s590 = scalar_lea.vmem %s2, %s589
      %p591 = pneg %p108
      %p592 = pneg %p105
      %p593 = scmp.lt.s32.totalorder %s28, 3
      %s594 = scalar_select %p593, %s28, 3
      %p595 = scmp.lt.s32.totalorder %s29, 1
      %s596 = scalar_select %p595, %s29, 1
      %s597 = smul.addr %s596, 4
      %s598 = smul.addr %s594, 8
      %s599 = sadd.s32 %s597, %s598
      %s600 = smul.addr %s599, 4
      %s601 = scalar_lea.vmem %s3, %s600
      %p602 = pneg %p136
      %p603 = pneg %p133
      %p604 = scmp.lt.s32.totalorder %s28, 3
      %s605 = scalar_select %p604, %s28, 3
      %p606 = scmp.lt.s32.totalorder %s29, 1
      %s607 = scalar_select %p606, %s29, 1
      %s608 = smul.addr %s605, 2
      %s609 = sadd.s32 %s607, %s608
      %s610 = scalar_lea.vmem %s4, %s609
      %p611 = pneg %p164
      %p612 = pneg %p161
      %p613 = scmp.lt.s32.totalorder %s28, 3
      %s614 = scalar_select %p613, %s28, 3
      %p615 = scmp.lt.s32.totalorder %s29, 1
      %s616 = scalar_select %p615, %s29, 1
      %s617 = smul.addr %s614, 2
      %s618 = sadd.s32 %s616, %s617
      %s619 = scalar_lea.vmem %s5, %s618
      %p620 = pneg %p192
      %p621 = pneg %p189
      %p622 = scmp.lt.s32.totalorder %s28, 3
      %s623 = scalar_select %p622, %s28, 3
      %p624 = scmp.lt.s32.totalorder %s29, 1
      %s625 = scalar_select %p624, %s29, 1
      %s626 = smul.addr %s623, 2
      %s627 = sadd.s32 %s625, %s626
      %s628 = scalar_lea.vmem %s6, %s627
      %p629 = pneg %p220
      %p630 = pneg %p217
      %p631 = scmp.lt.s32.totalorder %s28, 3
      %s632 = scalar_select %p631, %s28, 3
      %p633 = scmp.lt.s32.totalorder %s29, 1
      %s634 = scalar_select %p633, %s29, 1
      %s635 = smul.addr %s634, 4
      %s636 = smul.addr %s632, 8
      %s637 = sadd.s32 %s635, %s636
      %s638 = smul.addr %s637, 4
      %s639 = scalar_lea.vmem %s7, %s638
      %p640 = pneg %p248
      %p641 = pneg %p245
      %p642 = scmp.lt.s32.totalorder %s28, 3
      %s643 = scalar_select %p642, %s28, 3
      %p644 = scmp.lt.s32.totalorder %s29, 1
      %s645 = scalar_select %p644, %s29, 1
      %s646 = smul.addr %s643, 2
      %s647 = sadd.s32 %s645, %s646
      %s648 = scalar_lea.vmem %s8, %s647
      %p649 = pneg %p276
      %p650 = pneg %p273
      %p651 = scmp.lt.s32.totalorder %s28, 3
      %s652 = scalar_select %p651, %s28, 3
      %p653 = scmp.lt.s32.totalorder %s29, 1
      %s654 = scalar_select %p653, %s29, 1
      %s655 = smul.addr %s654, 8
      %s656 = smul.addr %s652, 16
      %s657 = sadd.s32 %s655, %s656
      %s658 = smul.addr %s657, 4
      %s659 = scalar_lea.vmem %s9, %s658
      %p660 = pneg %p304
      %p661 = pneg %p301
      %p662 = scmp.lt.s32.totalorder %s28, 3
      %s663 = scalar_select %p662, %s28, 3
      %p664 = scmp.lt.s32.totalorder %s29, 1
      %s665 = scalar_select %p664, %s29, 1
      %s666 = smul.addr %s663, 2
      %s667 = sadd.s32 %s665, %s666
      %s668 = scalar_lea.vmem %s10, %s667
      %p669 = pneg %p332
      %p670 = pneg %p329
      %p671 = scmp.lt.s32.totalorder %s28, 3
      %s672 = scalar_select %p671, %s28, 3
      %p673 = scmp.lt.s32.totalorder %s29, 1
      %s674 = scalar_select %p673, %s29, 1
      %s675 = smul.addr %s672, 2
      %s676 = sadd.s32 %s674, %s675
      %s677 = scalar_lea.vmem %s11, %s676
      %p678 = pneg %p360
      %p679 = pneg %p357
      %p680 = scmp.lt.s32.totalorder %s28, 3
      %s681 = scalar_select %p680, %s28, 3
      %p682 = scmp.lt.s32.totalorder %s29, 1
      %s683 = scalar_select %p682, %s29, 1
      %s684 = smul.addr %s681, 2
      %s685 = sadd.s32 %s683, %s684
      %s686 = scalar_lea.vmem %s12, %s685
      %p687 = pneg %p388
      %p688 = pneg %p385
      %p689 = pneg %p414
      %p690 = pneg %p411
      %p691 = scmp.lt.s32.totalorder %s28, 3
      %s692 = scalar_select %p691, %s28, 3
      %s693 = smul.addr %s692, 2
      %s694 = smul.addr %s693, 4
      %s695 = scalar_lea.vmem %s13, %s694
      %p696 = scmp.lt.s32.totalorder %s28, 3
      %s697 = scalar_select %p696, %s28, 3
      %p698 = scmp.lt.s32.totalorder %s29, 1
      %s699 = scalar_select %p698, %s29, 1
      %s700 = smul.addr %s699, 4
      %s701 = smul.addr %s697, 8
      %s702 = sadd.s32 %s700, %s701
      %s703 = smul.addr %s702, 4
      %s704 = scalar_lea.vmem %s1, %s703
      %p705 = scmp.lt.s32.totalorder %s28, 3
      %s706 = scalar_select %p705, %s28, 3
      %p707 = scmp.lt.s32.totalorder %s29, 1
      %s708 = scalar_select %p707, %s29, 1
      %s709 = smul.addr %s706, 2
      %s710 = sadd.s32 %s708, %s709
      %s711 = scalar_lea.vmem %s2, %s710
      %p712 = scmp.lt.s32.totalorder %s28, 3
      %s713 = scalar_select %p712, %s28, 3
      %p714 = scmp.lt.s32.totalorder %s29, 1
      %s715 = scalar_select %p714, %s29, 1
      %s716 = smul.addr %s715, 4
      %s717 = smul.addr %s713, 8
      %s718 = sadd.s32 %s716, %s717
      %s719 = smul.addr %s718, 4
      %s720 = scalar_lea.vmem %s3, %s719
      %p721 = scmp.lt.s32.totalorder %s28, 3
      %s722 = scalar_select %p721, %s28, 3
      %p723 = scmp.lt.s32.totalorder %s29, 1
      %s724 = scalar_select %p723, %s29, 1
      %s725 = smul.addr %s722, 2
      %s726 = sadd.s32 %s724, %s725
      %s727 = scalar_lea.vmem %s4, %s726
      %p728 = scmp.lt.s32.totalorder %s28, 3
      %s729 = scalar_select %p728, %s28, 3
      %p730 = scmp.lt.s32.totalorder %s29, 1
      %s731 = scalar_select %p730, %s29, 1
      %s732 = smul.addr %s729, 2
      %s733 = sadd.s32 %s731, %s732
      %s734 = scalar_lea.vmem %s5, %s733
      %p735 = scmp.lt.s32.totalorder %s28, 3
      %s736 = scalar_select %p735, %s28, 3
      %p737 = scmp.lt.s32.totalorder %s29, 1
      %s738 = scalar_select %p737, %s29, 1
      %s739 = smul.addr %s736, 2
      %s740 = sadd.s32 %s738, %s739
      %s741 = scalar_lea.vmem %s6, %s740
      %p742 = scmp.lt.s32.totalorder %s28, 3
      %s743 = scalar_select %p742, %s28, 3
      %p744 = scmp.lt.s32.totalorder %s29, 1
      %s745 = scalar_select %p744, %s29, 1
      %s746 = smul.addr %s745, 4
      %s747 = smul.addr %s743, 8
      %s748 = sadd.s32 %s746, %s747
      %s749 = smul.addr %s748, 4
      %s750 = scalar_lea.vmem %s7, %s749
      %p751 = scmp.lt.s32.totalorder %s28, 3
      %s752 = scalar_select %p751, %s28, 3
      %p753 = scmp.lt.s32.totalorder %s29, 1
      %s754 = scalar_select %p753, %s29, 1
      %s755 = smul.addr %s752, 2
      %s756 = sadd.s32 %s754, %s755
      %s757 = scalar_lea.vmem %s8, %s756
      %p758 = scmp.lt.s32.totalorder %s28, 3
      %s759 = scalar_select %p758, %s28, 3
      %p760 = scmp.lt.s32.totalorder %s29, 1
      %s761 = scalar_select %p760, %s29, 1
      %s762 = smul.addr %s761, 8
      %s763 = smul.addr %s759, 16
      %s764 = sadd.s32 %s762, %s763
      %s765 = smul.addr %s764, 4
      %s766 = scalar_lea.vmem %s9, %s765
      %p767 = scmp.lt.s32.totalorder %s28, 3
      %s768 = scalar_select %p767, %s28, 3
      %p769 = scmp.lt.s32.totalorder %s29, 1
      %s770 = scalar_select %p769, %s29, 1
      %s771 = smul.addr %s768, 2
      %s772 = sadd.s32 %s770, %s771
      %s773 = scalar_lea.vmem %s10, %s772
      %p774 = scmp.lt.s32.totalorder %s28, 3
      %s775 = scalar_select %p774, %s28, 3
      %p776 = scmp.lt.s32.totalorder %s29, 1
      %s777 = scalar_select %p776, %s29, 1
      %s778 = smul.addr %s775, 2
      %s779 = sadd.s32 %s777, %s778
      %s780 = scalar_lea.vmem %s11, %s779
      %p781 = scmp.lt.s32.totalorder %s28, 3
      %s782 = scalar_select %p781, %s28, 3
      %p783 = scmp.lt.s32.totalorder %s29, 1
      %s784 = scalar_select %p783, %s29, 1
      %s785 = smul.addr %s782, 2
      %s786 = sadd.s32 %s784, %s785
      %s787 = scalar_lea.vmem %s12, %s786
      %p788 = scmp.lt.s32.totalorder %s28, 3
      %s789 = scalar_select %p788, %s28, 3
      %s790 = smul.addr %s789, 2
      %s791 = smul.addr %s790, 4
      %s792 = scalar_lea.vmem %s13, %s791
      %p794 = scmp.eq.s32.totalorder %s29, 0
      // Predicated region
      $region73: #{moe_encoder_forward.3} parent=71 // pred_check
        %p795 = pneg %p794
      $region74: #{moe_encoder_forward.3} parent=71 // pred_check_branch
        %797 = sbr.rel (%p795) target = $region76
      $region75: #{moe_encoder_forward.3} parent=71 // pred_region
        %v798 = vld [vmem:[%s0] sm:$0xf]
        %v799 = vld [vmem:[%s0 + $0x4] sm:$0xf]
        %v800 = vunpack.c.l.bf16 %v798
        %v801 = vunpack.c.l.bf16 %v799
        %vm802 = vcmask 261120
        %803 = vst.msk [vmem:[#allocation2] sm:$0xff] %vm802, %v800
        %804 = vst.msk [vmem:[#allocation2 + $0x8] sm:$0xff] %vm802, %v801
      $region76: #{moe_encoder_forward.3} parent=71 // pred_fallthru
        _
      %v805 = vld [vmem:[#allocation2] sm:$0xff]
      %v806 = vld [vmem:[#allocation2 + $0x8] sm:$0xff]
      %v807 = vpack.c.bf16 %v806, %v805
      %v808 = vld [vmem:[%s704] sm:$0xf]
      %v809 = vld [vmem:[%s704 + $0x4] sm:$0xf]
      %v810 = vld [vmem:[%s704 + $0x8] sm:$0xf]
      %v811 = vld [vmem:[%s704 + $0xc] sm:$0xf]
      %v812 = vld [vmem:[%s711] sm:$0x1]
      %v814 = vlaneseq
      %v815 = vshrl.u32 %v814, 7
      %v816 = vsub.s32 0, %v815
      %v817 = vrot.slane %v812, %v816
      %v823 = vunpack.c.l.b16 %v808
      %v824 = vunpack.c.l.b16 %v809
      %v825 = vunpack.c.l.b16 %v810
      %v826 = vunpack.c.l.b16 %v811
      %v827 = vpack.c.b16 %v824, %v823
      %v828 = vpack.c.b16 %v826, %v825
      %vm831 = vcmask 261120
      %v833 = vsel %vm831, %v807, 0
      %835 = vmatprep.subr.bf16.mxu0 0
      %836 = vmatpush1.bf16.msra.mxu0 %v827
      %837 = vmatprep.subr.bf16.mxu0 0
      %838 = vmatpush1.bf16.msra.mxu0 %v828
      %839 = vmatprep.subr.bf16.mxu0 0
      %840 = vmatpush1.bf16.msra.mxu0 0
      %841 = vmatprep.subr.bf16.mxu0 0
      %842 = vmatpush1.bf16.msra.mxu0 0
      %843 = vmatprep.subr.bf16.mxu0 0
      %844 = vmatpush1.bf16.msra.mxu0 0
      %845 = vmatprep.subr.bf16.mxu0 0
      %846 = vmatpush1.bf16.msra.mxu0 0
      %847 = vmatprep.subr.bf16.mxu0 0
      %848 = vmatpush1.bf16.msra.mxu0 0
      %849 = vmatprep.subr.bf16.mxu0 0
      %850 = vmatpush1.bf16.msra.mxu0 0
      %851 = vmatprep.subr.bf16.mxu0 0
      %852 = vmatpush1.bf16.msra.mxu0 0
      %853 = vmatprep.subr.bf16.mxu0 0
      %854 = vmatpush1.bf16.msra.mxu0 0
      %855 = vmatprep.subr.bf16.mxu0 0
      %856 = vmatpush1.bf16.msra.mxu0 0
      %857 = vmatprep.subr.bf16.mxu0 0
      %858 = vmatpush1.bf16.msra.mxu0 0
      %859 = vmatprep.subr.bf16.mxu0 0
      %860 = vmatpush1.bf16.msra.mxu0 0
      %861 = vmatprep.subr.bf16.mxu0 0
      %862 = vmatpush1.bf16.msra.mxu0 0
      %863 = vmatprep.subr.bf16.mxu0 0
      %864 = vmatpush1.bf16.msra.mxu0 0
      %865 = vmatprep.subr.bf16.mxu0 0
      %866 = vmatpush1.bf16.msra.mxu0 0
      %867 = vmatprep.mubr.bf16.mxu0 0
      %868 = vmatmul.mubr.bf16.gmra.mrb[0].mxu0 %v833
      %v869 = vpop.f32.mrb[0].mxu0
      %v870 = vadd.f32 %v817, %v869
      %v871 = vpop.f32.mrb[0].mxu0
      %v872 = vpop.f32.mrb[0].mxu0
      %v873 = vadd.f32 %v817, %v872
      %v874 = vpop.f32.mrb[0].mxu0
      %875 = vdwg.mxu0
      %v876 = vpack.c.bf16 %v870, %v870
      %v877 = vpack.c.bf16 %v873, %v873
      %879 = vrot.lane.b32.xlu0 %v876, 96
      %v880 = vpop.permute.xlu0 %879
      %vm881 = vcmask 64512
      %v883 = vsel %vm881, %v876, 0
      %v886 = vsel %vm881, %v880, 0
      %888 = vmatprep.subr.bf16.mxu0 0
      %889 = vmatpush1.bf16.xpose.msra.mxu0 %v886
      %890 = vmatprep.subr.bf16.mxu0 0
      %891 = vmatpush1.bf16.xpose.msra.mxu0 0
      %892 = vmatprep.subr.bf16.mxu0 0
      %893 = vmatpush1.bf16.xpose.msra.mxu0 0
      %894 = vmatprep.subr.bf16.mxu0 0
      %895 = vmatpush1.bf16.xpose.msra.mxu0 0
      %896 = vmatprep.subr.bf16.mxu0 0
      %897 = vmatpush1.bf16.xpose.msra.mxu0 0
      %898 = vmatprep.subr.bf16.mxu0 0
      %899 = vmatpush1.bf16.xpose.msra.mxu0 0
      %900 = vmatprep.subr.bf16.mxu0 0
      %901 = vmatpush1.bf16.xpose.msra.mxu0 0
      %902 = vmatprep.subr.bf16.mxu0 0
      %903 = vmatpush1.bf16.xpose.msra.mxu0 0
      %904 = vmatprep.subr.bf16.mxu0 0
      %905 = vmatpush1.bf16.xpose.msra.mxu0 0
      %906 = vmatprep.subr.bf16.mxu0 0
      %907 = vmatpush1.bf16.xpose.msra.mxu0 0
      %908 = vmatprep.subr.bf16.mxu0 0
      %909 = vmatpush1.bf16.xpose.msra.mxu0 0
      %910 = vmatprep.subr.bf16.mxu0 0
      %911 = vmatpush1.bf16.xpose.msra.mxu0 0
      %912 = vmatprep.subr.bf16.mxu0 0
      %913 = vmatpush1.bf16.xpose.msra.mxu0 0
      %914 = vmatprep.subr.bf16.mxu0 0
      %915 = vmatpush1.bf16.xpose.msra.mxu0 0
      %916 = vmatprep.subr.bf16.mxu0 0
      %917 = vmatpush1.bf16.xpose.msra.mxu0 0
      %918 = vmatprep.subr.bf16.mxu0 0
      %919 = vmatpush1.bf16.xpose.msra.mxu0 0
      %920 = vmatprep.mubr.bf16.mxu0 0
      %921 = vmatmul.mubr.bf16.gmra.mrb[0].mxu0 %v883
      %v922 = vpop.f32.mrb[0].mxu0
      %v923 = vadd.f32 0.0, %v922
      %v924 = vpop.f32.mrb[0].mxu0
      %v925 = vpop.f32.mrb[0].mxu0
      %v926 = vpop.f32.mrb[0].mxu0
      %927 = vdwg.mxu0
      %929 = vrot.lane.b32.xlu0 %v877, 96
      %v930 = vpop.permute.xlu0 %929
      %v932 = vsel %vm881, %v877, 0
      %v935 = vsel %vm881, %v930, 0
      %937 = vmatprep.subr.bf16.mxu0 0
      %938 = vmatpush1.bf16.xpose.msra.mxu0 %v935
      %939 = vmatprep.subr.bf16.mxu0 0
      %940 = vmatpush1.bf16.xpose.msra.mxu0 0
      %941 = vmatprep.subr.bf16.mxu0 0
      %942 = vmatpush1.bf16.xpose.msra.mxu0 0
      %943 = vmatprep.subr.bf16.mxu0 0
      %944 = vmatpush1.bf16.xpose.msra.mxu0 0
      %945 = vmatprep.subr.bf16.mxu0 0
      %946 = vmatpush1.bf16.xpose.msra.mxu0 0
      %947 = vmatprep.subr.bf16.mxu0 0
      %948 = vmatpush1.bf16.xpose.msra.mxu0 0
      %949 = vmatprep.subr.bf16.mxu0 0
      %950 = vmatpush1.bf16.xpose.msra.mxu0 0
      %951 = vmatprep.subr.bf16.mxu0 0
      %952 = vmatpush1.bf16.xpose.msra.mxu0 0
      %953 = vmatprep.subr.bf16.mxu0 0
      %954 = vmatpush1.bf16.xpose.msra.mxu0 0
      %955 = vmatprep.subr.bf16.mxu0 0
      %956 = vmatpush1.bf16.xpose.msra.mxu0 0
      %957 = vmatprep.subr.bf16.mxu0 0
      %958 = vmatpush1.bf16.xpose.msra.mxu0 0
      %959 = vmatprep.subr.bf16.mxu0 0
      %960 = vmatpush1.bf16.xpose.msra.mxu0 0
      %961 = vmatprep.subr.bf16.mxu0 0
      %962 = vmatpush1.bf16.xpose.msra.mxu0 0
      %963 = vmatprep.subr.bf16.mxu0 0
      %964 = vmatpush1.bf16.xpose.msra.mxu0 0
      %965 = vmatprep.subr.bf16.mxu0 0
      %966 = vmatpush1.bf16.xpose.msra.mxu0 0
      %967 = vmatprep.subr.bf16.mxu0 0
      %968 = vmatpush1.bf16.xpose.msra.mxu0 0
      %969 = vmatprep.mubr.bf16.mxu0 0
      %970 = vmatmul.mubr.bf16.gmra.mrb[0].mxu0 %v932
      %v971 = vpop.f32.mrb[0].mxu0
      %v972 = vadd.f32 0.0, %v971
      %v973 = vpop.f32.mrb[0].mxu0
      %v974 = vpop.f32.mrb[0].mxu0
      %v975 = vpop.f32.mrb[0].mxu0
      %976 = vdwg.mxu0
      %v977 = vsel %vm881, %v923, -inf
      %978 = vmax.xlane.f32.xlu0 %v977
      %v979 = vpop.xlane.xlu0 %978
      %v980 = vsel %vm881, %v972, -inf
      %981 = vmax.xlane.f32.xlu0 %v980
      %v982 = vpop.xlane.xlu0 %981
      %v983 = vsub.f32 %v923, %v979
      %v984 = vsub.f32 %v972, %v982
      %v985 = vmul.f32 %v983, 1.442695
      %v986 = vpow.pop %v985
      %v987 = vmul.f32 %v984, 1.442695
      %v988 = vpow.pop %v987
      %v989 = vsel %vm881, %v986, 0.0
      %990 = vadd.xlane.f32.xlu0 %v989
      %v991 = vpop.xlane.xlu0 %990
      %v992 = vsel %vm881, %v988, 0.0
      %993 = vadd.xlane.f32.xlu0 %v992
      %v994 = vpop.xlane.xlu0 %993
      %v995 = vrcp.pop %v991
      %v996 = vrcp.pop %v994
      %v997 = vmul.f32 %v986, %v995
      %v998 = vmul.f32 %v988, %v996
      %v999 = vpack.c.bf16 %v997, %v997
      %v1000 = vpack.c.bf16 %v998, %v998
      %1001 = vrot.lane.b32.xlu0 %v876, 64
      %v1002 = vpop.permute.xlu0 %1001
      %v1004 = vsel %vm881, %v999, 0
      %vm1006 = vcmask 1043456
      %v1008 = vsel %vm1006, %v1002, 0
      %1010 = vmatprep.subr.bf16.mxu0 0
      %1011 = vmatpush1.bf16.msra.mxu0 %v1008
      %1012 = vmatprep.subr.bf16.mxu0 0
      %1013 = vmatpush1.bf16.msra.mxu0 0
      %1014 = vmatprep.subr.bf16.mxu0 0
      %1015 = vmatpush1.bf16.msra.mxu0 0
      %1016 = vmatprep.subr.bf16.mxu0 0
      %1017 = vmatpush1.bf16.msra.mxu0 0
      %1018 = vmatprep.subr.bf16.mxu0 0
      %1019 = vmatpush1.bf16.msra.mxu0 0
      %1020 = vmatprep.subr.bf16.mxu0 0
      %1021 = vmatpush1.bf16.msra.mxu0 0
      %1022 = vmatprep.subr.bf16.mxu0 0
      %1023 = vmatpush1.bf16.msra.mxu0 0
      %1024 = vmatprep.subr.bf16.mxu0 0
      %1025 = vmatpush1.bf16.msra.mxu0 0
      %1026 = vmatprep.subr.bf16.mxu0 0
      %1027 = vmatpush1.bf16.msra.mxu0 0
      %1028 = vmatprep.subr.bf16.mxu0 0
      %1029 = vmatpush1.bf16.msra.mxu0 0
      %1030 = vmatprep.subr.bf16.mxu0 0
      %1031 = vmatpush1.bf16.msra.mxu0 0
      %1032 = vmatprep.subr.bf16.mxu0 0
      %1033 = vmatpush1.bf16.msra.mxu0 0
      %1034 = vmatprep.subr.bf16.mxu0 0
      %1035 = vmatpush1.bf16.msra.mxu0 0
      %1036 = vmatprep.subr.bf16.mxu0 0
      %1037 = vmatpush1.bf16.msra.mxu0 0
      %1038 = vmatprep.subr.bf16.mxu0 0
      %1039 = vmatpush1.bf16.msra.mxu0 0
      %1040 = vmatprep.subr.bf16.mxu0 0
      %1041 = vmatpush1.bf16.msra.mxu0 0
      %1042 = vmatprep.mubr.bf16.mxu0 0
      %1043 = vmatmul.mubr.bf16.gmra.mrb[0].mxu0 %v1004
      %v1044 = vpop.f32.mrb[0].mxu0
      %v1045 = vadd.f32 0.0, %v1044
      %v1046 = vpop.f32.mrb[0].mxu0
      %v1047 = vpop.f32.mrb[0].mxu0
      %v1048 = vpop.f32.mrb[0].mxu0
      %1049 = vdwg.mxu0
      %1050 = vrot.lane.b32.xlu0 %v877, 64
      %v1051 = vpop.permute.xlu0 %1050
      %v1053 = vsel %vm881, %v1000, 0
      %v1056 = vsel %vm1006, %v1051, 0
      %1058 = vmatprep.subr.bf16.mxu0 0
      %1059 = vmatpush1.bf16.msra.mxu0 %v1056
      %1060 = vmatprep.subr.bf16.mxu0 0
      %1061 = vmatpush1.bf16.msra.mxu0 0
      %1062 = vmatprep.subr.bf16.mxu0 0
      %1063 = vmatpush1.bf16.msra.mxu0 0
      %1064 = vmatprep.subr.bf16.mxu0 0
      %1065 = vmatpush1.bf16.msra.mxu0 0
      %1066 = vmatprep.subr.bf16.mxu0 0
      %1067 = vmatpush1.bf16.msra.mxu0 0
      %1068 = vmatprep.subr.bf16.mxu0 0
      %1069 = vmatpush1.bf16.msra.mxu0 0
      %1070 = vmatprep.subr.bf16.mxu0 0
      %1071 = vmatpush1.bf16.msra.mxu0 0
      %1072 = vmatprep.subr.bf16.mxu0 0
      %1073 = vmatpush1.bf16.msra.mxu0 0
      %1074 = vmatprep.subr.bf16.mxu0 0
      %1075 = vmatpush1.bf16.msra.mxu0 0
      %1076 = vmatprep.subr.bf16.mxu0 0
      %1077 = vmatpush1.bf16.msra.mxu0 0
      %1078 = vmatprep.subr.bf16.mxu0 0
      %1079 = vmatpush1.bf16.msra.mxu0 0
      %1080 = vmatprep.subr.bf16.mxu0 0
      %1081 = vmatpush1.bf16.msra.mxu0 0
      %1082 = vmatprep.subr.bf16.mxu0 0
      %1083 = vmatpush1.bf16.msra.mxu0 0
      %1084 = vmatprep.subr.bf16.mxu0 0
      %1085 = vmatpush1.bf16.msra.mxu0 0
      %1086 = vmatprep.subr.bf16.mxu0 0
      %1087 = vmatpush1.bf16.msra.mxu0 0
      %1088 = vmatprep.subr.bf16.mxu0 0
      %1089 = vmatpush1.bf16.msra.mxu0 0
      %1090 = vmatprep.mubr.bf16.mxu0 0
      %1091 = vmatmul.mubr.bf16.gmra.mrb[0].mxu0 %v1053
      %v1092 = vpop.f32.mrb[0].mxu0
      %v1093 = vadd.f32 0.0, %v1092
      %v1094 = vpop.f32.mrb[0].mxu0
      %v1095 = vpop.f32.mrb[0].mxu0
      %v1096 = vpop.f32.mrb[0].mxu0
      %1097 = vdwg.mxu0
      %1098 = vst.msk [vmem:[#allocation3] sm:$0xff] %vm881, %v1045
      %1099 = vst.msk [vmem:[#allocation3 + $0x8] sm:$0xff] %vm881, %v1093
      %1100 = vrot.lane.b32.xlu0 %v876, 120
      %v1101 = vpop.permute.xlu0 %1100
      %1102 = vrot.lane.b32.xlu0 %v876, 88
      %v1103 = vpop.permute.xlu0 %1102
      %v1105 = vsel %vm881, %v1101, 0
      %v1108 = vsel %vm881, %v1103, 0
      %1110 = vmatprep.subr.bf16.mxu0 0
      %1111 = vmatpush1.bf16.xpose.msra.mxu0 %v1108
      %1112 = vmatprep.subr.bf16.mxu0 0
      %1113 = vmatpush1.bf16.xpose.msra.mxu0 0
      %1114 = vmatprep.subr.bf16.mxu0 0
      %1115 = vmatpush1.bf16.xpose.msra.mxu0 0
      %1116 = vmatprep.subr.bf16.mxu0 0
      %1117 = vmatpush1.bf16.xpose.msra.mxu0 0
      %1118 = vmatprep.subr.bf16.mxu0 0
      %1119 = vmatpush1.bf16.xpose.msra.mxu0 0
      %1120 = vmatprep.subr.bf16.mxu0 0
      %1121 = vmatpush1.bf16.xpose.msra.mxu0 0
      %1122 = vmatprep.subr.bf16.mxu0 0
      %1123 = vmatpush1.bf16.xpose.msra.mxu0 0
      %1124 = vmatprep.subr.bf16.mxu0 0
      %1125 = vmatpush1.bf16.xpose.msra.mxu0 0
      %1126 = vmatprep.subr.bf16.mxu0 0
      %1127 = vmatpush1.bf16.xpose.msra.mxu0 0
      %1128 = vmatprep.subr.bf16.mxu0 0
      %1129 = vmatpush1.bf16.xpose.msra.mxu0 0
      %1130 = vmatprep.subr.bf16.mxu0 0
      %1131 = vmatpush1.bf16.xpose.msra.mxu0 0
      %1132 = vmatprep.subr.bf16.mxu0 0
      %1133 = vmatpush1.bf16.xpose.msra.mxu0 0
      %1134 = vmatprep.subr.bf16.mxu0 0
      %1135 = vmatpush1.bf16.xpose.msra.mxu0 0
      %1136 = vmatprep.subr.bf16.mxu0 0
      %1137 = vmatpush1.bf16.xpose.msra.mxu0 0
      %1138 = vmatprep.subr.bf16.mxu0 0
      %1139 = vmatpush1.bf16.xpose.msra.mxu0 0
      %1140 = vmatprep.subr.bf16.mxu0 0
      %1141 = vmatpush1.bf16.xpose.msra.mxu0 0
      %1142 = vmatprep.mubr.bf16.mxu0 0
      %1143 = vmatmul.mubr.bf16.gmra.mrb[0].mxu0 %v1105
      %v1144 = vpop.f32.mrb[0].mxu0
      %v1145 = vadd.f32 0.0, %v1144
      %v1146 = vpop.f32.mrb[0].mxu0
      %v1147 = vpop.f32.mrb[0].mxu0
      %v1148 = vpop.f32.mrb[0].mxu0
      %1149 = vdwg.mxu0
      %1150 = vrot.lane.b32.xlu0 %v877, 120
      %v1151 = vpop.permute.xlu0 %1150
      %1152 = vrot.lane.b32.xlu0 %v877, 88
      %v1153 = vpop.permute.xlu0 %1152
      %v1155 = vsel %vm881, %v1151, 0
      %v1158 = vsel %vm881, %v1153, 0
      %1160 = vmatprep.subr.bf16.mxu0 0
      %1161 = vmatpush1.bf16.xpose.msra.mxu0 %v1158
      %1162 = vmatprep.subr.bf16.mxu0 0
      %1163 = vmatpush1.bf16.xpose.msra.mxu0 0
      %1164 = vmatprep.subr.bf16.mxu0 0
      %1165 = vmatpush1.bf16.xpose.msra.mxu0 0
      %1166 = vmatprep.subr.bf16.mxu0 0
      %1167 = vmatpush1.bf16.xpose.msra.mxu0 0
      %1168 = vmatprep.subr.bf16.mxu0 0
      %1169 = vmatpush1.bf16.xpose.msra.mxu0 0
      %1170 = vmatprep.subr.bf16.mxu0 0
      %1171 = vmatpush1.bf16.xpose.msra.mxu0 0
      %1172 = vmatprep.subr.bf16.mxu0 0
      %1173 = vmatpush1.bf16.xpose.msra.mxu0 0
      %1174 = vmatprep.subr.bf16.mxu0 0
      %1175 = vmatpush1.bf16.xpose.msra.mxu0 0
      %1176 = vmatprep.subr.bf16.mxu0 0
      %1177 = vmatpush1.bf16.xpose.msra.mxu0 0
      %1178 = vmatprep.subr.bf16.mxu0 0
      %1179 = vmatpush1.bf16.xpose.msra.mxu0 0
      %1180 = vmatprep.subr.bf16.mxu0 0
      %1181 = vmatpush1.bf16.xpose.msra.mxu0 0
      %1182 = vmatprep.subr.bf16.mxu0 0
      %1183 = vmatpush1.bf16.xpose.msra.mxu0 0
      %1184 = vmatprep.subr.bf16.mxu0 0
      %1185 = vmatpush1.bf16.xpose.msra.mxu0 0
      %1186 = vmatprep.subr.bf16.mxu0 0
      %1187 = vmatpush1.bf16.xpose.msra.mxu0 0
      %1188 = vmatprep.subr.bf16.mxu0 0
      %1189 = vmatpush1.bf16.xpose.msra.mxu0 0
      %1190 = vmatprep.subr.bf16.mxu0 0
      %1191 = vmatpush1.bf16.xpose.msra.mxu0 0
      %1192 = vmatprep.mubr.bf16.mxu0 0
      %1193 = vmatmul.mubr.bf16.gmra.mrb[0].mxu0 %v1155
      %v1194 = vpop.f32.mrb[0].mxu0
      %v1195 = vadd.f32 0.0, %v1194
      %v1196 = vpop.f32.mrb[0].mxu0
      %v1197 = vpop.f32.mrb[0].mxu0
      %v1198 = vpop.f32.mrb[0].mxu0
      %1199 = vdwg.mxu0
      %v1200 = vsel %vm881, %v1145, -inf
      %1201 = vmax.xlane.f32.xlu0 %v1200
      %v1202 = vpop.xlane.xlu0 %1201
      %v1203 = vsel %vm881, %v1195, -inf
      %1204 = vmax.xlane.f32.xlu0 %v1203
      %v1205 = vpop.xlane.xlu0 %1204
      %v1206 = vsub.f32 %v1145, %v1202
      %v1207 = vsub.f32 %v1195, %v1205
      %v1208 = vmul.f32 %v1206, 1.442695
      %v1209 = vpow.pop %v1208
      %v1210 = vmul.f32 %v1207, 1.442695
      %v1211 = vpow.pop %v1210
      %v1212 = vsel %vm881, %v1209, 0.0
      %1213 = vadd.xlane.f32.xlu0 %v1212
      %v1214 = vpop.xlane.xlu0 %1213
      %v1215 = vsel %vm881, %v1211, 0.0
      %1216 = vadd.xlane.f32.xlu0 %v1215
      %v1217 = vpop.xlane.xlu0 %1216
      %v1218 = vrcp.pop %v1214
      %v1219 = vrcp.pop %v1217
      %v1220 = vmul.f32 %v1209, %v1218
      %v1221 = vmul.f32 %v1211, %v1219
      %v1222 = vpack.c.bf16 %v1220, %v1220
      %v1223 = vpack.c.bf16 %v1221, %v1221
      %1224 = vrot.lane.b32.xlu0 %v876, 56
      %v1225 = vpop.permute.xlu0 %1224
      %v1227 = vsel %vm881, %v1222, 0
      %v1230 = vsel %vm1006, %v1225, 0
      %1232 = vmatprep.subr.bf16.mxu0 0
      %1233 = vmatpush1.bf16.msra.mxu0 %v1230
      %1234 = vmatprep.subr.bf16.mxu0 0
      %1235 = vmatpush1.bf16.msra.mxu0 0
      %1236 = vmatprep.subr.bf16.mxu0 0
      %1237 = vmatpush1.bf16.msra.mxu0 0
      %1238 = vmatprep.subr.bf16.mxu0 0
      %1239 = vmatpush1.bf16.msra.mxu0 0
      %1240 = vmatprep.subr.bf16.mxu0 0
      %1241 = vmatpush1.bf16.msra.mxu0 0
      %1242 = vmatprep.subr.bf16.mxu0 0
      %1243 = vmatpush1.bf16.msra.mxu0 0
      %1244 = vmatprep.subr.bf16.mxu0 0
      %1245 = vmatpush1.bf16.msra.mxu0 0
      %1246 = vmatprep.subr.bf16.mxu0 0
      %1247 = vmatpush1.bf16.msra.mxu0 0
      %1248 = vmatprep.subr.bf16.mxu0 0
      %1249 = vmatpush1.bf16.msra.mxu0 0
      %1250 = vmatprep.subr.bf16.mxu0 0
      %1251 = vmatpush1.bf16.msra.mxu0 0
      %1252 = vmatprep.subr.bf16.mxu0 0
      %1253 = vmatpush1.bf16.msra.mxu0 0
      %1254 = vmatprep.subr.bf16.mxu0 0
      %1255 = vmatpush1.bf16.msra.mxu0 0
      %1256 = vmatprep.subr.bf16.mxu0 0
      %1257 = vmatpush1.bf16.msra.mxu0 0
      %1258 = vmatprep.subr.bf16.mxu0 0
      %1259 = vmatpush1.bf16.msra.mxu0 0
      %1260 = vmatprep.subr.bf16.mxu0 0
      %1261 = vmatpush1.bf16.msra.mxu0 0
      %1262 = vmatprep.subr.bf16.mxu0 0
      %1263 = vmatpush1.bf16.msra.mxu0 0
      %1264 = vmatprep.mubr.bf16.mxu0 0
      %1265 = vmatmul.mubr.bf16.gmra.mrb[0].mxu0 %v1227
      %v1266 = vpop.f32.mrb[0].mxu0
      %v1267 = vadd.f32 0.0, %v1266
      %v1268 = vpop.f32.mrb[0].mxu0
      %v1269 = vpop.f32.mrb[0].mxu0
      %v1270 = vpop.f32.mrb[0].mxu0
      %1271 = vdwg.mxu0
      %1272 = vrot.lane.b32.xlu0 %v877, 56
      %v1273 = vpop.permute.xlu0 %1272
      %v1275 = vsel %vm881, %v1223, 0
      %v1278 = vsel %vm1006, %v1273, 0
      %1280 = vmatprep.subr.bf16.mxu0 0
      %1281 = vmatpush1.bf16.msra.mxu0 %v1278
      %1282 = vmatprep.subr.bf16.mxu0 0
      %1283 = vmatpush1.bf16.msra.mxu0 0
      %1284 = vmatprep.subr.bf16.mxu0 0
      %1285 = vmatpush1.bf16.msra.mxu0 0
      %1286 = vmatprep.subr.bf16.mxu0 0
      %1287 = vmatpush1.bf16.msra.mxu0 0
      %1288 = vmatprep.subr.bf16.mxu0 0
      %1289 = vmatpush1.bf16.msra.mxu0 0
      %1290 = vmatprep.subr.bf16.mxu0 0
      %1291 = vmatpush1.bf16.msra.mxu0 0
      %1292 = vmatprep.subr.bf16.mxu0 0
      %1293 = vmatpush1.bf16.msra.mxu0 0
      %1294 = vmatprep.subr.bf16.mxu0 0
      %1295 = vmatpush1.bf16.msra.mxu0 0
      %1296 = vmatprep.subr.bf16.mxu0 0
      %1297 = vmatpush1.bf16.msra.mxu0 0
      %1298 = vmatprep.subr.bf16.mxu0 0
      %1299 = vmatpush1.bf16.msra.mxu0 0
      %1300 = vmatprep.subr.bf16.mxu0 0
      %1301 = vmatpush1.bf16.msra.mxu0 0
      %1302 = vmatprep.subr.bf16.mxu0 0
      %1303 = vmatpush1.bf16.msra.mxu0 0
      %1304 = vmatprep.subr.bf16.mxu0 0
      %1305 = vmatpush1.bf16.msra.mxu0 0
      %1306 = vmatprep.subr.bf16.mxu0 0
      %1307 = vmatpush1.bf16.msra.mxu0 0
      %1308 = vmatprep.subr.bf16.mxu0 0
      %1309 = vmatpush1.bf16.msra.mxu0 0
      %1310 = vmatprep.subr.bf16.mxu0 0
      %1311 = vmatpush1.bf16.msra.mxu0 0
      %1312 = vmatprep.mubr.bf16.mxu0 0
      %1313 = vmatmul.mubr.bf16.gmra.mrb[0].mxu0 %v1275
      %v1314 = vpop.f32.mrb[0].mxu0
      %v1315 = vadd.f32 0.0, %v1314
      %v1316 = vpop.f32.mrb[0].mxu0
      %v1317 = vpop.f32.mrb[0].mxu0
      %v1318 = vpop.f32.mrb[0].mxu0
      %1319 = vdwg.mxu0
      %1322 = vrot.lane.b32.xlu0 %v1267, 8
      %v1323 = vpop.permute.xlu0 %1322
      %1324 = vrot.lane.b32.xlu0 %v1315, 8
      %v1325 = vpop.permute.xlu0 %1324
      %vm1328 = vcmask 130112
      %1329 = vst.msk [vmem:[#allocation3] sm:$0xff] %vm1328, %v1323
      %1330 = vst.msk [vmem:[#allocation3 + $0x8] sm:$0xff] %vm1328, %v1325
      %1331 = vrot.lane.b32.xlu0 %v876, 112
      %v1332 = vpop.permute.xlu0 %1331
      %1333 = vrot.lane.b32.xlu0 %v876, 80
      %v1334 = vpop.permute.xlu0 %1333
      %v1336 = vsel %vm881, %v1332, 0
      %v1339 = vsel %vm881, %v1334, 0
      %1341 = vmatprep.subr.bf16.mxu0 0
      %1342 = vmatpush1.bf16.xpose.msra.mxu0 %v1339
      %1343 = vmatprep.subr.bf16.mxu0 0
      %1344 = vmatpush1.bf16.xpose.msra.mxu0 0
      %1345 = vmatprep.subr.bf16.mxu0 0
      %1346 = vmatpush1.bf16.xpose.msra.mxu0 0
      %1347 = vmatprep.subr.bf16.mxu0 0
      %1348 = vmatpush1.bf16.xpose.msra.mxu0 0
      %1349 = vmatprep.subr.bf16.mxu0 0
      %1350 = vmatpush1.bf16.xpose.msra.mxu0 0
      %1351 = vmatprep.subr.bf16.mxu0 0
      %1352 = vmatpush1.bf16.xpose.msra.mxu0 0
      %1353 = vmatprep.subr.bf16.mxu0 0
      %1354 = vmatpush1.bf16.xpose.msra.mxu0 0
      %1355 = vmatprep.subr.bf16.mxu0 0
      %1356 = vmatpush1.bf16.xpose.msra.mxu0 0
      %1357 = vmatprep.subr.bf16.mxu0 0
      %1358 = vmatpush1.bf16.xpose.msra.mxu0 0
      %1359 = vmatprep.subr.bf16.mxu0 0
      %1360 = vmatpush1.bf16.xpose.msra.mxu0 0
      %1361 = vmatprep.subr.bf16.mxu0 0
      %1362 = vmatpush1.bf16.xpose.msra.mxu0 0
      %1363 = vmatprep.subr.bf16.mxu0 0
      %1364 = vmatpush1.bf16.xpose.msra.mxu0 0
      %1365 = vmatprep.subr.bf16.mxu0 0
      %1366 = vmatpush1.bf16.xpose.msra.mxu0 0
      %1367 = vmatprep.subr.bf16.mxu0 0
      %1368 = vmatpush1.bf16.xpose.msra.mxu0 0
      %1369 = vmatprep.subr.bf16.mxu0 0
      %1370 = vmatpush1.bf16.xpose.msra.mxu0 0
      %1371 = vmatprep.subr.bf16.mxu0 0
      %1372 = vmatpush1.bf16.xpose.msra.mxu0 0
      %1373 = vmatprep.mubr.bf16.mxu0 0
      %1374 = vmatmul.mubr.bf16.gmra.mrb[0].mxu0 %v1336
      %v1375 = vpop.f32.mrb[0].mxu0
      %v1376 = vadd.f32 0.0, %v1375
      %v1377 = vpop.f32.mrb[0].mxu0
      %v1378 = vpop.f32.mrb[0].mxu0
      %v1379 = vpop.f32.mrb[0].mxu0
      %1380 = vdwg.mxu0
      %1381 = vrot.lane.b32.xlu0 %v877, 112
      %v1382 = vpop.permute.xlu0 %1381
      %1383 = vrot.lane.b32.xlu0 %v877, 80
      %v1384 = vpop.permute.xlu0 %1383
      %v1386 = vsel %vm881, %v1382, 0
      %v1389 = vsel %vm881, %v1384, 0
      %1391 = vmatprep.subr.bf16.mxu0 0
      %1392 = vmatpush1.bf16.xpose.msra.mxu0 %v1389
      %1393 = vmatprep.subr.bf16.mxu0 0
      %1394 = vmatpush1.bf16.xpose.msra.mxu0 0
      %1395 = vmatprep.subr.bf16.mxu0 0
      %1396 = vmatpush1.bf16.xpose.msra.mxu0 0
      %1397 = vmatprep.subr.bf16.mxu0 0
      %1398 = vmatpush1.bf16.xpose.msra.mxu0 0
      %1399 = vmatprep.subr.bf16.mxu0 0
      %1400 = vmatpush1.bf16.xpose.msra.mxu0 0
      %1401 = vmatprep.subr.bf16.mxu0 0
      %1402 = vmatpush1.bf16.xpose.msra.mxu0 0
      %1403 = vmatprep.subr.bf16.mxu0 0
      %1404 = vmatpush1.bf16.xpose.msra.mxu0 0
      %1405 = vmatprep.subr.bf16.mxu0 0
      %1406 = vmatpush1.bf16.xpose.msra.mxu0 0
      %1407 = vmatprep.subr.bf16.mxu0 0
      %1408 = vmatpush1.bf16.xpose.msra.mxu0 0
      %1409 = vmatprep.subr.bf16.mxu0 0
      %1410 = vmatpush1.bf16.xpose.msra.mxu0 0
      %1411 = vmatprep.subr.bf16.mxu0 0
      %1412 = vmatpush1.bf16.xpose.msra.mxu0 0
      %1413 = vmatprep.subr.bf16.mxu0 0
      %1414 = vmatpush1.bf16.xpose.msra.mxu0 0
      %1415 = vmatprep.subr.bf16.mxu0 0
      %1416 = vmatpush1.bf16.xpose.msra.mxu0 0
      %1417 = vmatprep.subr.bf16.mxu0 0
      %1418 = vmatpush1.bf16.xpose.msra.mxu0 0
      %1419 = vmatprep.subr.bf16.mxu0 0
      %1420 = vmatpush1.bf16.xpose.msra.mxu0 0
      %1421 = vmatprep.subr.bf16.mxu0 0
      %1422 = vmatpush1.bf16.xpose.msra.mxu0 0
      %1423 = vmatprep.mubr.bf16.mxu0 0
      %1424 = vmatmul.mubr.bf16.gmra.mrb[0].mxu0 %v1386
      %v1425 = vpop.f32.mrb[0].mxu0
      %v1426 = vadd.f32 0.0, %v1425
      %v1427 = vpop.f32.mrb[0].mxu0
      %v1428 = vpop.f32.mrb[0].mxu0
      %v1429 = vpop.f32.mrb[0].mxu0
      %1430 = vdwg.mxu0
      %v1431 = vsel %vm881, %v1376, -inf
      %1432 = vmax.xlane.f32.xlu0 %v1431
      %v1433 = vpop.xlane.xlu0 %1432
      %v1434 = vsel %vm881, %v1426, -inf
      %1435 = vmax.xlane.f32.xlu0 %v1434
      %v1436 = vpop.xlane.xlu0 %1435
      %v1437 = vsub.f32 %v1376, %v1433
      %v1438 = vsub.f32 %v1426, %v1436
      %v1439 = vmul.f32 %v1437, 1.442695
      %v1440 = vpow.pop %v1439
      %v1441 = vmul.f32 %v1438, 1.442695
      %v1442 = vpow.pop %v1441
      %v1443 = vsel %vm881, %v1440, 0.0
      %1444 = vadd.xlane.f32.xlu0 %v1443
      %v1445 = vpop.xlane.xlu0 %1444
      %v1446 = vsel %vm881, %v1442, 0.0
      %1447 = vadd.xlane.f32.xlu0 %v1446
      %v1448 = vpop.xlane.xlu0 %1447
      %v1449 = vrcp.pop %v1445
      %v1450 = vrcp.pop %v1448
      %v1451 = vmul.f32 %v1440, %v1449
      %v1452 = vmul.f32 %v1442, %v1450
      %v1453 = vpack.c.bf16 %v1451, %v1451
      %v1454 = vpack.c.bf16 %v1452, %v1452
      %1455 = vrot.lane.b32.xlu0 %v876, 48
      %v1456 = vpop.permute.xlu0 %1455
      %v1458 = vsel %vm881, %v1453, 0
      %v1461 = vsel %vm1006, %v1456, 0
      %1463 = vmatprep.subr.bf16.mxu0 0
      %1464 = vmatpush1.bf16.msra.mxu0 %v1461
      %1465 = vmatprep.subr.bf16.mxu0 0
      %1466 = vmatpush1.bf16.msra.mxu0 0
      %1467 = vmatprep.subr.bf16.mxu0 0
      %1468 = vmatpush1.bf16.msra.mxu0 0
      %1469 = vmatprep.subr.bf16.mxu0 0
      %1470 = vmatpush1.bf16.msra.mxu0 0
      %1471 = vmatprep.subr.bf16.mxu0 0
      %1472 = vmatpush1.bf16.msra.mxu0 0
      %1473 = vmatprep.subr.bf16.mxu0 0
      %1474 = vmatpush1.bf16.msra.mxu0 0
      %1475 = vmatprep.subr.bf16.mxu0 0
      %1476 = vmatpush1.bf16.msra.mxu0 0
      %1477 = vmatprep.subr.bf16.mxu0 0
      %1478 = vmatpush1.bf16.msra.mxu0 0
      %1479 = vmatprep.subr.bf16.mxu0 0
      %1480 = vmatpush1.bf16.msra.mxu0 0
      %1481 = vmatprep.subr.bf16.mxu0 0
      %1482 = vmatpush1.bf16.msra.mxu0 0
      %1483 = vmatprep.subr.bf16.mxu0 0
      %1484 = vmatpush1.bf16.msra.mxu0 0
      %1485 = vmatprep.subr.bf16.mxu0 0
      %1486 = vmatpush1.bf16.msra.mxu0 0
      %1487 = vmatprep.subr.bf16.mxu0 0
      %1488 = vmatpush1.bf16.msra.mxu0 0
      %1489 = vmatprep.subr.bf16.mxu0 0
      %1490 = vmatpush1.bf16.msra.mxu0 0
      %1491 = vmatprep.subr.bf16.mxu0 0
      %1492 = vmatpush1.bf16.msra.mxu0 0
      %1493 = vmatprep.subr.bf16.mxu0 0
      %1494 = vmatpush1.bf16.msra.mxu0 0
      %1495 = vmatprep.mubr.bf16.mxu0 0
      %1496 = vmatmul.mubr.bf16.gmra.mrb[0].mxu0 %v1458
      %v1497 = vpop.f32.mrb[0].mxu0
      %v1498 = vadd.f32 0.0, %v1497
      %v1499 = vpop.f32.mrb[0].mxu0
      %v1500 = vpop.f32.mrb[0].mxu0
      %v1501 = vpop.f32.mrb[0].mxu0
      %1502 = vdwg.mxu0
      %1503 = vrot.lane.b32.xlu0 %v877, 48
      %v1504 = vpop.permute.xlu0 %1503
      %v1506 = vsel %vm881, %v1454, 0
      %v1509 = vsel %vm1006, %v1504, 0
      %1511 = vmatprep.subr.bf16.mxu0 0
      %1512 = vmatpush1.bf16.msra.mxu0 %v1509
      %1513 = vmatprep.subr.bf16.mxu0 0
      %1514 = vmatpush1.bf16.msra.mxu0 0
      %1515 = vmatprep.subr.bf16.mxu0 0
      %1516 = vmatpush1.bf16.msra.mxu0 0
      %1517 = vmatprep.subr.bf16.mxu0 0
      %1518 = vmatpush1.bf16.msra.mxu0 0
      %1519 = vmatprep.subr.bf16.mxu0 0
      %1520 = vmatpush1.bf16.msra.mxu0 0
      %1521 = vmatprep.subr.bf16.mxu0 0
      %1522 = vmatpush1.bf16.msra.mxu0 0
      %1523 = vmatprep.subr.bf16.mxu0 0
      %1524 = vmatpush1.bf16.msra.mxu0 0
      %1525 = vmatprep.subr.bf16.mxu0 0
      %1526 = vmatpush1.bf16.msra.mxu0 0
      %1527 = vmatprep.subr.bf16.mxu0 0
      %1528 = vmatpush1.bf16.msra.mxu0 0
      %1529 = vmatprep.subr.bf16.mxu0 0
      %1530 = vmatpush1.bf16.msra.mxu0 0
      %1531 = vmatprep.subr.bf16.mxu0 0
      %1532 = vmatpush1.bf16.msra.mxu0 0
      %1533 = vmatprep.subr.bf16.mxu0 0
      %1534 = vmatpush1.bf16.msra.mxu0 0
      %1535 = vmatprep.subr.bf16.mxu0 0
      %1536 = vmatpush1.bf16.msra.mxu0 0
      %1537 = vmatprep.subr.bf16.mxu0 0
      %1538 = vmatpush1.bf16.msra.mxu0 0
      %1539 = vmatprep.subr.bf16.mxu0 0
      %1540 = vmatpush1.bf16.msra.mxu0 0
      %1541 = vmatprep.subr.bf16.mxu0 0
      %1542 = vmatpush1.bf16.msra.mxu0 0
      %1543 = vmatprep.mubr.bf16.mxu0 0
      %1544 = vmatmul.mubr.bf16.gmra.mrb[0].mxu0 %v1506
      %v1545 = vpop.f32.mrb[0].mxu0
      %v1546 = vadd.f32 0.0, %v1545
      %v1547 = vpop.f32.mrb[0].mxu0
      %v1548 = vpop.f32.mrb[0].mxu0
      %v1549 = vpop.f32.mrb[0].mxu0
      %1550 = vdwg.mxu0
      %1553 = vrot.lane.b32.xlu0 %v1498, 16
      %v1554 = vpop.permute.xlu0 %1553
      %1555 = vrot.lane.b32.xlu0 %v1546, 16
      %v1556 = vpop.permute.xlu0 %1555
      %vm1559 = vcmask 195712
      %1560 = vst.msk [vmem:[#allocation3] sm:$0xff] %vm1559, %v1554
      %1561 = vst.msk [vmem:[#allocation3 + $0x8] sm:$0xff] %vm1559, %v1556
      %1562 = vrot.lane.b32.xlu0 %v876, 104
      %v1563 = vpop.permute.xlu0 %1562
      %1564 = vrot.lane.b32.xlu0 %v876, 72
      %v1565 = vpop.permute.xlu0 %1564
      %v1567 = vsel %vm881, %v1563, 0
      %v1570 = vsel %vm881, %v1565, 0
      %1572 = vmatprep.subr.bf16.mxu0 0
      %1573 = vmatpush1.bf16.xpose.msra.mxu0 %v1570
      %1574 = vmatprep.subr.bf16.mxu0 0
      %1575 = vmatpush1.bf16.xpose.msra.mxu0 0
      %1576 = vmatprep.subr.bf16.mxu0 0
      %1577 = vmatpush1.bf16.xpose.msra.mxu0 0
      %1578 = vmatprep.subr.bf16.mxu0 0
      %1579 = vmatpush1.bf16.xpose.msra.mxu0 0
      %1580 = vmatprep.subr.bf16.mxu0 0
      %1581 = vmatpush1.bf16.xpose.msra.mxu0 0
      %1582 = vmatprep.subr.bf16.mxu0 0
      %1583 = vmatpush1.bf16.xpose.msra.mxu0 0
      %1584 = vmatprep.subr.bf16.mxu0 0
      %1585 = vmatpush1.bf16.xpose.msra.mxu0 0
      %1586 = vmatprep.subr.bf16.mxu0 0
      %1587 = vmatpush1.bf16.xpose.msra.mxu0 0
      %1588 = vmatprep.subr.bf16.mxu0 0
      %1589 = vmatpush1.bf16.xpose.msra.mxu0 0
      %1590 = vmatprep.subr.bf16.mxu0 0
      %1591 = vmatpush1.bf16.xpose.msra.mxu0 0
      %1592 = vmatprep.subr.bf16.mxu0 0
      %1593 = vmatpush1.bf16.xpose.msra.mxu0 0
      %1594 = vmatprep.subr.bf16.mxu0 0
      %1595 = vmatpush1.bf16.xpose.msra.mxu0 0
      %1596 = vmatprep.subr.bf16.mxu0 0
      %1597 = vmatpush1.bf16.xpose.msra.mxu0 0
      %1598 = vmatprep.subr.bf16.mxu0 0
      %1599 = vmatpush1.bf16.xpose.msra.mxu0 0
      %1600 = vmatprep.subr.bf16.mxu0 0
      %1601 = vmatpush1.bf16.xpose.msra.mxu0 0
      %1602 = vmatprep.subr.bf16.mxu0 0
      %1603 = vmatpush1.bf16.xpose.msra.mxu0 0
      %1604 = vmatprep.mubr.bf16.mxu0 0
      %1605 = vmatmul.mubr.bf16.gmra.mrb[0].mxu0 %v1567
      %v1606 = vpop.f32.mrb[0].mxu0
      %v1607 = vadd.f32 0.0, %v1606
      %v1608 = vpop.f32.mrb[0].mxu0
      %v1609 = vpop.f32.mrb[0].mxu0
      %v1610 = vpop.f32.mrb[0].mxu0
      %1611 = vdwg.mxu0
      %1612 = vrot.lane.b32.xlu0 %v877, 104
      %v1613 = vpop.permute.xlu0 %1612
      %1614 = vrot.lane.b32.xlu0 %v877, 72
      %v1615 = vpop.permute.xlu0 %1614
      %v1617 = vsel %vm881, %v1613, 0
      %v1620 = vsel %vm881, %v1615, 0
      %1622 = vmatprep.subr.bf16.mxu0 0
      %1623 = vmatpush1.bf16.xpose.msra.mxu0 %v1620
      %1624 = vmatprep.subr.bf16.mxu0 0
      %1625 = vmatpush1.bf16.xpose.msra.mxu0 0
      %1626 = vmatprep.subr.bf16.mxu0 0
      %1627 = vmatpush1.bf16.xpose.msra.mxu0 0
      %1628 = vmatprep.subr.bf16.mxu0 0
      %1629 = vmatpush1.bf16.xpose.msra.mxu0 0
      %1630 = vmatprep.subr.bf16.mxu0 0
      %1631 = vmatpush1.bf16.xpose.msra.mxu0 0
      %1632 = vmatprep.subr.bf16.mxu0 0
      %1633 = vmatpush1.bf16.xpose.msra.mxu0 0
      %1634 = vmatprep.subr.bf16.mxu0 0
      %1635 = vmatpush1.bf16.xpose.msra.mxu0 0
      %1636 = vmatprep.subr.bf16.mxu0 0
      %1637 = vmatpush1.bf16.xpose.msra.mxu0 0
      %1638 = vmatprep.subr.bf16.mxu0 0
      %1639 = vmatpush1.bf16.xpose.msra.mxu0 0
      %1640 = vmatprep.subr.bf16.mxu0 0
      %1641 = vmatpush1.bf16.xpose.msra.mxu0 0
      %1642 = vmatprep.subr.bf16.mxu0 0
      %1643 = vmatpush1.bf16.xpose.msra.mxu0 0
      %1644 = vmatprep.subr.bf16.mxu0 0
      %1645 = vmatpush1.bf16.xpose.msra.mxu0 0
      %1646 = vmatprep.subr.bf16.mxu0 0
      %1647 = vmatpush1.bf16.xpose.msra.mxu0 0
      %1648 = vmatprep.subr.bf16.mxu0 0
      %1649 = vmatpush1.bf16.xpose.msra.mxu0 0
      %1650 = vmatprep.subr.bf16.mxu0 0
      %1651 = vmatpush1.bf16.xpose.msra.mxu0 0
      %1652 = vmatprep.subr.bf16.mxu0 0
      %1653 = vmatpush1.bf16.xpose.msra.mxu0 0
      %1654 = vmatprep.mubr.bf16.mxu0 0
      %1655 = vmatmul.mubr.bf16.gmra.mrb[0].mxu0 %v1617
      %v1656 = vpop.f32.mrb[0].mxu0
      %v1657 = vadd.f32 0.0, %v1656
      %v1658 = vpop.f32.mrb[0].mxu0
      %v1659 = vpop.f32.mrb[0].mxu0
      %v1660 = vpop.f32.mrb[0].mxu0
      %1661 = vdwg.mxu0
      %v1662 = vsel %vm881, %v1607, -inf
      %1663 = vmax.xlane.f32.xlu0 %v1662
      %v1664 = vpop.xlane.xlu0 %1663
      %v1665 = vsel %vm881, %v1657, -inf
      %1666 = vmax.xlane.f32.xlu0 %v1665
      %v1667 = vpop.xlane.xlu0 %1666
      %v1668 = vsub.f32 %v1607, %v1664
      %v1669 = vsub.f32 %v1657, %v1667
      %v1670 = vmul.f32 %v1668, 1.442695
      %v1671 = vpow.pop %v1670
      %v1672 = vmul.f32 %v1669, 1.442695
      %v1673 = vpow.pop %v1672
      %v1674 = vsel %vm881, %v1671, 0.0
      %1675 = vadd.xlane.f32.xlu0 %v1674
      %v1676 = vpop.xlane.xlu0 %1675
      %v1677 = vsel %vm881, %v1673, 0.0
      %1678 = vadd.xlane.f32.xlu0 %v1677
      %v1679 = vpop.xlane.xlu0 %1678
      %v1680 = vrcp.pop %v1676
      %v1681 = vrcp.pop %v1679
      %v1682 = vmul.f32 %v1671, %v1680
      %v1683 = vmul.f32 %v1673, %v1681
      %v1684 = vpack.c.bf16 %v1682, %v1682
      %v1685 = vpack.c.bf16 %v1683, %v1683
      %1686 = vrot.lane.b32.xlu0 %v876, 40
      %v1687 = vpop.permute.xlu0 %1686
      %v1689 = vsel %vm881, %v1684, 0
      %v1692 = vsel %vm1006, %v1687, 0
      %1694 = vmatprep.subr.bf16.mxu0 0
      %1695 = vmatpush1.bf16.msra.mxu0 %v1692
      %1696 = vmatprep.subr.bf16.mxu0 0
      %1697 = vmatpush1.bf16.msra.mxu0 0
      %1698 = vmatprep.subr.bf16.mxu0 0
      %1699 = vmatpush1.bf16.msra.mxu0 0
      %1700 = vmatprep.subr.bf16.mxu0 0
      %1701 = vmatpush1.bf16.msra.mxu0 0
      %1702 = vmatprep.subr.bf16.mxu0 0
      %1703 = vmatpush1.bf16.msra.mxu0 0
      %1704 = vmatprep.subr.bf16.mxu0 0
      %1705 = vmatpush1.bf16.msra.mxu0 0
      %1706 = vmatprep.subr.bf16.mxu0 0
      %1707 = vmatpush1.bf16.msra.mxu0 0
      %1708 = vmatprep.subr.bf16.mxu0 0
      %1709 = vmatpush1.bf16.msra.mxu0 0
      %1710 = vmatprep.subr.bf16.mxu0 0
      %1711 = vmatpush1.bf16.msra.mxu0 0
      %1712 = vmatprep.subr.bf16.mxu0 0
      %1713 = vmatpush1.bf16.msra.mxu0 0
      %1714 = vmatprep.subr.bf16.mxu0 0
      %1715 = vmatpush1.bf16.msra.mxu0 0
      %1716 = vmatprep.subr.bf16.mxu0 0
      %1717 = vmatpush1.bf16.msra.mxu0 0
      %1718 = vmatprep.subr.bf16.mxu0 0
      %1719 = vmatpush1.bf16.msra.mxu0 0
      %1720 = vmatprep.subr.bf16.mxu0 0
      %1721 = vmatpush1.bf16.msra.mxu0 0
      %1722 = vmatprep.subr.bf16.mxu0 0
      %1723 = vmatpush1.bf16.msra.mxu0 0
      %1724 = vmatprep.subr.bf16.mxu0 0
      %1725 = vmatpush1.bf16.msra.mxu0 0
      %1726 = vmatprep.mubr.bf16.mxu0 0
      %1727 = vmatmul.mubr.bf16.gmra.mrb[0].mxu0 %v1689
      %v1728 = vpop.f32.mrb[0].mxu0
      %v1729 = vadd.f32 0.0, %v1728
      %v1730 = vpop.f32.mrb[0].mxu0
      %v1731 = vpop.f32.mrb[0].mxu0
      %v1732 = vpop.f32.mrb[0].mxu0
      %1733 = vdwg.mxu0
      %1734 = vrot.lane.b32.xlu0 %v877, 40
      %v1735 = vpop.permute.xlu0 %1734
      %v1737 = vsel %vm881, %v1685, 0
      %v1740 = vsel %vm1006, %v1735, 0
      %1742 = vmatprep.subr.bf16.mxu0 0
      %1743 = vmatpush1.bf16.msra.mxu0 %v1740
      %1744 = vmatprep.subr.bf16.mxu0 0
      %1745 = vmatpush1.bf16.msra.mxu0 0
      %1746 = vmatprep.subr.bf16.mxu0 0
      %1747 = vmatpush1.bf16.msra.mxu0 0
      %1748 = vmatprep.subr.bf16.mxu0 0
      %1749 = vmatpush1.bf16.msra.mxu0 0
      %1750 = vmatprep.subr.bf16.mxu0 0
      %1751 = vmatpush1.bf16.msra.mxu0 0
      %1752 = vmatprep.subr.bf16.mxu0 0
      %1753 = vmatpush1.bf16.msra.mxu0 0
      %1754 = vmatprep.subr.bf16.mxu0 0
      %1755 = vmatpush1.bf16.msra.mxu0 0
      %1756 = vmatprep.subr.bf16.mxu0 0
      %1757 = vmatpush1.bf16.msra.mxu0 0
      %1758 = vmatprep.subr.bf16.mxu0 0
      %1759 = vmatpush1.bf16.msra.mxu0 0
      %1760 = vmatprep.subr.bf16.mxu0 0
      %1761 = vmatpush1.bf16.msra.mxu0 0
      %1762 = vmatprep.subr.bf16.mxu0 0
      %1763 = vmatpush1.bf16.msra.mxu0 0
      %1764 = vmatprep.subr.bf16.mxu0 0
      %1765 = vmatpush1.bf16.msra.mxu0 0
      %1766 = vmatprep.subr.bf16.mxu0 0
      %1767 = vmatpush1.bf16.msra.mxu0 0
      %1768 = vmatprep.subr.bf16.mxu0 0
      %1769 = vmatpush1.bf16.msra.mxu0 0
      %1770 = vmatprep.subr.bf16.mxu0 0
      %1771 = vmatpush1.bf16.msra.mxu0 0
      %1772 = vmatprep.subr.bf16.mxu0 0
      %1773 = vmatpush1.bf16.msra.mxu0 0
      %1774 = vmatprep.mubr.bf16.mxu0 0
      %1775 = vmatmul.mubr.bf16.gmra.mrb[0].mxu0 %v1737
      %v1776 = vpop.f32.mrb[0].mxu0
      %v1777 = vadd.f32 0.0, %v1776
      %v1778 = vpop.f32.mrb[0].mxu0
      %v1779 = vpop.f32.mrb[0].mxu0
      %v1780 = vpop.f32.mrb[0].mxu0
      %1781 = vdwg.mxu0
      %1784 = vrot.lane.b32.xlu0 %v1729, 24
      %v1785 = vpop.permute.xlu0 %1784
      %1786 = vrot.lane.b32.xlu0 %v1777, 24
      %v1787 = vpop.permute.xlu0 %1786
      %vm1790 = vcmask 261312
      %1791 = vst.msk [vmem:[#allocation3] sm:$0xff] %vm1790, %v1785
      %1792 = vst.msk [vmem:[#allocation3 + $0x8] sm:$0xff] %vm1790, %v1787
      %v1793 = vld [vmem:[#allocation3] sm:$0xff]
      %v1794 = vld [vmem:[#allocation3 + $0x8] sm:$0xff]
      %v1795 = vpack.c.bf16 %v1794, %v1793
      %v1796 = vld [vmem:[%s720] sm:$0xf]
      %v1797 = vld [vmem:[%s720 + $0x4] sm:$0xf]
      %v1798 = vld [vmem:[%s720 + $0x8] sm:$0xf]
      %v1799 = vld [vmem:[%s720 + $0xc] sm:$0xf]
      %v1800 = vld [vmem:[%s727] sm:$0x1]
      %v1802 = vlaneseq
      %v1803 = vshrl.u32 %v1802, 7
      %v1804 = vsub.s32 0, %v1803
      %v1805 = vrot.slane %v1800, %v1804
      %v1811 = vunpack.c.l.b16 %v1796
      %v1812 = vunpack.c.l.b16 %v1797
      %v1813 = vunpack.c.l.b16 %v1798
      %v1814 = vunpack.c.l.b16 %v1799
      %v1815 = vpack.c.b16 %v1812, %v1811
      %v1816 = vpack.c.b16 %v1814, %v1813
      %v1820 = vsel %vm831, %v1795, 0
      %1822 = vmatprep.subr.bf16.mxu0 0
      %1823 = vmatpush1.bf16.msra.mxu0 %v1815
      %1824 = vmatprep.subr.bf16.mxu0 0
      %1825 = vmatpush1.bf16.msra.mxu0 %v1816
      %1826 = vmatprep.subr.bf16.mxu0 0
      %1827 = vmatpush1.bf16.msra.mxu0 0
      %1828 = vmatprep.subr.bf16.mxu0 0
      %1829 = vmatpush1.bf16.msra.mxu0 0
      %1830 = vmatprep.subr.bf16.mxu0 0
      %1831 = vmatpush1.bf16.msra.mxu0 0
      %1832 = vmatprep.subr.bf16.mxu0 0
      %1833 = vmatpush1.bf16.msra.mxu0 0
      %1834 = vmatprep.subr.bf16.mxu0 0
      %1835 = vmatpush1.bf16.msra.mxu0 0
      %1836 = vmatprep.subr.bf16.mxu0 0
      %1837 = vmatpush1.bf16.msra.mxu0 0
      %1838 = vmatprep.subr.bf16.mxu0 0
      %1839 = vmatpush1.bf16.msra.mxu0 0
      %1840 = vmatprep.subr.bf16.mxu0 0
      %1841 = vmatpush1.bf16.msra.mxu0 0
      %1842 = vmatprep.subr.bf16.mxu0 0
      %1843 = vmatpush1.bf16.msra.mxu0 0
      %1844 = vmatprep.subr.bf16.mxu0 0
      %1845 = vmatpush1.bf16.msra.mxu0 0
      %1846 = vmatprep.subr.bf16.mxu0 0
      %1847 = vmatpush1.bf16.msra.mxu0 0
      %1848 = vmatprep.subr.bf16.mxu0 0
      %1849 = vmatpush1.bf16.msra.mxu0 0
      %1850 = vmatprep.subr.bf16.mxu0 0
      %1851 = vmatpush1.bf16.msra.mxu0 0
      %1852 = vmatprep.subr.bf16.mxu0 0
      %1853 = vmatpush1.bf16.msra.mxu0 0
      %1854 = vmatprep.mubr.bf16.mxu0 0
      %1855 = vmatmul.mubr.bf16.gmra.mrb[0].mxu0 %v1820
      %v1856 = vpop.f32.mrb[0].mxu0
      %v1857 = vadd.f32 %v1805, %v1856
      %v1858 = vpop.f32.mrb[0].mxu0
      %v1859 = vpop.f32.mrb[0].mxu0
      %v1860 = vadd.f32 %v1805, %v1859
      %v1861 = vpop.f32.mrb[0].mxu0
      %1862 = vdwg.mxu0
      %v1863 = vadd.f32 %v1857, %v805
      %v1864 = vadd.f32 %v1860, %v806
      %v1865 = vld [vmem:[%s734] sm:$0x1]
      %v1866 = vld [vmem:[%s741] sm:$0x1]
      %v1867 = vsel %vm831, %v1863, 0.0
      %1868 = vadd.xlane.f32.xlu0 %v1867
      %v1869 = vpop.xlane.xlu0 %1868
      %v1870 = vsel %vm831, %v1864, 0.0
      %1871 = vadd.xlane.f32.xlu0 %v1870
      %v1872 = vpop.xlane.xlu0 %1871
      %v1873 = vrcp.pop 32.0
      %v1874 = vmul.f32 %v1869, %v1873
      %v1875 = vmul.f32 %v1872, %v1873
      %v1876 = vsub.f32 %v1863, %v1874
      %v1877 = vsub.f32 %v1864, %v1875
      %v1878 = vmul.f32 %v1876, %v1876
      %v1879 = vmul.f32 %v1877, %v1877
      %v1880 = vsel %vm831, %v1878, 0.0
      %1881 = vadd.xlane.f32.xlu0 %v1880
      %v1882 = vpop.xlane.xlu0 %1881
      %v1883 = vsel %vm831, %v1879, 0.0
      %1884 = vadd.xlane.f32.xlu0 %v1883
      %v1885 = vpop.xlane.xlu0 %1884
      %v1886 = vmul.f32 %v1882, %v1873
      %v1887 = vmul.f32 %v1885, %v1873
      %v1888 = vadd.f32 %v1886, 1e-05
      %v1889 = vadd.f32 %v1887, 1e-05
      %v1890 = vrsqrt.pop %v1888
      %v1891 = vrsqrt.pop %v1889
      %v1892 = vmul.f32 %v1876, %v1890
      %v1893 = vmul.f32 %v1877, %v1891
      %v1895 = vlaneseq
      %v1896 = vshrl.u32 %v1895, 7
      %v1897 = vsub.s32 0, %v1896
      %v1898 = vrot.slane %v1865, %v1897
      %v1900 = vmul.f32 %v1892, %v1898
      %v1901 = vmul.f32 %v1893, %v1898
      %v1903 = vlaneseq
      %v1904 = vshrl.u32 %v1903, 7
      %v1905 = vsub.s32 0, %v1904
      %v1906 = vrot.slane %v1866, %v1905
      %v1908 = vadd.f32 %v1900, %v1906
      %v1909 = vadd.f32 %v1901, %v1906
      %v1910 = vpack.c.bf16 %v1909, %v1908
      %v1911 = vld [vmem:[%s750] sm:$0xf]
      %v1912 = vld [vmem:[%s750 + $0x4] sm:$0xf]
      %v1913 = vld [vmem:[%s750 + $0x8] sm:$0xf]
      %v1914 = vld [vmem:[%s750 + $0xc] sm:$0xf]
      %v1915 = vld [vmem:[%s757] sm:$0x1]
      %v1917 = vlaneseq
      %v1918 = vshrl.u32 %v1917, 7
      %v1919 = vsub.s32 0, %v1918
      %v1920 = vrot.slane %v1915, %v1919
      %v1926 = vunpack.c.l.b16 %v1911
      %v1927 = vunpack.c.l.b16 %v1912
      %v1928 = vunpack.c.l.b16 %v1913
      %v1929 = vunpack.c.l.b16 %v1914
      %v1930 = vpack.c.b16 %v1927, %v1926
      %v1931 = vpack.c.b16 %v1929, %v1928
      %v1935 = vsel %vm831, %v1910, 0
      %1937 = vmatprep.subr.bf16.mxu0 0
      %1938 = vmatpush1.bf16.msra.mxu0 %v1930
      %1939 = vmatprep.subr.bf16.mxu0 0
      %1940 = vmatpush1.bf16.msra.mxu0 %v1931
      %1941 = vmatprep.subr.bf16.mxu0 0
      %1942 = vmatpush1.bf16.msra.mxu0 0
      %1943 = vmatprep.subr.bf16.mxu0 0
      %1944 = vmatpush1.bf16.msra.mxu0 0
      %1945 = vmatprep.subr.bf16.mxu0 0
      %1946 = vmatpush1.bf16.msra.mxu0 0
      %1947 = vmatprep.subr.bf16.mxu0 0
      %1948 = vmatpush1.bf16.msra.mxu0 0
      %1949 = vmatprep.subr.bf16.mxu0 0
      %1950 = vmatpush1.bf16.msra.mxu0 0
      %1951 = vmatprep.subr.bf16.mxu0 0
      %1952 = vmatpush1.bf16.msra.mxu0 0
      %1953 = vmatprep.subr.bf16.mxu0 0
      %1954 = vmatpush1.bf16.msra.mxu0 0
      %1955 = vmatprep.subr.bf16.mxu0 0
      %1956 = vmatpush1.bf16.msra.mxu0 0
      %1957 = vmatprep.subr.bf16.mxu0 0
      %1958 = vmatpush1.bf16.msra.mxu0 0
      %1959 = vmatprep.subr.bf16.mxu0 0
      %1960 = vmatpush1.bf16.msra.mxu0 0
      %1961 = vmatprep.subr.bf16.mxu0 0
      %1962 = vmatpush1.bf16.msra.mxu0 0
      %1963 = vmatprep.subr.bf16.mxu0 0
      %1964 = vmatpush1.bf16.msra.mxu0 0
      %1965 = vmatprep.subr.bf16.mxu0 0
      %1966 = vmatpush1.bf16.msra.mxu0 0
      %1967 = vmatprep.subr.bf16.mxu0 0
      %1968 = vmatpush1.bf16.msra.mxu0 0
      %1969 = vmatprep.mubr.bf16.mxu0 0
      %1970 = vmatmul.mubr.bf16.gmra.mrb[0].mxu0 %v1935
      %v1971 = vpop.f32.mrb[0].mxu0
      %v1972 = vadd.f32 %v1920, %v1971
      %v1973 = vpop.f32.mrb[0].mxu0
      %v1974 = vpop.f32.mrb[0].mxu0
      %v1975 = vadd.f32 %v1920, %v1974
      %v1976 = vpop.f32.mrb[0].mxu0
      %1977 = vdwg.mxu0
      %v1978 = vmul.f32 %v1972, 0.5
      %v1979 = vmul.f32 %v1975, 0.5
      %v1980 = vmul.f32 %v1972, 0.044715
      %v1981 = vmul.f32 %v1975, 0.044715
      %v1982 = vmul.f32 %v1980, %v1972
      %v1983 = vmul.f32 %v1981, %v1975
      %v1984 = vmul.f32 %v1982, %v1972
      %v1985 = vmul.f32 %v1983, %v1975
      %v1986 = vadd.f32 %v1972, %v1984
      %v1987 = vadd.f32 %v1975, %v1985
      %v1988 = vmul.f32 %v1986, 0.7978846
      %v1989 = vmul.f32 %v1987, 0.7978846
      %v1990 = vtanh.pop %v1988
      %v1991 = vtanh.pop %v1989
      %v1992 = vadd.f32 %v1990, 1.0
      %v1993 = vadd.f32 %v1991, 1.0
      %v1994 = vmul.f32 %v1978, %v1992
      %v1995 = vmul.f32 %v1979, %v1993
      %v1996 = vpack.c.bf16 %v1995, %v1994
      %v1997 = vld [vmem:[%s766] sm:$0xf]
      %v1998 = vld [vmem:[%s766 + $0x4] sm:$0xf]
      %v1999 = vld [vmem:[%s766 + $0x8] sm:$0xf]
      %v2000 = vld [vmem:[%s766 + $0xc] sm:$0xf]
      %v2001 = vld [vmem:[%s766 + $0x10] sm:$0xf]
      %v2002 = vld [vmem:[%s766 + $0x14] sm:$0xf]
      %v2003 = vld [vmem:[%s766 + $0x18] sm:$0xf]
      %v2004 = vld [vmem:[%s766 + $0x1c] sm:$0xf]
      %v2005 = vld [vmem:[%s773] sm:$0x1]
      %v2007 = vlaneseq
      %v2008 = vshrl.u32 %v2007, 7
      %v2009 = vsub.s32 0, %v2008
      %v2010 = vrot.slane %v2005, %v2009
      %v2020 = vunpack.c.l.b16 %v1997
      %v2021 = vunpack.c.l.b16 %v1998
      %v2022 = vunpack.c.l.b16 %v1999
      %v2023 = vunpack.c.l.b16 %v2000
      %v2024 = vunpack.c.l.b16 %v2001
      %v2025 = vunpack.c.l.b16 %v2002
      %v2026 = vunpack.c.l.b16 %v2003
      %v2027 = vunpack.c.l.b16 %v2004
      %v2028 = vpack.c.b16 %v2021, %v2020
      %v2029 = vpack.c.b16 %v2023, %v2022
      %v2030 = vpack.c.b16 %v2025, %v2024
      %v2031 = vpack.c.b16 %v2027, %v2026
      %vm2036 = vcmask 523264
      %v2038 = vsel %vm2036, %v1996, 0
      %2040 = vmatprep.subr.bf16.mxu0 0
      %2041 = vmatpush1.bf16.msra.mxu0 %v2028
      %2042 = vmatprep.subr.bf16.mxu0 0
      %2043 = vmatpush1.bf16.msra.mxu0 %v2029
      %2044 = vmatprep.subr.bf16.mxu0 0
      %2045 = vmatpush1.bf16.msra.mxu0 %v2030
      %2046 = vmatprep.subr.bf16.mxu0 0
      %2047 = vmatpush1.bf16.msra.mxu0 %v2031
      %2048 = vmatprep.subr.bf16.mxu0 0
      %2049 = vmatpush1.bf16.msra.mxu0 0
      %2050 = vmatprep.subr.bf16.mxu0 0
      %2051 = vmatpush1.bf16.msra.mxu0 0
      %2052 = vmatprep.subr.bf16.mxu0 0
      %2053 = vmatpush1.bf16.msra.mxu0 0
      %2054 = vmatprep.subr.bf16.mxu0 0
      %2055 = vmatpush1.bf16.msra.mxu0 0
      %2056 = vmatprep.subr.bf16.mxu0 0
      %2057 = vmatpush1.bf16.msra.mxu0 0
      %2058 = vmatprep.subr.bf16.mxu0 0
      %2059 = vmatpush1.bf16.msra.mxu0 0
      %2060 = vmatprep.subr.bf16.mxu0 0
      %2061 = vmatpush1.bf16.msra.mxu0 0
      %2062 = vmatprep.subr.bf16.mxu0 0
      %2063 = vmatpush1.bf16.msra.mxu0 0
      %2064 = vmatprep.subr.bf16.mxu0 0
      %2065 = vmatpush1.bf16.msra.mxu0 0
      %2066 = vmatprep.subr.bf16.mxu0 0
      %2067 = vmatpush1.bf16.msra.mxu0 0
      %2068 = vmatprep.subr.bf16.mxu0 0
      %2069 = vmatpush1.bf16.msra.mxu0 0
      %2070 = vmatprep.subr.bf16.mxu0 0
      %2071 = vmatpush1.bf16.msra.mxu0 0
      %2072 = vmatprep.mubr.bf16.mxu0 0
      %2073 = vmatmul.mubr.bf16.gmra.mrb[0].mxu0 %v2038
      %v2074 = vpop.f32.mrb[0].mxu0
      %v2075 = vadd.f32 %v2010, %v2074
      %v2076 = vpop.f32.mrb[0].mxu0
      %v2077 = vpop.f32.mrb[0].mxu0
      %v2078 = vadd.f32 %v2010, %v2077
      %v2079 = vpop.f32.mrb[0].mxu0
      %2080 = vdwg.mxu0
      %v2081 = vadd.f32 %v2075, %v1908
      %v2082 = vadd.f32 %v2078, %v1909
      %v2083 = vld [vmem:[%s780] sm:$0x1]
      %v2084 = vld [vmem:[%s787] sm:$0x1]
      %v2085 = vsel %vm831, %v2081, 0.0
      %2086 = vadd.xlane.f32.xlu0 %v2085
      %v2087 = vpop.xlane.xlu0 %2086
      %v2088 = vsel %vm831, %v2082, 0.0
      %2089 = vadd.xlane.f32.xlu0 %v2088
      %v2090 = vpop.xlane.xlu0 %2089
      %v2091 = vmul.f32 %v2087, %v1873
      %v2092 = vmul.f32 %v2090, %v1873
      %v2093 = vsub.f32 %v2081, %v2091
      %v2094 = vsub.f32 %v2082, %v2092
      %v2095 = vmul.f32 %v2093, %v2093
      %v2096 = vmul.f32 %v2094, %v2094
      %v2097 = vsel %vm831, %v2095, 0.0
      %2098 = vadd.xlane.f32.xlu0 %v2097
      %v2099 = vpop.xlane.xlu0 %2098
      %v2100 = vsel %vm831, %v2096, 0.0
      %2101 = vadd.xlane.f32.xlu0 %v2100
      %v2102 = vpop.xlane.xlu0 %2101
      %v2103 = vmul.f32 %v2099, %v1873
      %v2104 = vmul.f32 %v2102, %v1873
      %v2105 = vadd.f32 %v2103, 1e-05
      %v2106 = vadd.f32 %v2104, 1e-05
      %v2107 = vrsqrt.pop %v2105
      %v2108 = vrsqrt.pop %v2106
      %v2109 = vmul.f32 %v2093, %v2107
      %v2110 = vmul.f32 %v2094, %v2108
      %v2112 = vlaneseq
      %v2113 = vshrl.u32 %v2112, 7
      %v2114 = vsub.s32 0, %v2113
      %v2115 = vrot.slane %v2083, %v2114
      %v2117 = vmul.f32 %v2109, %v2115
      %v2118 = vmul.f32 %v2110, %v2115
      %v2120 = vlaneseq
      %v2121 = vshrl.u32 %v2120, 7
      %v2122 = vsub.s32 0, %v2121
      %v2123 = vrot.slane %v2084, %v2122
      %v2125 = vadd.f32 %v2117, %v2123
      %v2126 = vadd.f32 %v2118, %v2123
      %2127 = vst.msk [vmem:[#allocation2] sm:$0xff] %vm831, %v2125
      %2128 = vst.msk [vmem:[#allocation2 + $0x8] sm:$0xff] %vm831, %v2126
      %v2129 = vpack.c.bf16 %v2126, %v2125
      %v2131 = vunpack.c.l.b16 %v2129
      %v2132 = vunpack.c.h.b16 %v2129
      %v2133 = vpack.c.b16 %v2131, %v2131
      %v2134 = vpack.c.b16 %v2132, %v2132
      %vm2137 = vcmask 257024
      %2138 = vst.msk [vmem:[%s792] sm:$0xf] %vm2137, %v2133
      %2139 = vst.msk [vmem:[%s792 + $0x4] sm:$0xf] %vm2137, %v2134
      %p2140 = scmp.lt.s32.totalorder %s28, 3
      %s2141 = scalar_select %p2140, %s28, 3
      %s2142 = smul.addr %s2141, 2
      %s2143 = smul.addr %s2142, 4
      %s2144 = scalar_lea.vmem %s13, %s2143
      // Predicated region
      $region77: #{moe_encoder_forward.3} parent=71 // pred_check
        %p2145 = pneg %p411
      $region78: #{moe_encoder_forward.3} parent=71 // pred_check_branch
        %2147 = sbr.rel (%p2145) target = $region80
      $region79: #{moe_encoder_forward.3} parent=71 // pred_region
        _
      $region80: #{moe_encoder_forward.3} parent=71 // pred_fallthru
        _
    $region72: #{moe_encoder_forward.3} parent=5 // pred_fallthru
      _
    %p2148 = scmp.le.s32.totalorder 2, %s19
    // Predicated region
    $region81: #{moe_encoder_forward.3} parent=5 // pred_check
      %p2149 = pneg %p2148
    $region82: #{moe_encoder_forward.3} parent=5 // pred_check_branch
      %2151 = sbr.rel (%p2149) target = $region84
    $region83: #{moe_encoder_forward.3} parent=5 // pred_region
      %s2152 = ssub.s32 %s19, 2
      // Predicated region
      $region85: #{moe_encoder_forward.3} parent=83 // pred_check
        %p2153 = pneg %p417
      $region86: #{moe_encoder_forward.3} parent=83 // pred_check_branch
        %2155 = sbr.rel (%p2153) target = $region88
      $region87: #{moe_encoder_forward.3} parent=83 // pred_region
        %p2156 = scmp.lt.s32.totalorder %s30, 3
        %s2157 = scalar_select %p2156, %s30, 3
        %s2158 = smul.addr %s2157, 2
        %s2159 = smul.addr %s2158, 4
        %s2160 = scalar_lea.vmem %s13, %s2159
      $region88: #{moe_encoder_forward.3} parent=83 // pred_fallthru
        _
    $region84: #{moe_encoder_forward.3} parent=5 // pred_fallthru
      _
  $region6: #{moe_encoder_forward.3} parent=0 // loop_footer
    %s23 = sadd.s32 1, %s19
  $region7: #{moe_encoder_forward.3} parent=0 // loop_footer_branch
    %18 = sbr.rel target = $region3
  $region8: #{moe_encoder_forward.3} parent=0 // loop_exit
    _

// kernel: moe_encoder_forward.2
$region0: #{moe_encoder_forward.2}
  #allocation0 [shape = 'u32[]', space=smem, size = 0x4, offset = 0x4, fixed_abs, tag = 'smem constant byte address 0x4 - core index']
  #allocation1 [shape = 'u32[144,128]{1,0:T(1,128)}', space=vmem, size = 0x12000, scoped, tag = 'internal scratch']
  #allocation2 [shape = 'f32[16,32]{1,0:T(8,128)}', space=vmem, size = 0x2000, scoped, tag = 'scratch operand']
  #allocation3 [shape = 'f32[16,32]{1,0:T(8,128)}', space=vmem, size = 0x2000, scoped, tag = 'scratch operand']
  %s0 = inlined_call_operand.vmem [shape: f32[16,32], index: 0, kind: input, shape index: {}]
  %s1 = inlined_call_operand.vmem [shape: bf16[1,2,32,96], index: 1, kind: input, shape index: {}]
  %s2 = inlined_call_operand.vmem [shape: f32[1,2,1,96], index: 2, kind: input, shape index: {}]
  %s3 = inlined_call_operand.vmem [shape: bf16[1,2,32,32], index: 3, kind: input, shape index: {}]
  %s4 = inlined_call_operand.vmem [shape: f32[1,2,1,32], index: 4, kind: input, shape index: {}]
  %s5 = inlined_call_operand.vmem [shape: f32[1,2,1,32], index: 5, kind: input, shape index: {}]
  %s6 = inlined_call_operand.vmem [shape: f32[1,2,1,32], index: 6, kind: input, shape index: {}]
  %s7 = inlined_call_operand.vmem [shape: bf16[1,2,32,64], index: 7, kind: input, shape index: {}]
  %s8 = inlined_call_operand.vmem [shape: f32[1,2,1,64], index: 8, kind: input, shape index: {}]
  %s9 = inlined_call_operand.vmem [shape: bf16[1,2,64,32], index: 9, kind: input, shape index: {}]
  %s10 = inlined_call_operand.vmem [shape: f32[1,2,1,32], index: 10, kind: input, shape index: {}]
  %s11 = inlined_call_operand.vmem [shape: f32[1,2,1,32], index: 11, kind: input, shape index: {}]
  %s12 = inlined_call_operand.vmem [shape: f32[1,2,1,32], index: 12, kind: input, shape index: {}]
  %s13 = inlined_call_operand.vmem [shape: bf16[1,16,32], index: 13, kind: output, shape index: {}]
  %s14 = sld [smem:[#allocation0]]
  $region89: #{moe_encoder_forward.2} parent=0
    _
  %s16 = ssub.s32 1, %s14
  %s17 = scalar_select 0, %s16, %s14
  loop: start=0, step=1, limit=4
  $region2: #{moe_encoder_forward.2} parent=0 // loop_pre_header
    _
  $region3: #{moe_encoder_forward.2} parent=0 // loop_header
    %s19 = sphi 0, %s23
    %p20 = scmp.ge.s32.totalorder %s19, 4
    %s26 = sphi 0, %s38
    %s27 = sphi 0, %s34
    %s28 = sphi 0, %s26
    %s29 = sphi 0, %s27
    %s30 = sphi 0, %s28
    %s31 = sphi 0, %s29
    %s39 = sphi 0, %s39
    %s41 = sphi 0, %s39
    %s42 = sphi 0, %s41
    %s56 = sphi 0, %s42
    %s64 = sphi 0, %s66
    %s67 = sphi 0, %s64
    %s68 = sphi 0, %s67
    %s84 = sphi 0, %s68
    %s92 = sphi 0, %s94
    %s95 = sphi 0, %s92
    %s96 = sphi 0, %s95
    %s112 = sphi 0, %s96
    %s120 = sphi 0, %s122
    %s123 = sphi 0, %s120
    %s124 = sphi 0, %s123
    %s140 = sphi 0, %s124
    %s148 = sphi 0, %s150
    %s151 = sphi 0, %s148
    %s152 = sphi 0, %s151
    %s168 = sphi 0, %s152
    %s176 = sphi 0, %s178
    %s179 = sphi 0, %s176
    %s180 = sphi 0, %s179
    %s196 = sphi 0, %s180
    %s204 = sphi 0, %s206
    %s207 = sphi 0, %s204
    %s208 = sphi 0, %s207
    %s224 = sphi 0, %s208
    %s232 = sphi 0, %s234
    %s235 = sphi 0, %s232
    %s236 = sphi 0, %s235
    %s252 = sphi 0, %s236
    %s260 = sphi 0, %s262
    %s263 = sphi 0, %s260
    %s264 = sphi 0, %s263
    %s280 = sphi 0, %s264
    %s288 = sphi 0, %s290
    %s291 = sphi 0, %s288
    %s292 = sphi 0, %s291
    %s308 = sphi 0, %s292
    %s316 = sphi 0, %s318
    %s319 = sphi 0, %s316
    %s320 = sphi 0, %s319
    %s336 = sphi 0, %s320
    %s344 = sphi 0, %s346
    %s347 = sphi 0, %s344
    %s348 = sphi 0, %s347
    %s364 = sphi 0, %s348
    %s372 = sphi 0, %s374
    %s375 = sphi 0, %s372
    %s376 = sphi 0, %s375
    %s392 = sphi 0, %s376
    %s398 = sphi 0, %s400
    %s401 = sphi 0, %s398
    %s402 = sphi 0, %s401
    %s418 = sphi 0, %s402
  $region4: #{moe_encoder_forward.2} parent=0 // loop_header_branch
    %22 = sbr.rel (%p20) target = $region8
  $region5: #{moe_encoder_forward.2} parent=0 // loop_body
    %s24 = ssub.s32 %s19, 1
    %s25 = ssub.s32 %s19, 2
    %s32 = sadd.s32 1, %s27
    %p33 = scmp.ge.s32.totalorder %s32, 2
    %s34 = scalar_select %p33, 0, %s32
    %s35 = sadd.s32 1, %s26
    %s36 = scalar_select %p33, %s35, %s26
    %p37 = scmp.ge.s32.totalorder %s36, 1
    %s38 = scalar_select %p37, 0, %s36
    %s40 = sadd.s32 %s39, 1
    %p43 = scmp.eq.s32.totalorder %s19, 1
    %p44 = scmp.ne.s32.totalorder %s39, %s41
    %p45 = scmp.eq.s32.totalorder %s19, 0
    %p46 = por %p44, %p45
    %p47 = scmp.ne.s32.totalorder %s39, %s41
    %p48 = scmp.eq.s32.totalorder %s24, 1
    %p49 = por %p47, %p48
    %p50 = scmp.ne.s32.totalorder %s41, %s42
    %p51 = scmp.eq.s32.totalorder %s24, 0
    %p52 = por %p50, %p51
    %p53 = scmp.ne.s32.totalorder %s41, %s42
    %p54 = scmp.eq.s32.totalorder %s25, 1
    %p55 = por %p53, %p54
    %p57 = scmp.ne.s32.totalorder %s42, %s56
    %p58 = scmp.eq.s32.totalorder %s25, 0
    %p59 = por %p57, %p58
    %s60 = ssub.s32 %s26, %s38
    %s61 = ssub.s32 %s27, %s34
    %s62 = sor.u32 %s60, %s61
    %p63 = scmp.eq.s32.totalorder %s62, 0
    %s65 = sadd.s32 %s64, 1
    %s66 = scalar_select %p63, %s64, %s65
    %p69 = pneg %p63
    %p70 = scmp.eq.s32.totalorder %s19, 1
    %p71 = por %p69, %p70
    %p72 = scmp.ne.s32.totalorder %s64, %s67
    %p73 = scmp.eq.s32.totalorder %s19, 0
    %p74 = por %p72, %p73
    %p75 = scmp.ne.s32.totalorder %s64, %s67
    %p76 = scmp.eq.s32.totalorder %s24, 1
    %p77 = por %p75, %p76
    %p78 = scmp.ne.s32.totalorder %s67, %s68
    %p79 = scmp.eq.s32.totalorder %s24, 0
    %p80 = por %p78, %p79
    %p81 = scmp.ne.s32.totalorder %s67, %s68
    %p82 = scmp.eq.s32.totalorder %s25, 1
    %p83 = por %p81, %p82
    %p85 = scmp.ne.s32.totalorder %s68, %s84
    %p86 = scmp.eq.s32.totalorder %s25, 0
    %p87 = por %p85, %p86
    %s88 = ssub.s32 %s26, %s38
    %s89 = ssub.s32 %s27, %s34
    %s90 = sor.u32 %s88, %s89
    %p91 = scmp.eq.s32.totalorder %s90, 0
    %s93 = sadd.s32 %s92, 1
    %s94 = scalar_select %p91, %s92, %s93
    %p97 = pneg %p91
    %p98 = scmp.eq.s32.totalorder %s19, 1
    %p99 = por %p97, %p98
    %p100 = scmp.ne.s32.totalorder %s92, %s95
    %p101 = scmp.eq.s32.totalorder %s19, 0
    %p102 = por %p100, %p101
    %p103 = scmp.ne.s32.totalorder %s92, %s95
    %p104 = scmp.eq.s32.totalorder %s24, 1
    %p105 = por %p103, %p104
    %p106 = scmp.ne.s32.totalorder %s95, %s96
    %p107 = scmp.eq.s32.totalorder %s24, 0
    %p108 = por %p106, %p107
    %p109 = scmp.ne.s32.totalorder %s95, %s96
    %p110 = scmp.eq.s32.totalorder %s25, 1
    %p111 = por %p109, %p110
    %p113 = scmp.ne.s32.totalorder %s96, %s112
    %p114 = scmp.eq.s32.totalorder %s25, 0
    %p115 = por %p113, %p114
    %s116 = ssub.s32 %s26, %s38
    %s117 = ssub.s32 %s27, %s34
    %s118 = sor.u32 %s116, %s117
    %p119 = scmp.eq.s32.totalorder %s118, 0
    %s121 = sadd.s32 %s120, 1
    %s122 = scalar_select %p119, %s120, %s121
    %p125 = pneg %p119
    %p126 = scmp.eq.s32.totalorder %s19, 1
    %p127 = por %p125, %p126
    %p128 = scmp.ne.s32.totalorder %s120, %s123
    %p129 = scmp.eq.s32.totalorder %s19, 0
    %p130 = por %p128, %p129
    %p131 = scmp.ne.s32.totalorder %s120, %s123
    %p132 = scmp.eq.s32.totalorder %s24, 1
    %p133 = por %p131, %p132
    %p134 = scmp.ne.s32.totalorder %s123, %s124
    %p135 = scmp.eq.s32.totalorder %s24, 0
    %p136 = por %p134, %p135
    %p137 = scmp.ne.s32.totalorder %s123, %s124
    %p138 = scmp.eq.s32.totalorder %s25, 1
    %p139 = por %p137, %p138
    %p141 = scmp.ne.s32.totalorder %s124, %s140
    %p142 = scmp.eq.s32.totalorder %s25, 0
    %p143 = por %p141, %p142
    %s144 = ssub.s32 %s26, %s38
    %s145 = ssub.s32 %s27, %s34
    %s146 = sor.u32 %s144, %s145
    %p147 = scmp.eq.s32.totalorder %s146, 0
    %s149 = sadd.s32 %s148, 1
    %s150 = scalar_select %p147, %s148, %s149
    %p153 = pneg %p147
    %p154 = scmp.eq.s32.totalorder %s19, 1
    %p155 = por %p153, %p154
    %p156 = scmp.ne.s32.totalorder %s148, %s151
    %p157 = scmp.eq.s32.totalorder %s19, 0
    %p158 = por %p156, %p157
    %p159 = scmp.ne.s32.totalorder %s148, %s151
    %p160 = scmp.eq.s32.totalorder %s24, 1
    %p161 = por %p159, %p160
    %p162 = scmp.ne.s32.totalorder %s151, %s152
    %p163 = scmp.eq.s32.totalorder %s24, 0
    %p164 = por %p162, %p163
    %p165 = scmp.ne.s32.totalorder %s151, %s152
    %p166 = scmp.eq.s32.totalorder %s25, 1
    %p167 = por %p165, %p166
    %p169 = scmp.ne.s32.totalorder %s152, %s168
    %p170 = scmp.eq.s32.totalorder %s25, 0
    %p171 = por %p169, %p170
    %s172 = ssub.s32 %s26, %s38
    %s173 = ssub.s32 %s27, %s34
    %s174 = sor.u32 %s172, %s173
    %p175 = scmp.eq.s32.totalorder %s174, 0
    %s177 = sadd.s32 %s176, 1
    %s178 = scalar_select %p175, %s176, %s177
    %p181 = pneg %p175
    %p182 = scmp.eq.s32.totalorder %s19, 1
    %p183 = por %p181, %p182
    %p184 = scmp.ne.s32.totalorder %s176, %s179
    %p185 = scmp.eq.s32.totalorder %s19, 0
    %p186 = por %p184, %p185
    %p187 = scmp.ne.s32.totalorder %s176, %s179
    %p188 = scmp.eq.s32.totalorder %s24, 1
    %p189 = por %p187, %p188
    %p190 = scmp.ne.s32.totalorder %s179, %s180
    %p191 = scmp.eq.s32.totalorder %s24, 0
    %p192 = por %p190, %p191
    %p193 = scmp.ne.s32.totalorder %s179, %s180
    %p194 = scmp.eq.s32.totalorder %s25, 1
    %p195 = por %p193, %p194
    %p197 = scmp.ne.s32.totalorder %s180, %s196
    %p198 = scmp.eq.s32.totalorder %s25, 0
    %p199 = por %p197, %p198
    %s200 = ssub.s32 %s26, %s38
    %s201 = ssub.s32 %s27, %s34
    %s202 = sor.u32 %s200, %s201
    %p203 = scmp.eq.s32.totalorder %s202, 0
    %s205 = sadd.s32 %s204, 1
    %s206 = scalar_select %p203, %s204, %s205
    %p209 = pneg %p203
    %p210 = scmp.eq.s32.totalorder %s19, 1
    %p211 = por %p209, %p210
    %p212 = scmp.ne.s32.totalorder %s204, %s207
    %p213 = scmp.eq.s32.totalorder %s19, 0
    %p214 = por %p212, %p213
    %p215 = scmp.ne.s32.totalorder %s204, %s207
    %p216 = scmp.eq.s32.totalorder %s24, 1
    %p217 = por %p215, %p216
    %p218 = scmp.ne.s32.totalorder %s207, %s208
    %p219 = scmp.eq.s32.totalorder %s24, 0
    %p220 = por %p218, %p219
    %p221 = scmp.ne.s32.totalorder %s207, %s208
    %p222 = scmp.eq.s32.totalorder %s25, 1
    %p223 = por %p221, %p222
    %p225 = scmp.ne.s32.totalorder %s208, %s224
    %p226 = scmp.eq.s32.totalorder %s25, 0
    %p227 = por %p225, %p226
    %s228 = ssub.s32 %s26, %s38
    %s229 = ssub.s32 %s27, %s34
    %s230 = sor.u32 %s228, %s229
    %p231 = scmp.eq.s32.totalorder %s230, 0
    %s233 = sadd.s32 %s232, 1
    %s234 = scalar_select %p231, %s232, %s233
    %p237 = pneg %p231
    %p238 = scmp.eq.s32.totalorder %s19, 1
    %p239 = por %p237, %p238
    %p240 = scmp.ne.s32.totalorder %s232, %s235
    %p241 = scmp.eq.s32.totalorder %s19, 0
    %p242 = por %p240, %p241
    %p243 = scmp.ne.s32.totalorder %s232, %s235
    %p244 = scmp.eq.s32.totalorder %s24, 1
    %p245 = por %p243, %p244
    %p246 = scmp.ne.s32.totalorder %s235, %s236
    %p247 = scmp.eq.s32.totalorder %s24, 0
    %p248 = por %p246, %p247
    %p249 = scmp.ne.s32.totalorder %s235, %s236
    %p250 = scmp.eq.s32.totalorder %s25, 1
    %p251 = por %p249, %p250
    %p253 = scmp.ne.s32.totalorder %s236, %s252
    %p254 = scmp.eq.s32.totalorder %s25, 0
    %p255 = por %p253, %p254
    %s256 = ssub.s32 %s26, %s38
    %s257 = ssub.s32 %s27, %s34
    %s258 = sor.u32 %s256, %s257
    %p259 = scmp.eq.s32.totalorder %s258, 0
    %s261 = sadd.s32 %s260, 1
    %s262 = scalar_select %p259, %s260, %s261
    %p265 = pneg %p259
    %p266 = scmp.eq.s32.totalorder %s19, 1
    %p267 = por %p265, %p266
    %p268 = scmp.ne.s32.totalorder %s260, %s263
    %p269 = scmp.eq.s32.totalorder %s19, 0
    %p270 = por %p268, %p269
    %p271 = scmp.ne.s32.totalorder %s260, %s263
    %p272 = scmp.eq.s32.totalorder %s24, 1
    %p273 = por %p271, %p272
    %p274 = scmp.ne.s32.totalorder %s263, %s264
    %p275 = scmp.eq.s32.totalorder %s24, 0
    %p276 = por %p274, %p275
    %p277 = scmp.ne.s32.totalorder %s263, %s264
    %p278 = scmp.eq.s32.totalorder %s25, 1
    %p279 = por %p277, %p278
    %p281 = scmp.ne.s32.totalorder %s264, %s280
    %p282 = scmp.eq.s32.totalorder %s25, 0
    %p283 = por %p281, %p282
    %s284 = ssub.s32 %s26, %s38
    %s285 = ssub.s32 %s27, %s34
    %s286 = sor.u32 %s284, %s285
    %p287 = scmp.eq.s32.totalorder %s286, 0
    %s289 = sadd.s32 %s288, 1
    %s290 = scalar_select %p287, %s288, %s289
    %p293 = pneg %p287
    %p294 = scmp.eq.s32.totalorder %s19, 1
    %p295 = por %p293, %p294
    %p296 = scmp.ne.s32.totalorder %s288, %s291
    %p297 = scmp.eq.s32.totalorder %s19, 0
    %p298 = por %p296, %p297
    %p299 = scmp.ne.s32.totalorder %s288, %s291
    %p300 = scmp.eq.s32.totalorder %s24, 1
    %p301 = por %p299, %p300
    %p302 = scmp.ne.s32.totalorder %s291, %s292
    %p303 = scmp.eq.s32.totalorder %s24, 0
    %p304 = por %p302, %p303
    %p305 = scmp.ne.s32.totalorder %s291, %s292
    %p306 = scmp.eq.s32.totalorder %s25, 1
    %p307 = por %p305, %p306
    %p309 = scmp.ne.s32.totalorder %s292, %s308
    %p310 = scmp.eq.s32.totalorder %s25, 0
    %p311 = por %p309, %p310
    %s312 = ssub.s32 %s26, %s38
    %s313 = ssub.s32 %s27, %s34
    %s314 = sor.u32 %s312, %s313
    %p315 = scmp.eq.s32.totalorder %s314, 0
    %s317 = sadd.s32 %s316, 1
    %s318 = scalar_select %p315, %s316, %s317
    %p321 = pneg %p315
    %p322 = scmp.eq.s32.totalorder %s19, 1
    %p323 = por %p321, %p322
    %p324 = scmp.ne.s32.totalorder %s316, %s319
    %p325 = scmp.eq.s32.totalorder %s19, 0
    %p326 = por %p324, %p325
    %p327 = scmp.ne.s32.totalorder %s316, %s319
    %p328 = scmp.eq.s32.totalorder %s24, 1
    %p329 = por %p327, %p328
    %p330 = scmp.ne.s32.totalorder %s319, %s320
    %p331 = scmp.eq.s32.totalorder %s24, 0
    %p332 = por %p330, %p331
    %p333 = scmp.ne.s32.totalorder %s319, %s320
    %p334 = scmp.eq.s32.totalorder %s25, 1
    %p335 = por %p333, %p334
    %p337 = scmp.ne.s32.totalorder %s320, %s336
    %p338 = scmp.eq.s32.totalorder %s25, 0
    %p339 = por %p337, %p338
    %s340 = ssub.s32 %s26, %s38
    %s341 = ssub.s32 %s27, %s34
    %s342 = sor.u32 %s340, %s341
    %p343 = scmp.eq.s32.totalorder %s342, 0
    %s345 = sadd.s32 %s344, 1
    %s346 = scalar_select %p343, %s344, %s345
    %p349 = pneg %p343
    %p350 = scmp.eq.s32.totalorder %s19, 1
    %p351 = por %p349, %p350
    %p352 = scmp.ne.s32.totalorder %s344, %s347
    %p353 = scmp.eq.s32.totalorder %s19, 0
    %p354 = por %p352, %p353
    %p355 = scmp.ne.s32.totalorder %s344, %s347
    %p356 = scmp.eq.s32.totalorder %s24, 1
    %p357 = por %p355, %p356
    %p358 = scmp.ne.s32.totalorder %s347, %s348
    %p359 = scmp.eq.s32.totalorder %s24, 0
    %p360 = por %p358, %p359
    %p361 = scmp.ne.s32.totalorder %s347, %s348
    %p362 = scmp.eq.s32.totalorder %s25, 1
    %p363 = por %p361, %p362
    %p365 = scmp.ne.s32.totalorder %s348, %s364
    %p366 = scmp.eq.s32.totalorder %s25, 0
    %p367 = por %p365, %p366
    %s368 = ssub.s32 %s26, %s38
    %s369 = ssub.s32 %s27, %s34
    %s370 = sor.u32 %s368, %s369
    %p371 = scmp.eq.s32.totalorder %s370, 0
    %s373 = sadd.s32 %s372, 1
    %s374 = scalar_select %p371, %s372, %s373
    %p377 = pneg %p371
    %p378 = scmp.eq.s32.totalorder %s19, 1
    %p379 = por %p377, %p378
    %p380 = scmp.ne.s32.totalorder %s372, %s375
    %p381 = scmp.eq.s32.totalorder %s19, 0
    %p382 = por %p380, %p381
    %p383 = scmp.ne.s32.totalorder %s372, %s375
    %p384 = scmp.eq.s32.totalorder %s24, 1
    %p385 = por %p383, %p384
    %p386 = scmp.ne.s32.totalorder %s375, %s376
    %p387 = scmp.eq.s32.totalorder %s24, 0
    %p388 = por %p386, %p387
    %p389 = scmp.ne.s32.totalorder %s375, %s376
    %p390 = scmp.eq.s32.totalorder %s25, 1
    %p391 = por %p389, %p390
    %p393 = scmp.ne.s32.totalorder %s376, %s392
    %p394 = scmp.eq.s32.totalorder %s25, 0
    %p395 = por %p393, %p394
    %s396 = ssub.s32 %s26, %s38
    %p397 = scmp.eq.s32.totalorder %s396, 0
    %s399 = sadd.s32 %s398, 1
    %s400 = scalar_select %p397, %s398, %s399
    %p403 = pneg %p397
    %p404 = scmp.eq.s32.totalorder %s19, 1
    %p405 = por %p403, %p404
    %p406 = scmp.ne.s32.totalorder %s398, %s401
    %p407 = scmp.eq.s32.totalorder %s19, 0
    %p408 = por %p406, %p407
    %p409 = scmp.ne.s32.totalorder %s398, %s401
    %p410 = scmp.eq.s32.totalorder %s24, 1
    %p411 = por %p409, %p410
    %p412 = scmp.ne.s32.totalorder %s401, %s402
    %p413 = scmp.eq.s32.totalorder %s24, 0
    %p414 = por %p412, %p413
    %p415 = scmp.ne.s32.totalorder %s401, %s402
    %p416 = scmp.eq.s32.totalorder %s25, 1
    %p417 = por %p415, %p416
    %p419 = scmp.ne.s32.totalorder %s402, %s418
    %p420 = scmp.eq.s32.totalorder %s25, 0
    %p421 = por %p419, %p420
    %p422 = scmp.le.s32.totalorder 1, %s19
    %p423 = scmp.lt.s32.totalorder %s19, 3
    %p424 = pnand %p422, %p423
    %p425 = pneg %p424
    // Predicated region
    $region9: #{moe_encoder_forward.2} parent=5 // pred_check
      _
    $region10: #{moe_encoder_forward.2} parent=5 // pred_check_branch
      %427 = sbr.rel (%p424) target = $region12
    $region11: #{moe_encoder_forward.2} parent=5 // pred_region
      %s428 = ssub.s32 %s19, 1
      // Predicated region
      $region13: #{moe_encoder_forward.2} parent=11 // pred_check
        %p429 = pneg %p52
      $region14: #{moe_encoder_forward.2} parent=11 // pred_check_branch
        %431 = sbr.rel (%p429) target = $region16
      $region15: #{moe_encoder_forward.2} parent=11 // pred_region
        _
      $region16: #{moe_encoder_forward.2} parent=11 // pred_fallthru
        _
    $region12: #{moe_encoder_forward.2} parent=5 // pred_fallthru
      _
    %p432 = scmp.lt.s32.totalorder %s19, 2
    // Predicated region
    $region17: #{moe_encoder_forward.2} parent=5 // pred_check
      %p433 = pneg %p432
    $region18: #{moe_encoder_forward.2} parent=5 // pred_check_branch
      %435 = sbr.rel (%p433) target = $region20
    $region19: #{moe_encoder_forward.2} parent=5 // pred_region
      // Predicated region
      $region21: #{moe_encoder_forward.2} parent=19 // pred_check
        %p436 = pneg %p74
      $region22: #{moe_encoder_forward.2} parent=19 // pred_check_branch
        %438 = sbr.rel (%p436) target = $region24
      $region23: #{moe_encoder_forward.2} parent=19 // pred_region
        %p439 = scmp.lt.s32.totalorder %s26, 0
        %s440 = scalar_select %p439, %s26, 0
        %p441 = scmp.lt.s32.totalorder %s27, 1
        %s442 = scalar_select %p441, %s27, 1
        %s443 = smul.addr %s442, 4
        %s444 = smul.addr %s440, 8
        %s445 = sadd.s32 %s443, %s444
        %s446 = smul.addr %s445, 4
        %s447 = scalar_lea.vmem %s1, %s446
      $region24: #{moe_encoder_forward.2} parent=19 // pred_fallthru
        _
      // Predicated region
      $region25: #{moe_encoder_forward.2} parent=19 // pred_check
        %p448 = pneg %p102
      $region26: #{moe_encoder_forward.2} parent=19 // pred_check_branch
        %450 = sbr.rel (%p448) target = $region28
      $region27: #{moe_encoder_forward.2} parent=19 // pred_region
        %p451 = scmp.lt.s32.totalorder %s26, 0
        %s452 = scalar_select %p451, %s26, 0
        %p453 = scmp.lt.s32.totalorder %s27, 1
        %s454 = scalar_select %p453, %s27, 1
        %s455 = smul.addr %s452, 2
        %s456 = sadd.s32 %s454, %s455
        %s457 = scalar_lea.vmem %s2, %s456
      $region28: #{moe_encoder_forward.2} parent=19 // pred_fallthru
        _
      // Predicated region
      $region29: #{moe_encoder_forward.2} parent=19 // pred_check
        %p458 = pneg %p130
      $region30: #{moe_encoder_forward.2} parent=19 // pred_check_branch
        %460 = sbr.rel (%p458) target = $region32
      $region31: #{moe_encoder_forward.2} parent=19 // pred_region
        %p461 = scmp.lt.s32.totalorder %s26, 0
        %s462 = scalar_select %p461, %s26, 0
        %p463 = scmp.lt.s32.totalorder %s27, 1
        %s464 = scalar_select %p463, %s27, 1
        %s465 = smul.addr %s464, 4
        %s466 = smul.addr %s462, 8
        %s467 = sadd.s32 %s465, %s466
        %s468 = smul.addr %s467, 4
        %s469 = scalar_lea.vmem %s3, %s468
      $region32: #{moe_encoder_forward.2} parent=19 // pred_fallthru
        _
      // Predicated region
      $region33: #{moe_encoder_forward.2} parent=19 // pred_check
        %p470 = pneg %p158
      $region34: #{moe_encoder_forward.2} parent=19 // pred_check_branch
        %472 = sbr.rel (%p470) target = $region36
      $region35: #{moe_encoder_forward.2} parent=19 // pred_region
        %p473 = scmp.lt.s32.totalorder %s26, 0
        %s474 = scalar_select %p473, %s26, 0
        %p475 = scmp.lt.s32.totalorder %s27, 1
        %s476 = scalar_select %p475, %s27, 1
        %s477 = smul.addr %s474, 2
        %s478 = sadd.s32 %s476, %s477
        %s479 = scalar_lea.vmem %s4, %s478
      $region36: #{moe_encoder_forward.2} parent=19 // pred_fallthru
        _
      // Predicated region
      $region37: #{moe_encoder_forward.2} parent=19 // pred_check
        %p480 = pneg %p186
      $region38: #{moe_encoder_forward.2} parent=19 // pred_check_branch
        %482 = sbr.rel (%p480) target = $region40
      $region39: #{moe_encoder_forward.2} parent=19 // pred_region
        %p483 = scmp.lt.s32.totalorder %s26, 0
        %s484 = scalar_select %p483, %s26, 0
        %p485 = scmp.lt.s32.totalorder %s27, 1
        %s486 = scalar_select %p485, %s27, 1
        %s487 = smul.addr %s484, 2
        %s488 = sadd.s32 %s486, %s487
        %s489 = scalar_lea.vmem %s5, %s488
      $region40: #{moe_encoder_forward.2} parent=19 // pred_fallthru
        _
      // Predicated region
      $region41: #{moe_encoder_forward.2} parent=19 // pred_check
        %p490 = pneg %p214
      $region42: #{moe_encoder_forward.2} parent=19 // pred_check_branch
        %492 = sbr.rel (%p490) target = $region44
      $region43: #{moe_encoder_forward.2} parent=19 // pred_region
        %p493 = scmp.lt.s32.totalorder %s26, 0
        %s494 = scalar_select %p493, %s26, 0
        %p495 = scmp.lt.s32.totalorder %s27, 1
        %s496 = scalar_select %p495, %s27, 1
        %s497 = smul.addr %s494, 2
        %s498 = sadd.s32 %s496, %s497
        %s499 = scalar_lea.vmem %s6, %s498
      $region44: #{moe_encoder_forward.2} parent=19 // pred_fallthru
        _
      // Predicated region
      $region45: #{moe_encoder_forward.2} parent=19 // pred_check
        %p500 = pneg %p242
      $region46: #{moe_encoder_forward.2} parent=19 // pred_check_branch
        %502 = sbr.rel (%p500) target = $region48
      $region47: #{moe_encoder_forward.2} parent=19 // pred_region
        %p503 = scmp.lt.s32.totalorder %s26, 0
        %s504 = scalar_select %p503, %s26, 0
        %p505 = scmp.lt.s32.totalorder %s27, 1
        %s506 = scalar_select %p505, %s27, 1
        %s507 = smul.addr %s506, 4
        %s508 = smul.addr %s504, 8
        %s509 = sadd.s32 %s507, %s508
        %s510 = smul.addr %s509, 4
        %s511 = scalar_lea.vmem %s7, %s510
      $region48: #{moe_encoder_forward.2} parent=19 // pred_fallthru
        _
      // Predicated region
      $region49: #{moe_encoder_forward.2} parent=19 // pred_check
        %p512 = pneg %p270
      $region50: #{moe_encoder_forward.2} parent=19 // pred_check_branch
        %514 = sbr.rel (%p512) target = $region52
      $region51: #{moe_encoder_forward.2} parent=19 // pred_region
        %p515 = scmp.lt.s32.totalorder %s26, 0
        %s516 = scalar_select %p515, %s26, 0
        %p517 = scmp.lt.s32.totalorder %s27, 1
        %s518 = scalar_select %p517, %s27, 1
        %s519 = smul.addr %s516, 2
        %s520 = sadd.s32 %s518, %s519
        %s521 = scalar_lea.vmem %s8, %s520
      $region52: #{moe_encoder_forward.2} parent=19 // pred_fallthru
        _
      // Predicated region
      $region53: #{moe_encoder_forward.2} parent=19 // pred_check
        %p522 = pneg %p298
      $region54: #{moe_encoder_forward.2} parent=19 // pred_check_branch
        %524 = sbr.rel (%p522) target = $region56
      $region55: #{moe_encoder_forward.2} parent=19 // pred_region
        %p525 = scmp.lt.s32.totalorder %s26, 0
        %s526 = scalar_select %p525, %s26, 0
        %p527 = scmp.lt.s32.totalorder %s27, 1
        %s528 = scalar_select %p527, %s27, 1
        %s529 = smul.addr %s528, 8
        %s530 = smul.addr %s526, 16
        %s531 = sadd.s32 %s529, %s530
        %s532 = smul.addr %s531, 4
        %s533 = scalar_lea.vmem %s9, %s532
      $region56: #{moe_encoder_forward.2} parent=19 // pred_fallthru
        _
      // Predicated region
      $region57: #{moe_encoder_forward.2} parent=19 // pred_check
        %p534 = pneg %p326
      $region58: #{moe_encoder_forward.2} parent=19 // pred_check_branch
        %536 = sbr.rel (%p534) target = $region60
      $region59: #{moe_encoder_forward.2} parent=19 // pred_region
        %p537 = scmp.lt.s32.totalorder %s26, 0
        %s538 = scalar_select %p537, %s26, 0
        %p539 = scmp.lt.s32.totalorder %s27, 1
        %s540 = scalar_select %p539, %s27, 1
        %s541 = smul.addr %s538, 2
        %s542 = sadd.s32 %s540, %s541
        %s543 = scalar_lea.vmem %s10, %s542
      $region60: #{moe_encoder_forward.2} parent=19 // pred_fallthru
        _
      // Predicated region
      $region61: #{moe_encoder_forward.2} parent=19 // pred_check
        %p544 = pneg %p354
      $region62: #{moe_encoder_forward.2} parent=19 // pred_check_branch
        %546 = sbr.rel (%p544) target = $region64
      $region63: #{moe_encoder_forward.2} parent=19 // pred_region
        %p547 = scmp.lt.s32.totalorder %s26, 0
        %s548 = scalar_select %p547, %s26, 0
        %p549 = scmp.lt.s32.totalorder %s27, 1
        %s550 = scalar_select %p549, %s27, 1
        %s551 = smul.addr %s548, 2
        %s552 = sadd.s32 %s550, %s551
        %s553 = scalar_lea.vmem %s11, %s552
      $region64: #{moe_encoder_forward.2} parent=19 // pred_fallthru
        _
      // Predicated region
      $region65: #{moe_encoder_forward.2} parent=19 // pred_check
        %p554 = pneg %p382
      $region66: #{moe_encoder_forward.2} parent=19 // pred_check_branch
        %556 = sbr.rel (%p554) target = $region68
      $region67: #{moe_encoder_forward.2} parent=19 // pred_region
        %p557 = scmp.lt.s32.totalorder %s26, 0
        %s558 = scalar_select %p557, %s26, 0
        %p559 = scmp.lt.s32.totalorder %s27, 1
        %s560 = scalar_select %p559, %s27, 1
        %s561 = smul.addr %s558, 2
        %s562 = sadd.s32 %s560, %s561
        %s563 = scalar_lea.vmem %s12, %s562
      $region68: #{moe_encoder_forward.2} parent=19 // pred_fallthru
        _
    $region20: #{moe_encoder_forward.2} parent=5 // pred_fallthru
      _
    %p564 = scmp.le.s32.totalorder 1, %s19
    %p565 = scmp.lt.s32.totalorder %s19, 3
    %p566 = pnand %p564, %p565
    %p567 = pneg %p566
    // Predicated region
    $region69: #{moe_encoder_forward.2} parent=5 // pred_check
      _
    $region70: #{moe_encoder_forward.2} parent=5 // pred_check_branch
      %569 = sbr.rel (%p566) target = $region72
    $region71: #{moe_encoder_forward.2} parent=5 // pred_region
      %s570 = ssub.s32 %s19, 1
      %p571 = pneg %p52
      %p572 = pneg %p49
      %p573 = scmp.lt.s32.totalorder %s28, 0
      %s574 = scalar_select %p573, %s28, 0
      %p575 = scmp.lt.s32.totalorder %s29, 1
      %s576 = scalar_select %p575, %s29, 1
      %s577 = smul.addr %s576, 4
      %s578 = smul.addr %s574, 8
      %s579 = sadd.s32 %s577, %s578
      %s580 = smul.addr %s579, 4
      %s581 = scalar_lea.vmem %s1, %s580
      %p582 = pneg %p80
      %p583 = pneg %p77
      %p584 = scmp.lt.s32.totalorder %s28, 0
      %s585 = scalar_select %p584, %s28, 0
      %p586 = scmp.lt.s32.totalorder %s29, 1
      %s587 = scalar_select %p586, %s29, 1
      %s588 = smul.addr %s585, 2
      %s589 = sadd.s32 %s587, %s588
      %s590 = scalar_lea.vmem %s2, %s589
      %p591 = pneg %p108
      %p592 = pneg %p105
      %p593 = scmp.lt.s32.totalorder %s28, 0
      %s594 = scalar_select %p593, %s28, 0
      %p595 = scmp.lt.s32.totalorder %s29, 1
      %s596 = scalar_select %p595, %s29, 1
      %s597 = smul.addr %s596, 4
      %s598 = smul.addr %s594, 8
      %s599 = sadd.s32 %s597, %s598
      %s600 = smul.addr %s599, 4
      %s601 = scalar_lea.vmem %s3, %s600
      %p602 = pneg %p136
      %p603 = pneg %p133
      %p604 = scmp.lt.s32.totalorder %s28, 0
      %s605 = scalar_select %p604, %s28, 0
      %p606 = scmp.lt.s32.totalorder %s29, 1
      %s607 = scalar_select %p606, %s29, 1
      %s608 = smul.addr %s605, 2
      %s609 = sadd.s32 %s607, %s608
      %s610 = scalar_lea.vmem %s4, %s609
      %p611 = pneg %p164
      %p612 = pneg %p161
      %p613 = scmp.lt.s32.totalorder %s28, 0
      %s614 = scalar_select %p613, %s28, 0
      %p615 = scmp.lt.s32.totalorder %s29, 1
      %s616 = scalar_select %p615, %s29, 1
      %s617 = smul.addr %s614, 2
      %s618 = sadd.s32 %s616, %s617
      %s619 = scalar_lea.vmem %s5, %s618
      %p620 = pneg %p192
      %p621 = pneg %p189
      %p622 = scmp.lt.s32.totalorder %s28, 0
      %s623 = scalar_select %p622, %s28, 0
      %p624 = scmp.lt.s32.totalorder %s29, 1
      %s625 = scalar_select %p624, %s29, 1
      %s626 = smul.addr %s623, 2
      %s627 = sadd.s32 %s625, %s626
      %s628 = scalar_lea.vmem %s6, %s627
      %p629 = pneg %p220
      %p630 = pneg %p217
      %p631 = scmp.lt.s32.totalorder %s28, 0
      %s632 = scalar_select %p631, %s28, 0
      %p633 = scmp.lt.s32.totalorder %s29, 1
      %s634 = scalar_select %p633, %s29, 1
      %s635 = smul.addr %s634, 4
      %s636 = smul.addr %s632, 8
      %s637 = sadd.s32 %s635, %s636
      %s638 = smul.addr %s637, 4
      %s639 = scalar_lea.vmem %s7, %s638
      %p640 = pneg %p248
      %p641 = pneg %p245
      %p642 = scmp.lt.s32.totalorder %s28, 0
      %s643 = scalar_select %p642, %s28, 0
      %p644 = scmp.lt.s32.totalorder %s29, 1
      %s645 = scalar_select %p644, %s29, 1
      %s646 = smul.addr %s643, 2
      %s647 = sadd.s32 %s645, %s646
      %s648 = scalar_lea.vmem %s8, %s647
      %p649 = pneg %p276
      %p650 = pneg %p273
      %p651 = scmp.lt.s32.totalorder %s28, 0
      %s652 = scalar_select %p651, %s28, 0
      %p653 = scmp.lt.s32.totalorder %s29, 1
      %s654 = scalar_select %p653, %s29, 1
      %s655 = smul.addr %s654, 8
      %s656 = smul.addr %s652, 16
      %s657 = sadd.s32 %s655, %s656
      %s658 = smul.addr %s657, 4
      %s659 = scalar_lea.vmem %s9, %s658
      %p660 = pneg %p304
      %p661 = pneg %p301
      %p662 = scmp.lt.s32.totalorder %s28, 0
      %s663 = scalar_select %p662, %s28, 0
      %p664 = scmp.lt.s32.totalorder %s29, 1
      %s665 = scalar_select %p664, %s29, 1
      %s666 = smul.addr %s663, 2
      %s667 = sadd.s32 %s665, %s666
      %s668 = scalar_lea.vmem %s10, %s667
      %p669 = pneg %p332
      %p670 = pneg %p329
      %p671 = scmp.lt.s32.totalorder %s28, 0
      %s672 = scalar_select %p671, %s28, 0
      %p673 = scmp.lt.s32.totalorder %s29, 1
      %s674 = scalar_select %p673, %s29, 1
      %s675 = smul.addr %s672, 2
      %s676 = sadd.s32 %s674, %s675
      %s677 = scalar_lea.vmem %s11, %s676
      %p678 = pneg %p360
      %p679 = pneg %p357
      %p680 = scmp.lt.s32.totalorder %s28, 0
      %s681 = scalar_select %p680, %s28, 0
      %p682 = scmp.lt.s32.totalorder %s29, 1
      %s683 = scalar_select %p682, %s29, 1
      %s684 = smul.addr %s681, 2
      %s685 = sadd.s32 %s683, %s684
      %s686 = scalar_lea.vmem %s12, %s685
      %p687 = pneg %p388
      %p688 = pneg %p385
      %p689 = pneg %p414
      %p690 = pneg %p411
      %p691 = scmp.lt.s32.totalorder %s28, 0
      %s692 = scalar_select %p691, %s28, 0
      %s693 = smul.addr %s692, 2
      %s694 = smul.addr %s693, 4
      %s695 = scalar_lea.vmem %s13, %s694
      %p696 = scmp.lt.s32.totalorder %s28, 0
      %s697 = scalar_select %p696, %s28, 0
      %p698 = scmp.lt.s32.totalorder %s29, 1
      %s699 = scalar_select %p698, %s29, 1
      %s700 = smul.addr %s699, 4
      %s701 = smul.addr %s697, 8
      %s702 = sadd.s32 %s700, %s701
      %s703 = smul.addr %s702, 4
      %s704 = scalar_lea.vmem %s1, %s703
      %p705 = scmp.lt.s32.totalorder %s28, 0
      %s706 = scalar_select %p705, %s28, 0
      %p707 = scmp.lt.s32.totalorder %s29, 1
      %s708 = scalar_select %p707, %s29, 1
      %s709 = smul.addr %s706, 2
      %s710 = sadd.s32 %s708, %s709
      %s711 = scalar_lea.vmem %s2, %s710
      %p712 = scmp.lt.s32.totalorder %s28, 0
      %s713 = scalar_select %p712, %s28, 0
      %p714 = scmp.lt.s32.totalorder %s29, 1
      %s715 = scalar_select %p714, %s29, 1
      %s716 = smul.addr %s715, 4
      %s717 = smul.addr %s713, 8
      %s718 = sadd.s32 %s716, %s717
      %s719 = smul.addr %s718, 4
      %s720 = scalar_lea.vmem %s3, %s719
      %p721 = scmp.lt.s32.totalorder %s28, 0
      %s722 = scalar_select %p721, %s28, 0
      %p723 = scmp.lt.s32.totalorder %s29, 1
      %s724 = scalar_select %p723, %s29, 1
      %s725 = smul.addr %s722, 2
      %s726 = sadd.s32 %s724, %s725
      %s727 = scalar_lea.vmem %s4, %s726
      %p728 = scmp.lt.s32.totalorder %s28, 0
      %s729 = scalar_select %p728, %s28, 0
      %p730 = scmp.lt.s32.totalorder %s29, 1
      %s731 = scalar_select %p730, %s29, 1
      %s732 = smul.addr %s729, 2
      %s733 = sadd.s32 %s731, %s732
      %s734 = scalar_lea.vmem %s5, %s733
      %p735 = scmp.lt.s32.totalorder %s28, 0
      %s736 = scalar_select %p735, %s28, 0
      %p737 = scmp.lt.s32.totalorder %s29, 1
      %s738 = scalar_select %p737, %s29, 1
      %s739 = smul.addr %s736, 2
      %s740 = sadd.s32 %s738, %s739
      %s741 = scalar_lea.vmem %s6, %s740
      %p742 = scmp.lt.s32.totalorder %s28, 0
      %s743 = scalar_select %p742, %s28, 0
      %p744 = scmp.lt.s32.totalorder %s29, 1
      %s745 = scalar_select %p744, %s29, 1
      %s746 = smul.addr %s745, 4
      %s747 = smul.addr %s743, 8
      %s748 = sadd.s32 %s746, %s747
      %s749 = smul.addr %s748, 4
      %s750 = scalar_lea.vmem %s7, %s749
      %p751 = scmp.lt.s32.totalorder %s28, 0
      %s752 = scalar_select %p751, %s28, 0
      %p753 = scmp.lt.s32.totalorder %s29, 1
      %s754 = scalar_select %p753, %s29, 1
      %s755 = smul.addr %s752, 2
      %s756 = sadd.s32 %s754, %s755
      %s757 = scalar_lea.vmem %s8, %s756
      %p758 = scmp.lt.s32.totalorder %s28, 0
      %s759 = scalar_select %p758, %s28, 0
      %p760 = scmp.lt.s32.totalorder %s29, 1
      %s761 = scalar_select %p760, %s29, 1
      %s762 = smul.addr %s761, 8
      %s763 = smul.addr %s759, 16
      %s764 = sadd.s32 %s762, %s763
      %s765 = smul.addr %s764, 4
      %s766 = scalar_lea.vmem %s9, %s765
      %p767 = scmp.lt.s32.totalorder %s28, 0
      %s768 = scalar_select %p767, %s28, 0
      %p769 = scmp.lt.s32.totalorder %s29, 1
      %s770 = scalar_select %p769, %s29, 1
      %s771 = smul.addr %s768, 2
      %s772 = sadd.s32 %s770, %s771
      %s773 = scalar_lea.vmem %s10, %s772
      %p774 = scmp.lt.s32.totalorder %s28, 0
      %s775 = scalar_select %p774, %s28, 0
      %p776 = scmp.lt.s32.totalorder %s29, 1
      %s777 = scalar_select %p776, %s29, 1
      %s778 = smul.addr %s775, 2
      %s779 = sadd.s32 %s777, %s778
      %s780 = scalar_lea.vmem %s11, %s779
      %p781 = scmp.lt.s32.totalorder %s28, 0
      %s782 = scalar_select %p781, %s28, 0
      %p783 = scmp.lt.s32.totalorder %s29, 1
      %s784 = scalar_select %p783, %s29, 1
      %s785 = smul.addr %s782, 2
      %s786 = sadd.s32 %s784, %s785
      %s787 = scalar_lea.vmem %s12, %s786
      %p788 = scmp.lt.s32.totalorder %s28, 0
      %s789 = scalar_select %p788, %s28, 0
      %s790 = smul.addr %s789, 2
      %s791 = smul.addr %s790, 4
      %s792 = scalar_lea.vmem %s13, %s791
      %p794 = scmp.eq.s32.totalorder %s29, 0
      // Predicated region
      $region73: #{moe_encoder_forward.2} parent=71 // pred_check
        %p795 = pneg %p794
      $region74: #{moe_encoder_forward.2} parent=71 // pred_check_branch
        %797 = sbr.rel (%p795) target = $region76
      $region75: #{moe_encoder_forward.2} parent=71 // pred_region
        %v798 = vld [vmem:[%s0] sm:$0xff]
        %v799 = vld [vmem:[%s0 + $0x8] sm:$0xff]
        %vm800 = vcmask 261120
        %801 = vst.msk [vmem:[#allocation2] sm:$0xff] %vm800, %v798
        %802 = vst.msk [vmem:[#allocation2 + $0x8] sm:$0xff] %vm800, %v799
      $region76: #{moe_encoder_forward.2} parent=71 // pred_fallthru
        _
      %v803 = vld [vmem:[#allocation2] sm:$0xff]
      %v804 = vld [vmem:[#allocation2 + $0x8] sm:$0xff]
      %v805 = vpack.c.bf16 %v804, %v803
      %v806 = vld [vmem:[%s704] sm:$0xf]
      %v807 = vld [vmem:[%s704 + $0x4] sm:$0xf]
      %v808 = vld [vmem:[%s704 + $0x8] sm:$0xf]
      %v809 = vld [vmem:[%s704 + $0xc] sm:$0xf]
      %v810 = vld [vmem:[%s711] sm:$0x1]
      %v812 = vlaneseq
      %v813 = vshrl.u32 %v812, 7
      %v814 = vsub.s32 0, %v813
      %v815 = vrot.slane %v810, %v814
      %v821 = vunpack.c.l.b16 %v806
      %v822 = vunpack.c.l.b16 %v807
      %v823 = vunpack.c.l.b16 %v808
      %v824 = vunpack.c.l.b16 %v809
      %v825 = vpack.c.b16 %v822, %v821
      %v826 = vpack.c.b16 %v824, %v823
      %vm829 = vcmask 261120
      %v831 = vsel %vm829, %v805, 0
      %833 = vmatprep.subr.bf16.mxu0 0
      %834 = vmatpush1.bf16.msra.mxu0 %v825
      %835 = vmatprep.subr.bf16.mxu0 0
      %836 = vmatpush1.bf16.msra.mxu0 %v826
      %837 = vmatprep.subr.bf16.mxu0 0
      %838 = vmatpush1.bf16.msra.mxu0 0
      %839 = vmatprep.subr.bf16.mxu0 0
      %840 = vmatpush1.bf16.msra.mxu0 0
      %841 = vmatprep.subr.bf16.mxu0 0
      %842 = vmatpush1.bf16.msra.mxu0 0
      %843 = vmatprep.subr.bf16.mxu0 0
      %844 = vmatpush1.bf16.msra.mxu0 0
      %845 = vmatprep.subr.bf16.mxu0 0
      %846 = vmatpush1.bf16.msra.mxu0 0
      %847 = vmatprep.subr.bf16.mxu0 0
      %848 = vmatpush1.bf16.msra.mxu0 0
      %849 = vmatprep.subr.bf16.mxu0 0
      %850 = vmatpush1.bf16.msra.mxu0 0
      %851 = vmatprep.subr.bf16.mxu0 0
      %852 = vmatpush1.bf16.msra.mxu0 0
      %853 = vmatprep.subr.bf16.mxu0 0
      %854 = vmatpush1.bf16.msra.mxu0 0
      %855 = vmatprep.subr.bf16.mxu0 0
      %856 = vmatpush1.bf16.msra.mxu0 0
      %857 = vmatprep.subr.bf16.mxu0 0
      %858 = vmatpush1.bf16.msra.mxu0 0
      %859 = vmatprep.subr.bf16.mxu0 0
      %860 = vmatpush1.bf16.msra.mxu0 0
      %861 = vmatprep.subr.bf16.mxu0 0
      %862 = vmatpush1.bf16.msra.mxu0 0
      %863 = vmatprep.subr.bf16.mxu0 0
      %864 = vmatpush1.bf16.msra.mxu0 0
      %865 = vmatprep.mubr.bf16.mxu0 0
      %866 = vmatmul.mubr.bf16.gmra.mrb[0].mxu0 %v831
      %v867 = vpop.f32.mrb[0].mxu0
      %v868 = vadd.f32 %v815, %v867
      %v869 = vpop.f32.mrb[0].mxu0
      %v870 = vpop.f32.mrb[0].mxu0
      %v871 = vadd.f32 %v815, %v870
      %v872 = vpop.f32.mrb[0].mxu0
      %873 = vdwg.mxu0
      %v874 = vpack.c.bf16 %v868, %v868
      %v875 = vpack.c.bf16 %v871, %v871
      %877 = vrot.lane.b32.xlu0 %v874, 96
      %v878 = vpop.permute.xlu0 %877
      %vm879 = vcmask 64512
      %v881 = vsel %vm879, %v874, 0
      %v884 = vsel %vm879, %v878, 0
      %886 = vmatprep.subr.bf16.mxu0 0
      %887 = vmatpush1.bf16.xpose.msra.mxu0 %v884
      %888 = vmatprep.subr.bf16.mxu0 0
      %889 = vmatpush1.bf16.xpose.msra.mxu0 0
      %890 = vmatprep.subr.bf16.mxu0 0
      %891 = vmatpush1.bf16.xpose.msra.mxu0 0
      %892 = vmatprep.subr.bf16.mxu0 0
      %893 = vmatpush1.bf16.xpose.msra.mxu0 0
      %894 = vmatprep.subr.bf16.mxu0 0
      %895 = vmatpush1.bf16.xpose.msra.mxu0 0
      %896 = vmatprep.subr.bf16.mxu0 0
      %897 = vmatpush1.bf16.xpose.msra.mxu0 0
      %898 = vmatprep.subr.bf16.mxu0 0
      %899 = vmatpush1.bf16.xpose.msra.mxu0 0
      %900 = vmatprep.subr.bf16.mxu0 0
      %901 = vmatpush1.bf16.xpose.msra.mxu0 0
      %902 = vmatprep.subr.bf16.mxu0 0
      %903 = vmatpush1.bf16.xpose.msra.mxu0 0
      %904 = vmatprep.subr.bf16.mxu0 0
      %905 = vmatpush1.bf16.xpose.msra.mxu0 0
      %906 = vmatprep.subr.bf16.mxu0 0
      %907 = vmatpush1.bf16.xpose.msra.mxu0 0
      %908 = vmatprep.subr.bf16.mxu0 0
      %909 = vmatpush1.bf16.xpose.msra.mxu0 0
      %910 = vmatprep.subr.bf16.mxu0 0
      %911 = vmatpush1.bf16.xpose.msra.mxu0 0
      %912 = vmatprep.subr.bf16.mxu0 0
      %913 = vmatpush1.bf16.xpose.msra.mxu0 0
      %914 = vmatprep.subr.bf16.mxu0 0
      %915 = vmatpush1.bf16.xpose.msra.mxu0 0
      %916 = vmatprep.subr.bf16.mxu0 0
      %917 = vmatpush1.bf16.xpose.msra.mxu0 0
      %918 = vmatprep.mubr.bf16.mxu0 0
      %919 = vmatmul.mubr.bf16.gmra.mrb[0].mxu0 %v881
      %v920 = vpop.f32.mrb[0].mxu0
      %v921 = vadd.f32 0.0, %v920
      %v922 = vpop.f32.mrb[0].mxu0
      %v923 = vpop.f32.mrb[0].mxu0
      %v924 = vpop.f32.mrb[0].mxu0
      %925 = vdwg.mxu0
      %927 = vrot.lane.b32.xlu0 %v875, 96
      %v928 = vpop.permute.xlu0 %927
      %v930 = vsel %vm879, %v875, 0
      %v933 = vsel %vm879, %v928, 0
      %935 = vmatprep.subr.bf16.mxu0 0
      %936 = vmatpush1.bf16.xpose.msra.mxu0 %v933
      %937 = vmatprep.subr.bf16.mxu0 0
      %938 = vmatpush1.bf16.xpose.msra.mxu0 0
      %939 = vmatprep.subr.bf16.mxu0 0
      %940 = vmatpush1.bf16.xpose.msra.mxu0 0
      %941 = vmatprep.subr.bf16.mxu0 0
      %942 = vmatpush1.bf16.xpose.msra.mxu0 0
      %943 = vmatprep.subr.bf16.mxu0 0
      %944 = vmatpush1.bf16.xpose.msra.mxu0 0
      %945 = vmatprep.subr.bf16.mxu0 0
      %946 = vmatpush1.bf16.xpose.msra.mxu0 0
      %947 = vmatprep.subr.bf16.mxu0 0
      %948 = vmatpush1.bf16.xpose.msra.mxu0 0
      %949 = vmatprep.subr.bf16.mxu0 0
      %950 = vmatpush1.bf16.xpose.msra.mxu0 0
      %951 = vmatprep.subr.bf16.mxu0 0
      %952 = vmatpush1.bf16.xpose.msra.mxu0 0
      %953 = vmatprep.subr.bf16.mxu0 0
      %954 = vmatpush1.bf16.xpose.msra.mxu0 0
      %955 = vmatprep.subr.bf16.mxu0 0
      %956 = vmatpush1.bf16.xpose.msra.mxu0 0
      %957 = vmatprep.subr.bf16.mxu0 0
      %958 = vmatpush1.bf16.xpose.msra.mxu0 0
      %959 = vmatprep.subr.bf16.mxu0 0
      %960 = vmatpush1.bf16.xpose.msra.mxu0 0
      %961 = vmatprep.subr.bf16.mxu0 0
      %962 = vmatpush1.bf16.xpose.msra.mxu0 0
      %963 = vmatprep.subr.bf16.mxu0 0
      %964 = vmatpush1.bf16.xpose.msra.mxu0 0
      %965 = vmatprep.subr.bf16.mxu0 0
      %966 = vmatpush1.bf16.xpose.msra.mxu0 0
      %967 = vmatprep.mubr.bf16.mxu0 0
      %968 = vmatmul.mubr.bf16.gmra.mrb[0].mxu0 %v930
      %v969 = vpop.f32.mrb[0].mxu0
      %v970 = vadd.f32 0.0, %v969
      %v971 = vpop.f32.mrb[0].mxu0
      %v972 = vpop.f32.mrb[0].mxu0
      %v973 = vpop.f32.mrb[0].mxu0
      %974 = vdwg.mxu0
      %v975 = vsel %vm879, %v921, -inf
      %976 = vmax.xlane.f32.xlu0 %v975
      %v977 = vpop.xlane.xlu0 %976
      %v978 = vsel %vm879, %v970, -inf
      %979 = vmax.xlane.f32.xlu0 %v978
      %v980 = vpop.xlane.xlu0 %979
      %v981 = vsub.f32 %v921, %v977
      %v982 = vsub.f32 %v970, %v980
      %v983 = vmul.f32 %v981, 1.442695
      %v984 = vpow.pop %v983
      %v985 = vmul.f32 %v982, 1.442695
      %v986 = vpow.pop %v985
      %v987 = vsel %vm879, %v984, 0.0
      %988 = vadd.xlane.f32.xlu0 %v987
      %v989 = vpop.xlane.xlu0 %988
      %v990 = vsel %vm879, %v986, 0.0
      %991 = vadd.xlane.f32.xlu0 %v990
      %v992 = vpop.xlane.xlu0 %991
      %v993 = vrcp.pop %v989
      %v994 = vrcp.pop %v992
      %v995 = vmul.f32 %v984, %v993
      %v996 = vmul.f32 %v986, %v994
      %v997 = vpack.c.bf16 %v995, %v995
      %v998 = vpack.c.bf16 %v996, %v996
      %999 = vrot.lane.b32.xlu0 %v874, 64
      %v1000 = vpop.permute.xlu0 %999
      %v1002 = vsel %vm879, %v997, 0
      %vm1004 = vcmask 1043456
      %v1006 = vsel %vm1004, %v1000, 0
      %1008 = vmatprep.subr.bf16.mxu0 0
      %1009 = vmatpush1.bf16.msra.mxu0 %v1006
      %1010 = vmatprep.subr.bf16.mxu0 0
      %1011 = vmatpush1.bf16.msra.mxu0 0
      %1012 = vmatprep.subr.bf16.mxu0 0
      %1013 = vmatpush1.bf16.msra.mxu0 0
      %1014 = vmatprep.subr.bf16.mxu0 0
      %1015 = vmatpush1.bf16.msra.mxu0 0
      %1016 = vmatprep.subr.bf16.mxu0 0
      %1017 = vmatpush1.bf16.msra.mxu0 0
      %1018 = vmatprep.subr.bf16.mxu0 0
      %1019 = vmatpush1.bf16.msra.mxu0 0
      %1020 = vmatprep.subr.bf16.mxu0 0
      %1021 = vmatpush1.bf16.msra.mxu0 0
      %1022 = vmatprep.subr.bf16.mxu0 0
      %1023 = vmatpush1.bf16.msra.mxu0 0
      %1024 = vmatprep.subr.bf16.mxu0 0
      %1025 = vmatpush1.bf16.msra.mxu0 0
      %1026 = vmatprep.subr.bf16.mxu0 0
      %1027 = vmatpush1.bf16.msra.mxu0 0
      %1028 = vmatprep.subr.bf16.mxu0 0
      %1029 = vmatpush1.bf16.msra.mxu0 0
      %1030 = vmatprep.subr.bf16.mxu0 0
      %1031 = vmatpush1.bf16.msra.mxu0 0
      %1032 = vmatprep.subr.bf16.mxu0 0
      %1033 = vmatpush1.bf16.msra.mxu0 0
      %1034 = vmatprep.subr.bf16.mxu0 0
      %1035 = vmatpush1.bf16.msra.mxu0 0
      %1036 = vmatprep.subr.bf16.mxu0 0
      %1037 = vmatpush1.bf16.msra.mxu0 0
      %1038 = vmatprep.subr.bf16.mxu0 0
      %1039 = vmatpush1.bf16.msra.mxu0 0
      %1040 = vmatprep.mubr.bf16.mxu0 0
      %1041 = vmatmul.mubr.bf16.gmra.mrb[0].mxu0 %v1002
      %v1042 = vpop.f32.mrb[0].mxu0
      %v1043 = vadd.f32 0.0, %v1042
      %v1044 = vpop.f32.mrb[0].mxu0
      %v1045 = vpop.f32.mrb[0].mxu0
      %v1046 = vpop.f32.mrb[0].mxu0
      %1047 = vdwg.mxu0
      %1048 = vrot.lane.b32.xlu0 %v875, 64
      %v1049 = vpop.permute.xlu0 %1048
      %v1051 = vsel %vm879, %v998, 0
      %v1054 = vsel %vm1004, %v1049, 0
      %1056 = vmatprep.subr.bf16.mxu0 0
      %1057 = vmatpush1.bf16.msra.mxu0 %v1054
      %1058 = vmatprep.subr.bf16.mxu0 0
      %1059 = vmatpush1.bf16.msra.mxu0 0
      %1060 = vmatprep.subr.bf16.mxu0 0
      %1061 = vmatpush1.bf16.msra.mxu0 0
      %1062 = vmatprep.subr.bf16.mxu0 0
      %1063 = vmatpush1.bf16.msra.mxu0 0
      %1064 = vmatprep.subr.bf16.mxu0 0
      %1065 = vmatpush1.bf16.msra.mxu0 0
      %1066 = vmatprep.subr.bf16.mxu0 0
      %1067 = vmatpush1.bf16.msra.mxu0 0
      %1068 = vmatprep.subr.bf16.mxu0 0
      %1069 = vmatpush1.bf16.msra.mxu0 0
      %1070 = vmatprep.subr.bf16.mxu0 0
      %1071 = vmatpush1.bf16.msra.mxu0 0
      %1072 = vmatprep.subr.bf16.mxu0 0
      %1073 = vmatpush1.bf16.msra.mxu0 0
      %1074 = vmatprep.subr.bf16.mxu0 0
      %1075 = vmatpush1.bf16.msra.mxu0 0
      %1076 = vmatprep.subr.bf16.mxu0 0
      %1077 = vmatpush1.bf16.msra.mxu0 0
      %1078 = vmatprep.subr.bf16.mxu0 0
      %1079 = vmatpush1.bf16.msra.mxu0 0
      %1080 = vmatprep.subr.bf16.mxu0 0
      %1081 = vmatpush1.bf16.msra.mxu0 0
      %1082 = vmatprep.subr.bf16.mxu0 0
      %1083 = vmatpush1.bf16.msra.mxu0 0
      %1084 = vmatprep.subr.bf16.mxu0 0
      %1085 = vmatpush1.bf16.msra.mxu0 0
      %1086 = vmatprep.subr.bf16.mxu0 0
      %1087 = vmatpush1.bf16.msra.mxu0 0
      %1088 = vmatprep.mubr.bf16.mxu0 0
      %1089 = vmatmul.mubr.bf16.gmra.mrb[0].mxu0 %v1051
      %v1090 = vpop.f32.mrb[0].mxu0
      %v1091 = vadd.f32 0.0, %v1090
      %v1092 = vpop.f32.mrb[0].mxu0
      %v1093 = vpop.f32.mrb[0].mxu0
      %v1094 = vpop.f32.mrb[0].mxu0
      %1095 = vdwg.mxu0
      %1096 = vst.msk [vmem:[#allocation3] sm:$0xff] %vm879, %v1043
      %1097 = vst.msk [vmem:[#allocation3 + $0x8] sm:$0xff] %vm879, %v1091
      %1098 = vrot.lane.b32.xlu0 %v874, 120
      %v1099 = vpop.permute.xlu0 %1098
      %1100 = vrot.lane.b32.xlu0 %v874, 88
      %v1101 = vpop.permute.xlu0 %1100
      %v1103 = vsel %vm879, %v1099, 0
      %v1106 = vsel %vm879, %v1101, 0
      %1108 = vmatprep.subr.bf16.mxu0 0
      %1109 = vmatpush1.bf16.xpose.msra.mxu0 %v1106
      %1110 = vmatprep.subr.bf16.mxu0 0
      %1111 = vmatpush1.bf16.xpose.msra.mxu0 0
      %1112 = vmatprep.subr.bf16.mxu0 0
      %1113 = vmatpush1.bf16.xpose.msra.mxu0 0
      %1114 = vmatprep.subr.bf16.mxu0 0
      %1115 = vmatpush1.bf16.xpose.msra.mxu0 0
      %1116 = vmatprep.subr.bf16.mxu0 0
      %1117 = vmatpush1.bf16.xpose.msra.mxu0 0
      %1118 = vmatprep.subr.bf16.mxu0 0
      %1119 = vmatpush1.bf16.xpose.msra.mxu0 0
      %1120 = vmatprep.subr.bf16.mxu0 0
      %1121 = vmatpush1.bf16.xpose.msra.mxu0 0
      %1122 = vmatprep.subr.bf16.mxu0 0
      %1123 = vmatpush1.bf16.xpose.msra.mxu0 0
      %1124 = vmatprep.subr.bf16.mxu0 0
      %1125 = vmatpush1.bf16.xpose.msra.mxu0 0
      %1126 = vmatprep.subr.bf16.mxu0 0
      %1127 = vmatpush1.bf16.xpose.msra.mxu0 0
      %1128 = vmatprep.subr.bf16.mxu0 0
      %1129 = vmatpush1.bf16.xpose.msra.mxu0 0
      %1130 = vmatprep.subr.bf16.mxu0 0
      %1131 = vmatpush1.bf16.xpose.msra.mxu0 0
      %1132 = vmatprep.subr.bf16.mxu0 0
      %1133 = vmatpush1.bf16.xpose.msra.mxu0 0
      %1134 = vmatprep.subr.bf16.mxu0 0
      %1135 = vmatpush1.bf16.xpose.msra.mxu0 0
      %1136 = vmatprep.subr.bf16.mxu0 0
      %1137 = vmatpush1.bf16.xpose.msra.mxu0 0
      %1138 = vmatprep.subr.bf16.mxu0 0
      %1139 = vmatpush1.bf16.xpose.msra.mxu0 0
      %1140 = vmatprep.mubr.bf16.mxu0 0
      %1141 = vmatmul.mubr.bf16.gmra.mrb[0].mxu0 %v1103
      %v1142 = vpop.f32.mrb[0].mxu0
      %v1143 = vadd.f32 0.0, %v1142
      %v1144 = vpop.f32.mrb[0].mxu0
      %v1145 = vpop.f32.mrb[0].mxu0
      %v1146 = vpop.f32.mrb[0].mxu0
      %1147 = vdwg.mxu0
      %1148 = vrot.lane.b32.xlu0 %v875, 120
      %v1149 = vpop.permute.xlu0 %1148
      %1150 = vrot.lane.b32.xlu0 %v875, 88
      %v1151 = vpop.permute.xlu0 %1150
      %v1153 = vsel %vm879, %v1149, 0
      %v1156 = vsel %vm879, %v1151, 0
      %1158 = vmatprep.subr.bf16.mxu0 0
      %1159 = vmatpush1.bf16.xpose.msra.mxu0 %v1156
      %1160 = vmatprep.subr.bf16.mxu0 0
      %1161 = vmatpush1.bf16.xpose.msra.mxu0 0
      %1162 = vmatprep.subr.bf16.mxu0 0
      %1163 = vmatpush1.bf16.xpose.msra.mxu0 0
      %1164 = vmatprep.subr.bf16.mxu0 0
      %1165 = vmatpush1.bf16.xpose.msra.mxu0 0
      %1166 = vmatprep.subr.bf16.mxu0 0
      %1167 = vmatpush1.bf16.xpose.msra.mxu0 0
      %1168 = vmatprep.subr.bf16.mxu0 0
      %1169 = vmatpush1.bf16.xpose.msra.mxu0 0
      %1170 = vmatprep.subr.bf16.mxu0 0
      %1171 = vmatpush1.bf16.xpose.msra.mxu0 0
      %1172 = vmatprep.subr.bf16.mxu0 0
      %1173 = vmatpush1.bf16.xpose.msra.mxu0 0
      %1174 = vmatprep.subr.bf16.mxu0 0
      %1175 = vmatpush1.bf16.xpose.msra.mxu0 0
      %1176 = vmatprep.subr.bf16.mxu0 0
      %1177 = vmatpush1.bf16.xpose.msra.mxu0 0
      %1178 = vmatprep.subr.bf16.mxu0 0
      %1179 = vmatpush1.bf16.xpose.msra.mxu0 0
      %1180 = vmatprep.subr.bf16.mxu0 0
      %1181 = vmatpush1.bf16.xpose.msra.mxu0 0
      %1182 = vmatprep.subr.bf16.mxu0 0
      %1183 = vmatpush1.bf16.xpose.msra.mxu0 0
      %1184 = vmatprep.subr.bf16.mxu0 0
      %1185 = vmatpush1.bf16.xpose.msra.mxu0 0
      %1186 = vmatprep.subr.bf16.mxu0 0
      %1187 = vmatpush1.bf16.xpose.msra.mxu0 0
      %1188 = vmatprep.subr.bf16.mxu0 0
      %1189 = vmatpush1.bf16.xpose.msra.mxu0 0
      %1190 = vmatprep.mubr.bf16.mxu0 0
      %1191 = vmatmul.mubr.bf16.gmra.mrb[0].mxu0 %v1153
      %v1192 = vpop.f32.mrb[0].mxu0
      %v1193 = vadd.f32 0.0, %v1192
      %v1194 = vpop.f32.mrb[0].mxu0
      %v1195 = vpop.f32.mrb[0].mxu0
      %v1196 = vpop.f32.mrb[0].mxu0
      %1197 = vdwg.mxu0
      %v1198 = vsel %vm879, %v1143, -inf
      %1199 = vmax.xlane.f32.xlu0 %v1198
      %v1200 = vpop.xlane.xlu0 %1199
      %v1201 = vsel %vm879, %v1193, -inf
      %1202 = vmax.xlane.f32.xlu0 %v1201
      %v1203 = vpop.xlane.xlu0 %1202
      %v1204 = vsub.f32 %v1143, %v1200
      %v1205 = vsub.f32 %v1193, %v1203
      %v1206 = vmul.f32 %v1204, 1.442695
      %v1207 = vpow.pop %v1206
      %v1208 = vmul.f32 %v1205, 1.442695
      %v1209 = vpow.pop %v1208
      %v1210 = vsel %vm879, %v1207, 0.0
      %1211 = vadd.xlane.f32.xlu0 %v1210
      %v1212 = vpop.xlane.xlu0 %1211
      %v1213 = vsel %vm879, %v1209, 0.0
      %1214 = vadd.xlane.f32.xlu0 %v1213
      %v1215 = vpop.xlane.xlu0 %1214
      %v1216 = vrcp.pop %v1212
      %v1217 = vrcp.pop %v1215
      %v1218 = vmul.f32 %v1207, %v1216
      %v1219 = vmul.f32 %v1209, %v1217
      %v1220 = vpack.c.bf16 %v1218, %v1218
      %v1221 = vpack.c.bf16 %v1219, %v1219
      %1222 = vrot.lane.b32.xlu0 %v874, 56
      %v1223 = vpop.permute.xlu0 %1222
      %v1225 = vsel %vm879, %v1220, 0
      %v1228 = vsel %vm1004, %v1223, 0
      %1230 = vmatprep.subr.bf16.mxu0 0
      %1231 = vmatpush1.bf16.msra.mxu0 %v1228
      %1232 = vmatprep.subr.bf16.mxu0 0
      %1233 = vmatpush1.bf16.msra.mxu0 0
      %1234 = vmatprep.subr.bf16.mxu0 0
      %1235 = vmatpush1.bf16.msra.mxu0 0
      %1236 = vmatprep.subr.bf16.mxu0 0
      %1237 = vmatpush1.bf16.msra.mxu0 0
      %1238 = vmatprep.subr.bf16.mxu0 0
      %1239 = vmatpush1.bf16.msra.mxu0 0
      %1240 = vmatprep.subr.bf16.mxu0 0
      %1241 = vmatpush1.bf16.msra.mxu0 0
      %1242 = vmatprep.subr.bf16.mxu0 0
      %1243 = vmatpush1.bf16.msra.mxu0 0
      %1244 = vmatprep.subr.bf16.mxu0 0
      %1245 = vmatpush1.bf16.msra.mxu0 0
      %1246 = vmatprep.subr.bf16.mxu0 0
      %1247 = vmatpush1.bf16.msra.mxu0 0
      %1248 = vmatprep.subr.bf16.mxu0 0
      %1249 = vmatpush1.bf16.msra.mxu0 0
      %1250 = vmatprep.subr.bf16.mxu0 0
      %1251 = vmatpush1.bf16.msra.mxu0 0
      %1252 = vmatprep.subr.bf16.mxu0 0
      %1253 = vmatpush1.bf16.msra.mxu0 0
      %1254 = vmatprep.subr.bf16.mxu0 0
      %1255 = vmatpush1.bf16.msra.mxu0 0
      %1256 = vmatprep.subr.bf16.mxu0 0
      %1257 = vmatpush1.bf16.msra.mxu0 0
      %1258 = vmatprep.subr.bf16.mxu0 0
      %1259 = vmatpush1.bf16.msra.mxu0 0
      %1260 = vmatprep.subr.bf16.mxu0 0
      %1261 = vmatpush1.bf16.msra.mxu0 0
      %1262 = vmatprep.mubr.bf16.mxu0 0
      %1263 = vmatmul.mubr.bf16.gmra.mrb[0].mxu0 %v1225
      %v1264 = vpop.f32.mrb[0].mxu0
      %v1265 = vadd.f32 0.0, %v1264
      %v1266 = vpop.f32.mrb[0].mxu0
      %v1267 = vpop.f32.mrb[0].mxu0
      %v1268 = vpop.f32.mrb[0].mxu0
      %1269 = vdwg.mxu0
      %1270 = vrot.lane.b32.xlu0 %v875, 56
      %v1271 = vpop.permute.xlu0 %1270
      %v1273 = vsel %vm879, %v1221, 0
      %v1276 = vsel %vm1004, %v1271, 0
      %1278 = vmatprep.subr.bf16.mxu0 0
      %1279 = vmatpush1.bf16.msra.mxu0 %v1276
      %1280 = vmatprep.subr.bf16.mxu0 0
      %1281 = vmatpush1.bf16.msra.mxu0 0
      %1282 = vmatprep.subr.bf16.mxu0 0
      %1283 = vmatpush1.bf16.msra.mxu0 0
      %1284 = vmatprep.subr.bf16.mxu0 0
      %1285 = vmatpush1.bf16.msra.mxu0 0
      %1286 = vmatprep.subr.bf16.mxu0 0
      %1287 = vmatpush1.bf16.msra.mxu0 0
      %1288 = vmatprep.subr.bf16.mxu0 0
      %1289 = vmatpush1.bf16.msra.mxu0 0
      %1290 = vmatprep.subr.bf16.mxu0 0
      %1291 = vmatpush1.bf16.msra.mxu0 0
      %1292 = vmatprep.subr.bf16.mxu0 0
      %1293 = vmatpush1.bf16.msra.mxu0 0
      %1294 = vmatprep.subr.bf16.mxu0 0
      %1295 = vmatpush1.bf16.msra.mxu0 0
      %1296 = vmatprep.subr.bf16.mxu0 0
      %1297 = vmatpush1.bf16.msra.mxu0 0
      %1298 = vmatprep.subr.bf16.mxu0 0
      %1299 = vmatpush1.bf16.msra.mxu0 0
      %1300 = vmatprep.subr.bf16.mxu0 0
      %1301 = vmatpush1.bf16.msra.mxu0 0
      %1302 = vmatprep.subr.bf16.mxu0 0
      %1303 = vmatpush1.bf16.msra.mxu0 0
      %1304 = vmatprep.subr.bf16.mxu0 0
      %1305 = vmatpush1.bf16.msra.mxu0 0
      %1306 = vmatprep.subr.bf16.mxu0 0
      %1307 = vmatpush1.bf16.msra.mxu0 0
      %1308 = vmatprep.subr.bf16.mxu0 0
      %1309 = vmatpush1.bf16.msra.mxu0 0
      %1310 = vmatprep.mubr.bf16.mxu0 0
      %1311 = vmatmul.mubr.bf16.gmra.mrb[0].mxu0 %v1273
      %v1312 = vpop.f32.mrb[0].mxu0
      %v1313 = vadd.f32 0.0, %v1312
      %v1314 = vpop.f32.mrb[0].mxu0
      %v1315 = vpop.f32.mrb[0].mxu0
      %v1316 = vpop.f32.mrb[0].mxu0
      %1317 = vdwg.mxu0
      %1320 = vrot.lane.b32.xlu0 %v1265, 8
      %v1321 = vpop.permute.xlu0 %1320
      %1322 = vrot.lane.b32.xlu0 %v1313, 8
      %v1323 = vpop.permute.xlu0 %1322
      %vm1326 = vcmask 130112
      %1327 = vst.msk [vmem:[#allocation3] sm:$0xff] %vm1326, %v1321
      %1328 = vst.msk [vmem:[#allocation3 + $0x8] sm:$0xff] %vm1326, %v1323
      %1329 = vrot.lane.b32.xlu0 %v874, 112
      %v1330 = vpop.permute.xlu0 %1329
      %1331 = vrot.lane.b32.xlu0 %v874, 80
      %v1332 = vpop.permute.xlu0 %1331
      %v1334 = vsel %vm879, %v1330, 0
      %v1337 = vsel %vm879, %v1332, 0
      %1339 = vmatprep.subr.bf16.mxu0 0
      %1340 = vmatpush1.bf16.xpose.msra.mxu0 %v1337
      %1341 = vmatprep.subr.bf16.mxu0 0
      %1342 = vmatpush1.bf16.xpose.msra.mxu0 0
      %1343 = vmatprep.subr.bf16.mxu0 0
      %1344 = vmatpush1.bf16.xpose.msra.mxu0 0
      %1345 = vmatprep.subr.bf16.mxu0 0
      %1346 = vmatpush1.bf16.xpose.msra.mxu0 0
      %1347 = vmatprep.subr.bf16.mxu0 0
      %1348 = vmatpush1.bf16.xpose.msra.mxu0 0
      %1349 = vmatprep.subr.bf16.mxu0 0
      %1350 = vmatpush1.bf16.xpose.msra.mxu0 0
      %1351 = vmatprep.subr.bf16.mxu0 0
      %1352 = vmatpush1.bf16.xpose.msra.mxu0 0
      %1353 = vmatprep.subr.bf16.mxu0 0
      %1354 = vmatpush1.bf16.xpose.msra.mxu0 0
      %1355 = vmatprep.subr.bf16.mxu0 0
      %1356 = vmatpush1.bf16.xpose.msra.mxu0 0
      %1357 = vmatprep.subr.bf16.mxu0 0
      %1358 = vmatpush1.bf16.xpose.msra.mxu0 0
      %1359 = vmatprep.subr.bf16.mxu0 0
      %1360 = vmatpush1.bf16.xpose.msra.mxu0 0
      %1361 = vmatprep.subr.bf16.mxu0 0
      %1362 = vmatpush1.bf16.xpose.msra.mxu0 0
      %1363 = vmatprep.subr.bf16.mxu0 0
      %1364 = vmatpush1.bf16.xpose.msra.mxu0 0
      %1365 = vmatprep.subr.bf16.mxu0 0
      %1366 = vmatpush1.bf16.xpose.msra.mxu0 0
      %1367 = vmatprep.subr.bf16.mxu0 0
      %1368 = vmatpush1.bf16.xpose.msra.mxu0 0
      %1369 = vmatprep.subr.bf16.mxu0 0
      %1370 = vmatpush1.bf16.xpose.msra.mxu0 0
      %1371 = vmatprep.mubr.bf16.mxu0 0
      %1372 = vmatmul.mubr.bf16.gmra.mrb[0].mxu0 %v1334
      %v1373 = vpop.f32.mrb[0].mxu0
      %v1374 = vadd.f32 0.0, %v1373
      %v1375 = vpop.f32.mrb[0].mxu0
      %v1376 = vpop.f32.mrb[0].mxu0
      %v1377 = vpop.f32.mrb[0].mxu0
      %1378 = vdwg.mxu0
      %1379 = vrot.lane.b32.xlu0 %v875, 112
      %v1380 = vpop.permute.xlu0 %1379
      %1381 = vrot.lane.b32.xlu0 %v875, 80
      %v1382 = vpop.permute.xlu0 %1381
      %v1384 = vsel %vm879, %v1380, 0
      %v1387 = vsel %vm879, %v1382, 0
      %1389 = vmatprep.subr.bf16.mxu0 0
      %1390 = vmatpush1.bf16.xpose.msra.mxu0 %v1387
      %1391 = vmatprep.subr.bf16.mxu0 0
      %1392 = vmatpush1.bf16.xpose.msra.mxu0 0
      %1393 = vmatprep.subr.bf16.mxu0 0
      %1394 = vmatpush1.bf16.xpose.msra.mxu0 0
      %1395 = vmatprep.subr.bf16.mxu0 0
      %1396 = vmatpush1.bf16.xpose.msra.mxu0 0
      %1397 = vmatprep.subr.bf16.mxu0 0
      %1398 = vmatpush1.bf16.xpose.msra.mxu0 0
      %1399 = vmatprep.subr.bf16.mxu0 0
      %1400 = vmatpush1.bf16.xpose.msra.mxu0 0
      %1401 = vmatprep.subr.bf16.mxu0 0
      %1402 = vmatpush1.bf16.xpose.msra.mxu0 0
      %1403 = vmatprep.subr.bf16.mxu0 0
      %1404 = vmatpush1.bf16.xpose.msra.mxu0 0
      %1405 = vmatprep.subr.bf16.mxu0 0
      %1406 = vmatpush1.bf16.xpose.msra.mxu0 0
      %1407 = vmatprep.subr.bf16.mxu0 0
      %1408 = vmatpush1.bf16.xpose.msra.mxu0 0
      %1409 = vmatprep.subr.bf16.mxu0 0
      %1410 = vmatpush1.bf16.xpose.msra.mxu0 0
      %1411 = vmatprep.subr.bf16.mxu0 0
      %1412 = vmatpush1.bf16.xpose.msra.mxu0 0
      %1413 = vmatprep.subr.bf16.mxu0 0
      %1414 = vmatpush1.bf16.xpose.msra.mxu0 0
      %1415 = vmatprep.subr.bf16.mxu0 0
      %1416 = vmatpush1.bf16.xpose.msra.mxu0 0
      %1417 = vmatprep.subr.bf16.mxu0 0
      %1418 = vmatpush1.bf16.xpose.msra.mxu0 0
      %1419 = vmatprep.subr.bf16.mxu0 0
      %1420 = vmatpush1.bf16.xpose.msra.mxu0 0
      %1421 = vmatprep.mubr.bf16.mxu0 0
      %1422 = vmatmul.mubr.bf16.gmra.mrb[0].mxu0 %v1384
      %v1423 = vpop.f32.mrb[0].mxu0
      %v1424 = vadd.f32 0.0, %v1423
      %v1425 = vpop.f32.mrb[0].mxu0
      %v1426 = vpop.f32.mrb[0].mxu0
      %v1427 = vpop.f32.mrb[0].mxu0
      %1428 = vdwg.mxu0
      %v1429 = vsel %vm879, %v1374, -inf
      %1430 = vmax.xlane.f32.xlu0 %v1429
      %v1431 = vpop.xlane.xlu0 %1430
      %v1432 = vsel %vm879, %v1424, -inf
      %1433 = vmax.xlane.f32.xlu0 %v1432
      %v1434 = vpop.xlane.xlu0 %1433
      %v1435 = vsub.f32 %v1374, %v1431
      %v1436 = vsub.f32 %v1424, %v1434
      %v1437 = vmul.f32 %v1435, 1.442695
      %v1438 = vpow.pop %v1437
      %v1439 = vmul.f32 %v1436, 1.442695
      %v1440 = vpow.pop %v1439
      %v1441 = vsel %vm879, %v1438, 0.0
      %1442 = vadd.xlane.f32.xlu0 %v1441
      %v1443 = vpop.xlane.xlu0 %1442
      %v1444 = vsel %vm879, %v1440, 0.0
      %1445 = vadd.xlane.f32.xlu0 %v1444
      %v1446 = vpop.xlane.xlu0 %1445
      %v1447 = vrcp.pop %v1443
      %v1448 = vrcp.pop %v1446
      %v1449 = vmul.f32 %v1438, %v1447
      %v1450 = vmul.f32 %v1440, %v1448
      %v1451 = vpack.c.bf16 %v1449, %v1449
      %v1452 = vpack.c.bf16 %v1450, %v1450
      %1453 = vrot.lane.b32.xlu0 %v874, 48
      %v1454 = vpop.permute.xlu0 %1453
      %v1456 = vsel %vm879, %v1451, 0
      %v1459 = vsel %vm1004, %v1454, 0
      %1461 = vmatprep.subr.bf16.mxu0 0
      %1462 = vmatpush1.bf16.msra.mxu0 %v1459
      %1463 = vmatprep.subr.bf16.mxu0 0
      %1464 = vmatpush1.bf16.msra.mxu0 0
      %1465 = vmatprep.subr.bf16.mxu0 0
      %1466 = vmatpush1.bf16.msra.mxu0 0
      %1467 = vmatprep.subr.bf16.mxu0 0
      %1468 = vmatpush1.bf16.msra.mxu0 0
      %1469 = vmatprep.subr.bf16.mxu0 0
      %1470 = vmatpush1.bf16.msra.mxu0 0
      %1471 = vmatprep.subr.bf16.mxu0 0
      %1472 = vmatpush1.bf16.msra.mxu0 0
      %1473 = vmatprep.subr.bf16.mxu0 0
      %1474 = vmatpush1.bf16.msra.mxu0 0
      %1475 = vmatprep.subr.bf16.mxu0 0
      %1476 = vmatpush1.bf16.msra.mxu0 0
      %1477 = vmatprep.subr.bf16.mxu0 0
      %1478 = vmatpush1.bf16.msra.mxu0 0
      %1479 = vmatprep.subr.bf16.mxu0 0
      %1480 = vmatpush1.bf16.msra.mxu0 0
      %1481 = vmatprep.subr.bf16.mxu0 0
      %1482 = vmatpush1.bf16.msra.mxu0 0
      %1483 = vmatprep.subr.bf16.mxu0 0
      %1484 = vmatpush1.bf16.msra.mxu0 0
      %1485 = vmatprep.subr.bf16.mxu0 0
      %1486 = vmatpush1.bf16.msra.mxu0 0
      %1487 = vmatprep.subr.bf16.mxu0 0
      %1488 = vmatpush1.bf16.msra.mxu0 0
      %1489 = vmatprep.subr.bf16.mxu0 0
      %1490 = vmatpush1.bf16.msra.mxu0 0
      %1491 = vmatprep.subr.bf16.mxu0 0
      %1492 = vmatpush1.bf16.msra.mxu0 0
      %1493 = vmatprep.mubr.bf16.mxu0 0
      %1494 = vmatmul.mubr.bf16.gmra.mrb[0].mxu0 %v1456
      %v1495 = vpop.f32.mrb[0].mxu0
      %v1496 = vadd.f32 0.0, %v1495
      %v1497 = vpop.f32.mrb[0].mxu0
      %v1498 = vpop.f32.mrb[0].mxu0
      %v1499 = vpop.f32.mrb[0].mxu0
      %1500 = vdwg.mxu0
      %1501 = vrot.lane.b32.xlu0 %v875, 48
      %v1502 = vpop.permute.xlu0 %1501
      %v1504 = vsel %vm879, %v1452, 0
      %v1507 = vsel %vm1004, %v1502, 0
      %1509 = vmatprep.subr.bf16.mxu0 0
      %1510 = vmatpush1.bf16.msra.mxu0 %v1507
      %1511 = vmatprep.subr.bf16.mxu0 0
      %1512 = vmatpush1.bf16.msra.mxu0 0
      %1513 = vmatprep.subr.bf16.mxu0 0
      %1514 = vmatpush1.bf16.msra.mxu0 0
      %1515 = vmatprep.subr.bf16.mxu0 0
      %1516 = vmatpush1.bf16.msra.mxu0 0
      %1517 = vmatprep.subr.bf16.mxu0 0
      %1518 = vmatpush1.bf16.msra.mxu0 0
      %1519 = vmatprep.subr.bf16.mxu0 0
      %1520 = vmatpush1.bf16.msra.mxu0 0
      %1521 = vmatprep.subr.bf16.mxu0 0
      %1522 = vmatpush1.bf16.msra.mxu0 0
      %1523 = vmatprep.subr.bf16.mxu0 0
      %1524 = vmatpush1.bf16.msra.mxu0 0
      %1525 = vmatprep.subr.bf16.mxu0 0
      %1526 = vmatpush1.bf16.msra.mxu0 0
      %1527 = vmatprep.subr.bf16.mxu0 0
      %1528 = vmatpush1.bf16.msra.mxu0 0
      %1529 = vmatprep.subr.bf16.mxu0 0
      %1530 = vmatpush1.bf16.msra.mxu0 0
      %1531 = vmatprep.subr.bf16.mxu0 0
      %1532 = vmatpush1.bf16.msra.mxu0 0
      %1533 = vmatprep.subr.bf16.mxu0 0
      %1534 = vmatpush1.bf16.msra.mxu0 0
      %1535 = vmatprep.subr.bf16.mxu0 0
      %1536 = vmatpush1.bf16.msra.mxu0 0
      %1537 = vmatprep.subr.bf16.mxu0 0
      %1538 = vmatpush1.bf16.msra.mxu0 0
      %1539 = vmatprep.subr.bf16.mxu0 0
      %1540 = vmatpush1.bf16.msra.mxu0 0
      %1541 = vmatprep.mubr.bf16.mxu0 0
      %1542 = vmatmul.mubr.bf16.gmra.mrb[0].mxu0 %v1504
      %v1543 = vpop.f32.mrb[0].mxu0
      %v1544 = vadd.f32 0.0, %v1543
      %v1545 = vpop.f32.mrb[0].mxu0
      %v1546 = vpop.f32.mrb[0].mxu0
      %v1547 = vpop.f32.mrb[0].mxu0
      %1548 = vdwg.mxu0
      %1551 = vrot.lane.b32.xlu0 %v1496, 16
      %v1552 = vpop.permute.xlu0 %1551
      %1553 = vrot.lane.b32.xlu0 %v1544, 16
      %v1554 = vpop.permute.xlu0 %1553
      %vm1557 = vcmask 195712
      %1558 = vst.msk [vmem:[#allocation3] sm:$0xff] %vm1557, %v1552
      %1559 = vst.msk [vmem:[#allocation3 + $0x8] sm:$0xff] %vm1557, %v1554
      %1560 = vrot.lane.b32.xlu0 %v874, 104
      %v1561 = vpop.permute.xlu0 %1560
      %1562 = vrot.lane.b32.xlu0 %v874, 72
      %v1563 = vpop.permute.xlu0 %1562
      %v1565 = vsel %vm879, %v1561, 0
      %v1568 = vsel %vm879, %v1563, 0
      %1570 = vmatprep.subr.bf16.mxu0 0
      %1571 = vmatpush1.bf16.xpose.msra.mxu0 %v1568
      %1572 = vmatprep.subr.bf16.mxu0 0
      %1573 = vmatpush1.bf16.xpose.msra.mxu0 0
      %1574 = vmatprep.subr.bf16.mxu0 0
      %1575 = vmatpush1.bf16.xpose.msra.mxu0 0
      %1576 = vmatprep.subr.bf16.mxu0 0
      %1577 = vmatpush1.bf16.xpose.msra.mxu0 0
      %1578 = vmatprep.subr.bf16.mxu0 0
      %1579 = vmatpush1.bf16.xpose.msra.mxu0 0
      %1580 = vmatprep.subr.bf16.mxu0 0
      %1581 = vmatpush1.bf16.xpose.msra.mxu0 0
      %1582 = vmatprep.subr.bf16.mxu0 0
      %1583 = vmatpush1.bf16.xpose.msra.mxu0 0
      %1584 = vmatprep.subr.bf16.mxu0 0
      %1585 = vmatpush1.bf16.xpose.msra.mxu0 0
      %1586 = vmatprep.subr.bf16.mxu0 0
      %1587 = vmatpush1.bf16.xpose.msra.mxu0 0
      %1588 = vmatprep.subr.bf16.mxu0 0
      %1589 = vmatpush1.bf16.xpose.msra.mxu0 0
      %1590 = vmatprep.subr.bf16.mxu0 0
      %1591 = vmatpush1.bf16.xpose.msra.mxu0 0
      %1592 = vmatprep.subr.bf16.mxu0 0
      %1593 = vmatpush1.bf16.xpose.msra.mxu0 0
      %1594 = vmatprep.subr.bf16.mxu0 0
      %1595 = vmatpush1.bf16.xpose.msra.mxu0 0
      %1596 = vmatprep.subr.bf16.mxu0 0
      %1597 = vmatpush1.bf16.xpose.msra.mxu0 0
      %1598 = vmatprep.subr.bf16.mxu0 0
      %1599 = vmatpush1.bf16.xpose.msra.mxu0 0
      %1600 = vmatprep.subr.bf16.mxu0 0
      %1601 = vmatpush1.bf16.xpose.msra.mxu0 0
      %1602 = vmatprep.mubr.bf16.mxu0 0
      %1603 = vmatmul.mubr.bf16.gmra.mrb[0].mxu0 %v1565
      %v1604 = vpop.f32.mrb[0].mxu0
      %v1605 = vadd.f32 0.0, %v1604
      %v1606 = vpop.f32.mrb[0].mxu0
      %v1607 = vpop.f32.mrb[0].mxu0
      %v1608 = vpop.f32.mrb[0].mxu0
      %1609 = vdwg.mxu0
      %1610 = vrot.lane.b32.xlu0 %v875, 104
      %v1611 = vpop.permute.xlu0 %1610
      %1612 = vrot.lane.b32.xlu0 %v875, 72
      %v1613 = vpop.permute.xlu0 %1612
      %v1615 = vsel %vm879, %v1611, 0
      %v1618 = vsel %vm879, %v1613, 0
      %1620 = vmatprep.subr.bf16.mxu0 0
      %1621 = vmatpush1.bf16.xpose.msra.mxu0 %v1618
      %1622 = vmatprep.subr.bf16.mxu0 0
      %1623 = vmatpush1.bf16.xpose.msra.mxu0 0
      %1624 = vmatprep.subr.bf16.mxu0 0
      %1625 = vmatpush1.bf16.xpose.msra.mxu0 0
      %1626 = vmatprep.subr.bf16.mxu0 0
      %1627 = vmatpush1.bf16.xpose.msra.mxu0 0
      %1628 = vmatprep.subr.bf16.mxu0 0
      %1629 = vmatpush1.bf16.xpose.msra.mxu0 0
      %1630 = vmatprep.subr.bf16.mxu0 0
      %1631 = vmatpush1.bf16.xpose.msra.mxu0 0
      %1632 = vmatprep.subr.bf16.mxu0 0
      %1633 = vmatpush1.bf16.xpose.msra.mxu0 0
      %1634 = vmatprep.subr.bf16.mxu0 0
      %1635 = vmatpush1.bf16.xpose.msra.mxu0 0
      %1636 = vmatprep.subr.bf16.mxu0 0
      %1637 = vmatpush1.bf16.xpose.msra.mxu0 0
      %1638 = vmatprep.subr.bf16.mxu0 0
      %1639 = vmatpush1.bf16.xpose.msra.mxu0 0
      %1640 = vmatprep.subr.bf16.mxu0 0
      %1641 = vmatpush1.bf16.xpose.msra.mxu0 0
      %1642 = vmatprep.subr.bf16.mxu0 0
      %1643 = vmatpush1.bf16.xpose.msra.mxu0 0
      %1644 = vmatprep.subr.bf16.mxu0 0
      %1645 = vmatpush1.bf16.xpose.msra.mxu0 0
      %1646 = vmatprep.subr.bf16.mxu0 0
      %1647 = vmatpush1.bf16.xpose.msra.mxu0 0
      %1648 = vmatprep.subr.bf16.mxu0 0
      %1649 = vmatpush1.bf16.xpose.msra.mxu0 0
      %1650 = vmatprep.subr.bf16.mxu0 0
      %1651 = vmatpush1.bf16.xpose.msra.mxu0 0
      %1652 = vmatprep.mubr.bf16.mxu0 0
      %1653 = vmatmul.mubr.bf16.gmra.mrb[0].mxu0 %v1615
      %v1654 = vpop.f32.mrb[0].mxu0
      %v1655 = vadd.f32 0.0, %v1654
      %v1656 = vpop.f32.mrb[0].mxu0
      %v1657 = vpop.f32.mrb[0].mxu0
      %v1658 = vpop.f32.mrb[0].mxu0
      %1659 = vdwg.mxu0
      %v1660 = vsel %vm879, %v1605, -inf
      %1661 = vmax.xlane.f32.xlu0 %v1660
      %v1662 = vpop.xlane.xlu0 %1661
      %v1663 = vsel %vm879, %v1655, -inf
      %1664 = vmax.xlane.f32.xlu0 %v1663
      %v1665 = vpop.xlane.xlu0 %1664
      %v1666 = vsub.f32 %v1605, %v1662
      %v1667 = vsub.f32 %v1655, %v1665
      %v1668 = vmul.f32 %v1666, 1.442695
      %v1669 = vpow.pop %v1668
      %v1670 = vmul.f32 %v1667, 1.442695
      %v1671 = vpow.pop %v1670
      %v1672 = vsel %vm879, %v1669, 0.0
      %1673 = vadd.xlane.f32.xlu0 %v1672
      %v1674 = vpop.xlane.xlu0 %1673
      %v1675 = vsel %vm879, %v1671, 0.0
      %1676 = vadd.xlane.f32.xlu0 %v1675
      %v1677 = vpop.xlane.xlu0 %1676
      %v1678 = vrcp.pop %v1674
      %v1679 = vrcp.pop %v1677
      %v1680 = vmul.f32 %v1669, %v1678
      %v1681 = vmul.f32 %v1671, %v1679
      %v1682 = vpack.c.bf16 %v1680, %v1680
      %v1683 = vpack.c.bf16 %v1681, %v1681
      %1684 = vrot.lane.b32.xlu0 %v874, 40
      %v1685 = vpop.permute.xlu0 %1684
      %v1687 = vsel %vm879, %v1682, 0
      %v1690 = vsel %vm1004, %v1685, 0
      %1692 = vmatprep.subr.bf16.mxu0 0
      %1693 = vmatpush1.bf16.msra.mxu0 %v1690
      %1694 = vmatprep.subr.bf16.mxu0 0
      %1695 = vmatpush1.bf16.msra.mxu0 0
      %1696 = vmatprep.subr.bf16.mxu0 0
      %1697 = vmatpush1.bf16.msra.mxu0 0
      %1698 = vmatprep.subr.bf16.mxu0 0
      %1699 = vmatpush1.bf16.msra.mxu0 0
      %1700 = vmatprep.subr.bf16.mxu0 0
      %1701 = vmatpush1.bf16.msra.mxu0 0
      %1702 = vmatprep.subr.bf16.mxu0 0
      %1703 = vmatpush1.bf16.msra.mxu0 0
      %1704 = vmatprep.subr.bf16.mxu0 0
      %1705 = vmatpush1.bf16.msra.mxu0 0
      %1706 = vmatprep.subr.bf16.mxu0 0
      %1707 = vmatpush1.bf16.msra.mxu0 0
      %1708 = vmatprep.subr.bf16.mxu0 0
      %1709 = vmatpush1.bf16.msra.mxu0 0
      %1710 = vmatprep.subr.bf16.mxu0 0
      %1711 = vmatpush1.bf16.msra.mxu0 0
      %1712 = vmatprep.subr.bf16.mxu0 0
      %1713 = vmatpush1.bf16.msra.mxu0 0
      %1714 = vmatprep.subr.bf16.mxu0 0
      %1715 = vmatpush1.bf16.msra.mxu0 0
      %1716 = vmatprep.subr.bf16.mxu0 0
      %1717 = vmatpush1.bf16.msra.mxu0 0
      %1718 = vmatprep.subr.bf16.mxu0 0
      %1719 = vmatpush1.bf16.msra.mxu0 0
      %1720 = vmatprep.subr.bf16.mxu0 0
      %1721 = vmatpush1.bf16.msra.mxu0 0
      %1722 = vmatprep.subr.bf16.mxu0 0
      %1723 = vmatpush1.bf16.msra.mxu0 0
      %1724 = vmatprep.mubr.bf16.mxu0 0
      %1725 = vmatmul.mubr.bf16.gmra.mrb[0].mxu0 %v1687
      %v1726 = vpop.f32.mrb[0].mxu0
      %v1727 = vadd.f32 0.0, %v1726
      %v1728 = vpop.f32.mrb[0].mxu0
      %v1729 = vpop.f32.mrb[0].mxu0
      %v1730 = vpop.f32.mrb[0].mxu0
      %1731 = vdwg.mxu0
      %1732 = vrot.lane.b32.xlu0 %v875, 40
      %v1733 = vpop.permute.xlu0 %1732
      %v1735 = vsel %vm879, %v1683, 0
      %v1738 = vsel %vm1004, %v1733, 0
      %1740 = vmatprep.subr.bf16.mxu0 0
      %1741 = vmatpush1.bf16.msra.mxu0 %v1738
      %1742 = vmatprep.subr.bf16.mxu0 0
      %1743 = vmatpush1.bf16.msra.mxu0 0
      %1744 = vmatprep.subr.bf16.mxu0 0
      %1745 = vmatpush1.bf16.msra.mxu0 0
      %1746 = vmatprep.subr.bf16.mxu0 0
      %1747 = vmatpush1.bf16.msra.mxu0 0
      %1748 = vmatprep.subr.bf16.mxu0 0
      %1749 = vmatpush1.bf16.msra.mxu0 0
      %1750 = vmatprep.subr.bf16.mxu0 0
      %1751 = vmatpush1.bf16.msra.mxu0 0
      %1752 = vmatprep.subr.bf16.mxu0 0
      %1753 = vmatpush1.bf16.msra.mxu0 0
      %1754 = vmatprep.subr.bf16.mxu0 0
      %1755 = vmatpush1.bf16.msra.mxu0 0
      %1756 = vmatprep.subr.bf16.mxu0 0
      %1757 = vmatpush1.bf16.msra.mxu0 0
      %1758 = vmatprep.subr.bf16.mxu0 0
      %1759 = vmatpush1.bf16.msra.mxu0 0
      %1760 = vmatprep.subr.bf16.mxu0 0
      %1761 = vmatpush1.bf16.msra.mxu0 0
      %1762 = vmatprep.subr.bf16.mxu0 0
      %1763 = vmatpush1.bf16.msra.mxu0 0
      %1764 = vmatprep.subr.bf16.mxu0 0
      %1765 = vmatpush1.bf16.msra.mxu0 0
      %1766 = vmatprep.subr.bf16.mxu0 0
      %1767 = vmatpush1.bf16.msra.mxu0 0
      %1768 = vmatprep.subr.bf16.mxu0 0
      %1769 = vmatpush1.bf16.msra.mxu0 0
      %1770 = vmatprep.subr.bf16.mxu0 0
      %1771 = vmatpush1.bf16.msra.mxu0 0
      %1772 = vmatprep.mubr.bf16.mxu0 0
      %1773 = vmatmul.mubr.bf16.gmra.mrb[0].mxu0 %v1735
      %v1774 = vpop.f32.mrb[0].mxu0
      %v1775 = vadd.f32 0.0, %v1774
      %v1776 = vpop.f32.mrb[0].mxu0
      %v1777 = vpop.f32.mrb[0].mxu0
      %v1778 = vpop.f32.mrb[0].mxu0
      %1779 = vdwg.mxu0
      %1782 = vrot.lane.b32.xlu0 %v1727, 24
      %v1783 = vpop.permute.xlu0 %1782
      %1784 = vrot.lane.b32.xlu0 %v1775, 24
      %v1785 = vpop.permute.xlu0 %1784
      %vm1788 = vcmask 261312
      %1789 = vst.msk [vmem:[#allocation3] sm:$0xff] %vm1788, %v1783
      %1790 = vst.msk [vmem:[#allocation3 + $0x8] sm:$0xff] %vm1788, %v1785
      %v1791 = vld [vmem:[#allocation3] sm:$0xff]
      %v1792 = vld [vmem:[#allocation3 + $0x8] sm:$0xff]
      %v1793 = vpack.c.bf16 %v1792, %v1791
      %v1794 = vld [vmem:[%s720] sm:$0xf]
      %v1795 = vld [vmem:[%s720 + $0x4] sm:$0xf]
      %v1796 = vld [vmem:[%s720 + $0x8] sm:$0xf]
      %v1797 = vld [vmem:[%s720 + $0xc] sm:$0xf]
      %v1798 = vld [vmem:[%s727] sm:$0x1]
      %v1800 = vlaneseq
      %v1801 = vshrl.u32 %v1800, 7
      %v1802 = vsub.s32 0, %v1801
      %v1803 = vrot.slane %v1798, %v1802
      %v1809 = vunpack.c.l.b16 %v1794
      %v1810 = vunpack.c.l.b16 %v1795
      %v1811 = vunpack.c.l.b16 %v1796
      %v1812 = vunpack.c.l.b16 %v1797
      %v1813 = vpack.c.b16 %v1810, %v1809
      %v1814 = vpack.c.b16 %v1812, %v1811
      %v1818 = vsel %vm829, %v1793, 0
      %1820 = vmatprep.subr.bf16.mxu0 0
      %1821 = vmatpush1.bf16.msra.mxu0 %v1813
      %1822 = vmatprep.subr.bf16.mxu0 0
      %1823 = vmatpush1.bf16.msra.mxu0 %v1814
      %1824 = vmatprep.subr.bf16.mxu0 0
      %1825 = vmatpush1.bf16.msra.mxu0 0
      %1826 = vmatprep.subr.bf16.mxu0 0
      %1827 = vmatpush1.bf16.msra.mxu0 0
      %1828 = vmatprep.subr.bf16.mxu0 0
      %1829 = vmatpush1.bf16.msra.mxu0 0
      %1830 = vmatprep.subr.bf16.mxu0 0
      %1831 = vmatpush1.bf16.msra.mxu0 0
      %1832 = vmatprep.subr.bf16.mxu0 0
      %1833 = vmatpush1.bf16.msra.mxu0 0
      %1834 = vmatprep.subr.bf16.mxu0 0
      %1835 = vmatpush1.bf16.msra.mxu0 0
      %1836 = vmatprep.subr.bf16.mxu0 0
      %1837 = vmatpush1.bf16.msra.mxu0 0
      %1838 = vmatprep.subr.bf16.mxu0 0
      %1839 = vmatpush1.bf16.msra.mxu0 0
      %1840 = vmatprep.subr.bf16.mxu0 0
      %1841 = vmatpush1.bf16.msra.mxu0 0
      %1842 = vmatprep.subr.bf16.mxu0 0
      %1843 = vmatpush1.bf16.msra.mxu0 0
      %1844 = vmatprep.subr.bf16.mxu0 0
      %1845 = vmatpush1.bf16.msra.mxu0 0
      %1846 = vmatprep.subr.bf16.mxu0 0
      %1847 = vmatpush1.bf16.msra.mxu0 0
      %1848 = vmatprep.subr.bf16.mxu0 0
      %1849 = vmatpush1.bf16.msra.mxu0 0
      %1850 = vmatprep.subr.bf16.mxu0 0
      %1851 = vmatpush1.bf16.msra.mxu0 0
      %1852 = vmatprep.mubr.bf16.mxu0 0
      %1853 = vmatmul.mubr.bf16.gmra.mrb[0].mxu0 %v1818
      %v1854 = vpop.f32.mrb[0].mxu0
      %v1855 = vadd.f32 %v1803, %v1854
      %v1856 = vpop.f32.mrb[0].mxu0
      %v1857 = vpop.f32.mrb[0].mxu0
      %v1858 = vadd.f32 %v1803, %v1857
      %v1859 = vpop.f32.mrb[0].mxu0
      %1860 = vdwg.mxu0
      %v1861 = vadd.f32 %v1855, %v803
      %v1862 = vadd.f32 %v1858, %v804
      %v1863 = vld [vmem:[%s734] sm:$0x1]
      %v1864 = vld [vmem:[%s741] sm:$0x1]
      %v1865 = vsel %vm829, %v1861, 0.0
      %1866 = vadd.xlane.f32.xlu0 %v1865
      %v1867 = vpop.xlane.xlu0 %1866
      %v1868 = vsel %vm829, %v1862, 0.0
      %1869 = vadd.xlane.f32.xlu0 %v1868
      %v1870 = vpop.xlane.xlu0 %1869
      %v1871 = vrcp.pop 32.0
      %v1872 = vmul.f32 %v1867, %v1871
      %v1873 = vmul.f32 %v1870, %v1871
      %v1874 = vsub.f32 %v1861, %v1872
      %v1875 = vsub.f32 %v1862, %v1873
      %v1876 = vmul.f32 %v1874, %v1874
      %v1877 = vmul.f32 %v1875, %v1875
      %v1878 = vsel %vm829, %v1876, 0.0
      %1879 = vadd.xlane.f32.xlu0 %v1878
      %v1880 = vpop.xlane.xlu0 %1879
      %v1881 = vsel %vm829, %v1877, 0.0
      %1882 = vadd.xlane.f32.xlu0 %v1881
      %v1883 = vpop.xlane.xlu0 %1882
      %v1884 = vmul.f32 %v1880, %v1871
      %v1885 = vmul.f32 %v1883, %v1871
      %v1886 = vadd.f32 %v1884, 1e-05
      %v1887 = vadd.f32 %v1885, 1e-05
      %v1888 = vrsqrt.pop %v1886
      %v1889 = vrsqrt.pop %v1887
      %v1890 = vmul.f32 %v1874, %v1888
      %v1891 = vmul.f32 %v1875, %v1889
      %v1893 = vlaneseq
      %v1894 = vshrl.u32 %v1893, 7
      %v1895 = vsub.s32 0, %v1894
      %v1896 = vrot.slane %v1863, %v1895
      %v1898 = vmul.f32 %v1890, %v1896
      %v1899 = vmul.f32 %v1891, %v1896
      %v1901 = vlaneseq
      %v1902 = vshrl.u32 %v1901, 7
      %v1903 = vsub.s32 0, %v1902
      %v1904 = vrot.slane %v1864, %v1903
      %v1906 = vadd.f32 %v1898, %v1904
      %v1907 = vadd.f32 %v1899, %v1904
      %v1908 = vpack.c.bf16 %v1907, %v1906
      %v1909 = vld [vmem:[%s750] sm:$0xf]
      %v1910 = vld [vmem:[%s750 + $0x4] sm:$0xf]
      %v1911 = vld [vmem:[%s750 + $0x8] sm:$0xf]
      %v1912 = vld [vmem:[%s750 + $0xc] sm:$0xf]
      %v1913 = vld [vmem:[%s757] sm:$0x1]
      %v1915 = vlaneseq
      %v1916 = vshrl.u32 %v1915, 7
      %v1917 = vsub.s32 0, %v1916
      %v1918 = vrot.slane %v1913, %v1917
      %v1924 = vunpack.c.l.b16 %v1909
      %v1925 = vunpack.c.l.b16 %v1910
      %v1926 = vunpack.c.l.b16 %v1911
      %v1927 = vunpack.c.l.b16 %v1912
      %v1928 = vpack.c.b16 %v1925, %v1924
      %v1929 = vpack.c.b16 %v1927, %v1926
      %v1933 = vsel %vm829, %v1908, 0
      %1935 = vmatprep.subr.bf16.mxu0 0
      %1936 = vmatpush1.bf16.msra.mxu0 %v1928
      %1937 = vmatprep.subr.bf16.mxu0 0
      %1938 = vmatpush1.bf16.msra.mxu0 %v1929
      %1939 = vmatprep.subr.bf16.mxu0 0
      %1940 = vmatpush1.bf16.msra.mxu0 0
      %1941 = vmatprep.subr.bf16.mxu0 0
      %1942 = vmatpush1.bf16.msra.mxu0 0
      %1943 = vmatprep.subr.bf16.mxu0 0
      %1944 = vmatpush1.bf16.msra.mxu0 0
      %1945 = vmatprep.subr.bf16.mxu0 0
      %1946 = vmatpush1.bf16.msra.mxu0 0
      %1947 = vmatprep.subr.bf16.mxu0 0
      %1948 = vmatpush1.bf16.msra.mxu0 0
      %1949 = vmatprep.subr.bf16.mxu0 0
      %1950 = vmatpush1.bf16.msra.mxu0 0
      %1951 = vmatprep.subr.bf16.mxu0 0
      %1952 = vmatpush1.bf16.msra.mxu0 0
      %1953 = vmatprep.subr.bf16.mxu0 0
      %1954 = vmatpush1.bf16.msra.mxu0 0
      %1955 = vmatprep.subr.bf16.mxu0 0
      %1956 = vmatpush1.bf16.msra.mxu0 0
      %1957 = vmatprep.subr.bf16.mxu0 0
      %1958 = vmatpush1.bf16.msra.mxu0 0
      %1959 = vmatprep.subr.bf16.mxu0 0
      %1960 = vmatpush1.bf16.msra.mxu0 0
      %1961 = vmatprep.subr.bf16.mxu0 0
      %1962 = vmatpush1.bf16.msra.mxu0 0
      %1963 = vmatprep.subr.bf16.mxu0 0
      %1964 = vmatpush1.bf16.msra.mxu0 0
      %1965 = vmatprep.subr.bf16.mxu0 0
      %1966 = vmatpush1.bf16.msra.mxu0 0
      %1967 = vmatprep.mubr.bf16.mxu0 0
      %1968 = vmatmul.mubr.bf16.gmra.mrb[0].mxu0 %v1933
      %v1969 = vpop.f32.mrb[0].mxu0
      %v1970 = vadd.f32 %v1918, %v1969
      %v1971 = vpop.f32.mrb[0].mxu0
      %v1972 = vpop.f32.mrb[0].mxu0
      %v1973 = vadd.f32 %v1918, %v1972
      %v1974 = vpop.f32.mrb[0].mxu0
      %1975 = vdwg.mxu0
      %v1976 = vmul.f32 %v1970, 0.5
      %v1977 = vmul.f32 %v1973, 0.5
      %v1978 = vmul.f32 %v1970, 0.044715
      %v1979 = vmul.f32 %v1973, 0.044715
      %v1980 = vmul.f32 %v1978, %v1970
      %v1981 = vmul.f32 %v1979, %v1973
      %v1982 = vmul.f32 %v1980, %v1970
      %v1983 = vmul.f32 %v1981, %v1973
      %v1984 = vadd.f32 %v1970, %v1982
      %v1985 = vadd.f32 %v1973, %v1983
      %v1986 = vmul.f32 %v1984, 0.7978846
      %v1987 = vmul.f32 %v1985, 0.7978846
      %v1988 = vtanh.pop %v1986
      %v1989 = vtanh.pop %v1987
      %v1990 = vadd.f32 %v1988, 1.0
      %v1991 = vadd.f32 %v1989, 1.0
      %v1992 = vmul.f32 %v1976, %v1990
      %v1993 = vmul.f32 %v1977, %v1991
      %v1994 = vpack.c.bf16 %v1993, %v1992
      %v1995 = vld [vmem:[%s766] sm:$0xf]
      %v1996 = vld [vmem:[%s766 + $0x4] sm:$0xf]
      %v1997 = vld [vmem:[%s766 + $0x8] sm:$0xf]
      %v1998 = vld [vmem:[%s766 + $0xc] sm:$0xf]
      %v1999 = vld [vmem:[%s766 + $0x10] sm:$0xf]
      %v2000 = vld [vmem:[%s766 + $0x14] sm:$0xf]
      %v2001 = vld [vmem:[%s766 + $0x18] sm:$0xf]
      %v2002 = vld [vmem:[%s766 + $0x1c] sm:$0xf]
      %v2003 = vld [vmem:[%s773] sm:$0x1]
      %v2005 = vlaneseq
      %v2006 = vshrl.u32 %v2005, 7
      %v2007 = vsub.s32 0, %v2006
      %v2008 = vrot.slane %v2003, %v2007
      %v2018 = vunpack.c.l.b16 %v1995
      %v2019 = vunpack.c.l.b16 %v1996
      %v2020 = vunpack.c.l.b16 %v1997
      %v2021 = vunpack.c.l.b16 %v1998
      %v2022 = vunpack.c.l.b16 %v1999
      %v2023 = vunpack.c.l.b16 %v2000
      %v2024 = vunpack.c.l.b16 %v2001
      %v2025 = vunpack.c.l.b16 %v2002
      %v2026 = vpack.c.b16 %v2019, %v2018
      %v2027 = vpack.c.b16 %v2021, %v2020
      %v2028 = vpack.c.b16 %v2023, %v2022
      %v2029 = vpack.c.b16 %v2025, %v2024
      %vm2034 = vcmask 523264
      %v2036 = vsel %vm2034, %v1994, 0
      %2038 = vmatprep.subr.bf16.mxu0 0
      %2039 = vmatpush1.bf16.msra.mxu0 %v2026
      %2040 = vmatprep.subr.bf16.mxu0 0
      %2041 = vmatpush1.bf16.msra.mxu0 %v2027
      %2042 = vmatprep.subr.bf16.mxu0 0
      %2043 = vmatpush1.bf16.msra.mxu0 %v2028
      %2044 = vmatprep.subr.bf16.mxu0 0
      %2045 = vmatpush1.bf16.msra.mxu0 %v2029
      %2046 = vmatprep.subr.bf16.mxu0 0
      %2047 = vmatpush1.bf16.msra.mxu0 0
      %2048 = vmatprep.subr.bf16.mxu0 0
      %2049 = vmatpush1.bf16.msra.mxu0 0
      %2050 = vmatprep.subr.bf16.mxu0 0
      %2051 = vmatpush1.bf16.msra.mxu0 0
      %2052 = vmatprep.subr.bf16.mxu0 0
      %2053 = vmatpush1.bf16.msra.mxu0 0
      %2054 = vmatprep.subr.bf16.mxu0 0
      %2055 = vmatpush1.bf16.msra.mxu0 0
      %2056 = vmatprep.subr.bf16.mxu0 0
      %2057 = vmatpush1.bf16.msra.mxu0 0
      %2058 = vmatprep.subr.bf16.mxu0 0
      %2059 = vmatpush1.bf16.msra.mxu0 0
      %2060 = vmatprep.subr.bf16.mxu0 0
      %2061 = vmatpush1.bf16.msra.mxu0 0
      %2062 = vmatprep.subr.bf16.mxu0 0
      %2063 = vmatpush1.bf16.msra.mxu0 0
      %2064 = vmatprep.subr.bf16.mxu0 0
      %2065 = vmatpush1.bf16.msra.mxu0 0
      %2066 = vmatprep.subr.bf16.mxu0 0
      %2067 = vmatpush1.bf16.msra.mxu0 0
      %2068 = vmatprep.subr.bf16.mxu0 0
      %2069 = vmatpush1.bf16.msra.mxu0 0
      %2070 = vmatprep.mubr.bf16.mxu0 0
      %2071 = vmatmul.mubr.bf16.gmra.mrb[0].mxu0 %v2036
      %v2072 = vpop.f32.mrb[0].mxu0
      %v2073 = vadd.f32 %v2008, %v2072
      %v2074 = vpop.f32.mrb[0].mxu0
      %v2075 = vpop.f32.mrb[0].mxu0
      %v2076 = vadd.f32 %v2008, %v2075
      %v2077 = vpop.f32.mrb[0].mxu0
      %2078 = vdwg.mxu0
      %v2079 = vadd.f32 %v2073, %v1906
      %v2080 = vadd.f32 %v2076, %v1907
      %v2081 = vld [vmem:[%s780] sm:$0x1]
      %v2082 = vld [vmem:[%s787] sm:$0x1]
      %v2083 = vsel %vm829, %v2079, 0.0
      %2084 = vadd.xlane.f32.xlu0 %v2083
      %v2085 = vpop.xlane.xlu0 %2084
      %v2086 = vsel %vm829, %v2080, 0.0
      %2087 = vadd.xlane.f32.xlu0 %v2086
      %v2088 = vpop.xlane.xlu0 %2087
      %v2089 = vmul.f32 %v2085, %v1871
      %v2090 = vmul.f32 %v2088, %v1871
      %v2091 = vsub.f32 %v2079, %v2089
      %v2092 = vsub.f32 %v2080, %v2090
      %v2093 = vmul.f32 %v2091, %v2091
      %v2094 = vmul.f32 %v2092, %v2092
      %v2095 = vsel %vm829, %v2093, 0.0
      %2096 = vadd.xlane.f32.xlu0 %v2095
      %v2097 = vpop.xlane.xlu0 %2096
      %v2098 = vsel %vm829, %v2094, 0.0
      %2099 = vadd.xlane.f32.xlu0 %v2098
      %v2100 = vpop.xlane.xlu0 %2099
      %v2101 = vmul.f32 %v2097, %v1871
      %v2102 = vmul.f32 %v2100, %v1871
      %v2103 = vadd.f32 %v2101, 1e-05
      %v2104 = vadd.f32 %v2102, 1e-05
      %v2105 = vrsqrt.pop %v2103
      %v2106 = vrsqrt.pop %v2104
      %v2107 = vmul.f32 %v2091, %v2105
      %v2108 = vmul.f32 %v2092, %v2106
      %v2110 = vlaneseq
      %v2111 = vshrl.u32 %v2110, 7
      %v2112 = vsub.s32 0, %v2111
      %v2113 = vrot.slane %v2081, %v2112
      %v2115 = vmul.f32 %v2107, %v2113
      %v2116 = vmul.f32 %v2108, %v2113
      %v2118 = vlaneseq
      %v2119 = vshrl.u32 %v2118, 7
      %v2120 = vsub.s32 0, %v2119
      %v2121 = vrot.slane %v2082, %v2120
      %v2123 = vadd.f32 %v2115, %v2121
      %v2124 = vadd.f32 %v2116, %v2121
      %2125 = vst.msk [vmem:[#allocation2] sm:$0xff] %vm829, %v2123
      %2126 = vst.msk [vmem:[#allocation2 + $0x8] sm:$0xff] %vm829, %v2124
      %v2127 = vpack.c.bf16 %v2124, %v2123
      %v2129 = vunpack.c.l.b16 %v2127
      %v2130 = vunpack.c.h.b16 %v2127
      %v2131 = vpack.c.b16 %v2129, %v2129
      %v2132 = vpack.c.b16 %v2130, %v2130
      %vm2135 = vcmask 257024
      %2136 = vst.msk [vmem:[%s792] sm:$0xf] %vm2135, %v2131
      %2137 = vst.msk [vmem:[%s792 + $0x4] sm:$0xf] %vm2135, %v2132
      %p2138 = scmp.lt.s32.totalorder %s28, 0
      %s2139 = scalar_select %p2138, %s28, 0
      %s2140 = smul.addr %s2139, 2
      %s2141 = smul.addr %s2140, 4
      %s2142 = scalar_lea.vmem %s13, %s2141
      // Predicated region
      $region77: #{moe_encoder_forward.2} parent=71 // pred_check
        %p2143 = pneg %p411
      $region78: #{moe_encoder_forward.2} parent=71 // pred_check_branch
        %2145 = sbr.rel (%p2143) target = $region80
      $region79: #{moe_encoder_forward.2} parent=71 // pred_region
        _
      $region80: #{moe_encoder_forward.2} parent=71 // pred_fallthru
        _
      // Predicated region
      $region81: #{moe_encoder_forward.2} parent=71 // pred_check
        %p2146 = pneg %p411
      $region82: #{moe_encoder_forward.2} parent=71 // pred_check_branch
        %2148 = sbr.rel (%p2146) target = $region84
      $region83: #{moe_encoder_forward.2} parent=71 // pred_region
        %p2149 = scmp.lt.s32.totalorder %s28, 0
        %s2150 = scalar_select %p2149, %s28, 0
        %s2151 = smul.addr %s2150, 2
        %s2152 = smul.addr %s2151, 4
        %s2153 = scalar_lea.vmem %s13, %s2152
      $region84: #{moe_encoder_forward.2} parent=71 // pred_fallthru
        _
    $region72: #{moe_encoder_forward.2} parent=5 // pred_fallthru
      _
    %p2154 = scmp.le.s32.totalorder 2, %s19
    // Predicated region
    $region85: #{moe_encoder_forward.2} parent=5 // pred_check
      %p2155 = pneg %p2154
    $region86: #{moe_encoder_forward.2} parent=5 // pred_check_branch
      %2157 = sbr.rel (%p2155) target = $region88
    $region87: #{moe_encoder_forward.2} parent=5 // pred_region
      %s2158 = ssub.s32 %s19, 2
    $region88: #{moe_encoder_forward.2} parent=5 // pred_fallthru
      _
  $region6: #{moe_encoder_forward.2} parent=0 // loop_footer
    %s23 = sadd.s32 1, %s19
  $region7: #{moe_encoder_forward.2} parent=0 // loop_footer_branch
    %18 = sbr.rel target = $region3
  $region8: #{moe_encoder_forward.2} parent=0 // loop_exit
    _

</llo_original>
